<compile_context>
chip_gen: v5e
topology: v5e:2x2
jax: 0.10.0
libtpu: 0.0.40
codegen_flags: <defaults>
</compile_context>

<pallas_src>
import math

import jax
import jax.numpy as jnp
from jax.experimental import pallas as pl
from jax.experimental.pallas import tpu as pltpu

# ----------------------------- configuration -----------------------------
HID = 32          # transformer hidden size
HEADS = 2
HEAD_DIM = HID // HEADS
FF = 64           # feed-forward inner size
SRC_VOCAB = 50    # source vocabulary size
IN_TRG = 16       # in_trg_size  (continuous skeleton input dim, incl. counter)
OUT_TRG = 16      # out_trg_size (skeleton output dim)
LN_EPS = 1e-6
ATTN_SCALE = 1.0 / math.sqrt(HEAD_DIM)
EMB_SCALE = math.sqrt(HID)
NEG_INF = -1e9


# ------------------------- in-kernel helper functions -------------------------
def _ln(x, ln_param):
    """x: [M, H]; ln_param: [2, H] (row 0 = gamma, row 1 = beta)."""
    g = ln_param[0:1, :]
    b = ln_param[1:2, :]
    mu = jnp.mean(x, axis=-1, keepdims=True)
    var = jnp.mean((x - mu) ** 2, axis=-1, keepdims=True)
    return (x - mu) * jax.lax.rsqrt(var + LN_EPS) * g + b


def _linear(x, w, b):
    return jnp.dot(x, w, preferred_element_type=jnp.float32) + b


def _softmax_attend(q, k, v, mask):
    """q: [Sq, Dh], k/v: [Sk, Dh], mask: [Sq, Sk] (1 = attend)."""
    s = jax.lax.dot_general(q, k, (((1,), (1,)), ((), ())),
                            preferred_element_type=jnp.float32) * ATTN_SCALE
    s = jnp.where(mask > 0.0, s, NEG_INF)
    s = s - jnp.max(s, axis=-1, keepdims=True)
    p = jnp.exp(s)
    p = p * pl.reciprocal(jnp.sum(p, axis=-1, keepdims=True), approx=True)
    return jnp.dot(p, v, preferred_element_type=jnp.float32)


def _mha(q_all, k_all, v_all, masks, batch, s_q, s_k):
    """q_all: [B*Sq, H], k_all/v_all: [B*Sk, H], masks: list of B [Sq, Sk]."""
    rows = []
    for b in range(batch):
        qb = q_all[b * s_q:(b + 1) * s_q, :]
        kb = k_all[b * s_k:(b + 1) * s_k, :]
        vb = v_all[b * s_k:(b + 1) * s_k, :]
        heads = []
        for h in range(HEADS):
            lo, hi = h * HEAD_DIM, (h + 1) * HEAD_DIM
            heads.append(
                _softmax_attend(qb[:, lo:hi], kb[:, lo:hi], vb[:, lo:hi], masks[b]))
        rows.append(jnp.concatenate(heads, axis=-1))        # [Sq, H]
    return jnp.concatenate(rows, axis=0)                    # [B*Sq, H]


# ----------------------------- fused forward kernel -----------------------------
def _fused_forward_kernel(
    src_x_ref, trg_in_ref, pe_trg_ref, src_km_ref, causal_ref,
    # encoder layer
    enc_ln1_ref, enc_qkv_w_ref, enc_qkv_b_ref, enc_wo_ref, enc_bo_ref,
    enc_ln2_ref, enc_ff1_w_ref, enc_ff1_b_ref, enc_ff2_w_ref, enc_ff2_b_ref,
    enc_lnf_ref,
    # target embedding
    trg_emb_w_ref, trg_emb_b_ref,
    # decoder layer
    dec_ln1_ref, dec_sqkv_w_ref, dec_sqkv_b_ref, dec_swo_ref, dec_sbo_ref,
    dec_ln2_ref, dec_cqkv_w_ref, dec_cqkv_b_ref, dec_cwo_ref, dec_cbo_ref,
    dec_ln3_ref, dec_ff1_w_ref, dec_ff1_b_ref, dec_ff2_w_ref, dec_ff2_b_ref,
    dec_lnf_ref,
    # output projection
    out_w_ref, out_b_ref,
    # output
    skel_ref,
):
    batch, s_src = src_km_ref.shape
    s_trg = causal_ref.shape[0]
    h_dim = HID

    src_km = src_km_ref[...]                 # [B, S_src], 1 at valid keys
    causal = causal_ref[...]                 # [S_trg, S_trg]

    enc_self_masks = [
        jnp.broadcast_to(src_km[b:b + 1, :], (s_src, s_src)) for b in range(batch)]
    cross_masks = [
        jnp.broadcast_to(src_km[b:b + 1, :], (s_trg, s_src)) for b in range(batch)]
    causal_masks = [causal for _ in range(batch)]

    # ------------------------------ encoder (1 layer, pre-LN) ------------------------------
    x = src_x_ref[...]                                            # [B*S_src, H]
    h = _ln(x, enc_ln1_ref[...])
    qkv = _linear(h, enc_qkv_w_ref[...], enc_qkv_b_ref[...])      # [B*S_src, 3H]
    ctx = _mha(qkv[:, 0:h_dim], qkv[:, h_dim:2 * h_dim], qkv[:, 2 * h_dim:3 * h_dim],
               enc_self_masks, batch, s_src, s_src)
    x = x + _linear(ctx, enc_wo_ref[...], enc_bo_ref[...])
    h = _ln(x, enc_ln2_ref[...])
    ff = jnp.maximum(_linear(h, enc_ff1_w_ref[...], enc_ff1_b_ref[...]), 0.0)
    x = x + _linear(ff, enc_ff2_w_ref[...], enc_ff2_b_ref[...])
    enc_out = _ln(x, enc_lnf_ref[...])                            # [B*S_src, H]

    # ------------------------------ target embedding ------------------------------
    y = _linear(trg_in_ref[...], trg_emb_w_ref[...], trg_emb_b_ref[...])
    y = y * EMB_SCALE + pe_trg_ref[...]                           # [B*S_trg, H]

    # ------------------------------ decoder (1 layer, pre-LN) ------------------------------
    h = _ln(y, dec_ln1_ref[...])
    qkv = _linear(h, dec_sqkv_w_ref[...], dec_sqkv_b_ref[...])
    ctx = _mha(qkv[:, 0:h_dim], qkv[:, h_dim:2 * h_dim], qkv[:, 2 * h_dim:3 * h_dim],
               causal_masks, batch, s_trg, s_trg)
    y = y + _linear(ctx, dec_swo_ref[...], dec_sbo_ref[...])

    h = _ln(y, dec_ln2_ref[...])
    q_full = _linear(h, dec_cqkv_w_ref[...], dec_cqkv_b_ref[...])        # q from decoder
    kv_full = _linear(enc_out, dec_cqkv_w_ref[...], dec_cqkv_b_ref[...])  # k,v from encoder
    ctx = _mha(q_full[:, 0:h_dim], kv_full[:, h_dim:2 * h_dim],
               kv_full[:, 2 * h_dim:3 * h_dim],
               cross_masks, batch, s_trg, s_src)
    y = y + _linear(ctx, dec_cwo_ref[...], dec_cbo_ref[...])

    h = _ln(y, dec_ln3_ref[...])
    ff = jnp.maximum(_linear(h, dec_ff1_w_ref[...], dec_ff1_b_ref[...]), 0.0)
    y = y + _linear(ff, dec_ff2_w_ref[...], dec_ff2_b_ref[...])
    dec_out = _ln(y, dec_lnf_ref[...])                            # [B*S_trg, H]

    # ------------------------------ output projection ------------------------------
    skel = _linear(dec_out, out_w_ref[...], out_b_ref[...])       # [B*S_trg, OUT_TRG]
    skel_ref[...] = skel.reshape(batch, s_trg, OUT_TRG)


def _fused_forward(data_inputs, weights, batch, s_trg):
    inputs = list(data_inputs) + list(weights)
    vmem = pl.BlockSpec(memory_space=pltpu.MemorySpace.VMEM)
    return pl.pallas_call(
        _fused_forward_kernel,
        out_shape=jax.ShapeDtypeStruct((batch, s_trg, OUT_TRG), jnp.float32),
        in_specs=[vmem for _ in inputs],
        out_specs=vmem,
    )(*inputs)


# ----------------------------- glue (plain JAX, inside jit) -----------------------------
def positional_encoding(seq_len, dim):
    """Interleaved sin/cos positional encoding (pe[:,0::2]=sin, pe[:,1::2]=cos)."""
    pos = jnp.arange(seq_len, dtype=jnp.float32)[:, None]
    div = jnp.exp(jnp.arange(0, dim, 2, dtype=jnp.float32)
                  * (-math.log(10000.0) / dim))[None, :]
    ang = pos * div                                       # [seq, dim/2]
    pe = jnp.stack([jnp.sin(ang), jnp.cos(ang)], axis=-1).reshape(seq_len, dim)
    return pe


def _f32(x):
    return x.astype(jnp.float32)


def _pack_ln(g, b):
    return jnp.stack([_f32(g), _f32(b)], axis=0)          # [2, H]


def _pack_qkv(p):
    w = jnp.concatenate([p["wq"], p["wk"], p["wv"]], axis=1)        # [H, 3H]
    b = jnp.concatenate([p["bq"], p["bk"], p["bv"]], axis=0)[None]  # [1, 3H]
    return _f32(w), _f32(b)


# ----------------------------- model forward -----------------------------
@jax.jit
def model_forward(params, src, trg_input, src_mask, src_lengths, trg_mask):
    """
    Mirrors Model.forward: encode(src) -> decode(trg_input) -> (skel_out, None).
    src:       [B, S_src] int32
    trg_input: [B, S_trg, IN_TRG] float32
    src_mask:  [B, 1, S_src] bool  (1 at valid tokens)
    trg_mask:  [1, S_trg, S_trg] bool (causal / subsequent mask)
    """
    del src_lengths  # lengths already encoded in src_mask
    B, S_src = src.shape
    S_trg = trg_input.shape[1]

    # Source embedding (lookup + scale + PE) — glue, constant-folded under jit.
    pe_src = positional_encoding(S_src, HID)
    pe_trg = positional_encoding(S_trg, HID)
    src_x = params["src_emb"][src] * EMB_SCALE + pe_src[None]
    src_x2 = _f32(src_x.reshape(B * S_src, HID))

    trg2 = _f32(trg_input.reshape(B * S_trg, IN_TRG))
    pe_trg2 = jnp.broadcast_to(pe_trg[None], (B, S_trg, HID)).reshape(B * S_trg, HID)

    src_km = _f32(src_mask.reshape(B, S_src))              # key-validity mask
    causal = _f32(trg_mask.reshape(S_trg, S_trg))          # subsequent mask

    enc, dec = params["enc"], params["dec"]
    enc_qkv_w, enc_qkv_b = _pack_qkv(enc["attn"])
    dec_sqkv_w, dec_sqkv_b = _pack_qkv(dec["self_attn"])
    dec_cqkv_w, dec_cqkv_b = _pack_qkv(dec["cross_attn"])

    weights = [
        _pack_ln(enc["ln1_g"], enc["ln1_b"]),
        enc_qkv_w, enc_qkv_b,
        _f32(enc["attn"]["wo"]), _f32(enc["attn"]["bo"])[None],
        _pack_ln(enc["ln2_g"], enc["ln2_b"]),
        _f32(enc["ff_w1"]), _f32(enc["ff_b1"])[None],
        _f32(enc["ff_w2"]), _f32(enc["ff_b2"])[None],
        _pack_ln(params["enc_ln_g"], params["enc_ln_b"]),
        _f32(params["trg_emb_w"]), _f32(params["trg_emb_b"])[None],
        _pack_ln(dec["ln1_g"], dec["ln1_b"]),
        dec_sqkv_w, dec_sqkv_b,
        _f32(dec["self_attn"]["wo"]), _f32(dec["self_attn"]["bo"])[None],
        _pack_ln(dec["ln2_g"], dec["ln2_b"]),
        dec_cqkv_w, dec_cqkv_b,
        _f32(dec["cross_attn"]["wo"]), _f32(dec["cross_attn"]["bo"])[None],
        _pack_ln(dec["ln3_g"], dec["ln3_b"]),
        _f32(dec["ff_w1"]), _f32(dec["ff_b1"])[None],
        _f32(dec["ff_w2"]), _f32(dec["ff_b2"])[None],
        _pack_ln(params["dec_ln_g"], params["dec_ln_b"]),
        _f32(params["out_w"]), _f32(params["out_b"])[None],
    ]

    skel_out = _fused_forward(
        (src_x2, trg2, pe_trg2, src_km, causal), weights, B, S_trg)
    gloss_out = None  # as in the reference Model.forward
    return skel_out, gloss_out
    # TODO(synk): gaussian_noise / future_prediction branches are training-only
    # (self.training) and depend on running stats (out_stds); not reproduced here.
    # TODO(synk): only one encoder / one decoder layer is modeled (num_layers=1).


# ----------------------------- parameter init -----------------------------
def init_params(key):
    keys = iter(jax.random.split(key, 32))

    def nrm(shape, scale=0.05):
        return (scale * jax.random.normal(next(keys), shape)).astype(jnp.float32)

    def attn_params():
        return {
            "wq": nrm((HID, HID)), "bq": jnp.zeros((HID,), jnp.float32),
            "wk": nrm((HID, HID)), "bk": jnp.zeros((HID,), jnp.float32),
            "wv": nrm((HID, HID)), "bv": jnp.zeros((HID,), jnp.float32),
            "wo": nrm((HID, HID)), "bo": jnp.zeros((HID,), jnp.float32),
        }

    def ln():
        return jnp.ones((HID,), jnp.float32), jnp.zeros((HID,), jnp.float32)

    enc_ln1_g, enc_ln1_b = ln()
    enc_ln2_g, enc_ln2_b = ln()
    dec_ln1_g, dec_ln1_b = ln()
    dec_ln2_g, dec_ln2_b = ln()
    dec_ln3_g, dec_ln3_b = ln()
    enc_ln_g, enc_ln_b = ln()
    dec_ln_g, dec_ln_b = ln()

    return {
        "src_emb": nrm((SRC_VOCAB, HID)),
        "trg_emb_w": nrm((IN_TRG, HID)),
        "trg_emb_b": jnp.zeros((HID,), jnp.float32),
        "enc": {
            "attn": attn_params(),
            "ln1_g": enc_ln1_g, "ln1_b": enc_ln1_b,
            "ln2_g": enc_ln2_g, "ln2_b": enc_ln2_b,
            "ff_w1": nrm((HID, FF)), "ff_b1": jnp.zeros((FF,), jnp.float32),
            "ff_w2": nrm((FF, HID)), "ff_b2": jnp.zeros((HID,), jnp.float32),
        },
        "enc_ln_g": enc_ln_g, "enc_ln_b": enc_ln_b,
        "dec": {
            "self_attn": attn_params(),
            "cross_attn": attn_params(),
            "ln1_g": dec_ln1_g, "ln1_b": dec_ln1_b,
            "ln2_g": dec_ln2_g, "ln2_b": dec_ln2_b,
            "ln3_g": dec_ln3_g, "ln3_b": dec_ln3_b,
            "ff_w1": nrm((HID, FF)), "ff_b1": jnp.zeros((FF,), jnp.float32),
            "ff_w2": nrm((FF, HID)), "ff_b2": jnp.zeros((HID,), jnp.float32),
        },
        "dec_ln_g": dec_ln_g, "dec_ln_b": dec_ln_b,
        "out_w": nrm((HID, OUT_TRG)),
        "out_b": jnp.zeros((OUT_TRG,), jnp.float32),
    }


# ----------------------------- main -----------------------------
if __name__ == "__main__":
    key = jax.random.PRNGKey(0)
    k_param, k_src, k_trg = jax.random.split(key, 3)
    params = init_params(k_param)

    B, S_SRC, S_TRG = 2, 8, 8
    src = jax.random.randint(k_src, (B, S_SRC), 0, SRC_VOCAB, dtype=jnp.int32)
    trg_input = jax.random.normal(k_trg, (B, S_TRG, IN_TRG), dtype=jnp.float32)

    src_lengths = jnp.array([8, 6], dtype=jnp.int32)
    src_mask = (jnp.arange(S_SRC)[None, :] < src_lengths[:, None])[:, None, :]
    trg_mask = jnp.tril(jnp.ones((1, S_TRG, S_TRG), dtype=bool))

    skel_out, gloss_out = model_forward(
        params, src, trg_input, src_mask, src_lengths, trg_mask)
    skel_out = jax.block_until_ready(skel_out)

    assert skel_out.shape == (B, S_TRG, OUT_TRG), skel_out.shape
    assert skel_out.dtype == jnp.float32
    assert bool(jnp.all(jnp.isfinite(skel_out)))
    assert gloss_out is None
    print("KERNEL_OK")
</pallas_src>

<mosaic_0001>
module attributes {stable_mosaic.version = 11 : i64} {
  func.func @_fused_forward_kernel(%arg0: memref<16x32xf32, #tpu.memory_space<vmem>>, %arg1: memref<16x16xf32, #tpu.memory_space<vmem>>, %arg2: memref<16x32xf32, #tpu.memory_space<vmem>>, %arg3: memref<2x8xf32, #tpu.memory_space<vmem>>, %arg4: memref<8x8xf32, #tpu.memory_space<vmem>>, %arg5: memref<2x32xf32, #tpu.memory_space<vmem>>, %arg6: memref<32x96xf32, #tpu.memory_space<vmem>>, %arg7: memref<1x96xf32, #tpu.memory_space<vmem>>, %arg8: memref<32x32xf32, #tpu.memory_space<vmem>>, %arg9: memref<1x32xf32, #tpu.memory_space<vmem>>, %arg10: memref<2x32xf32, #tpu.memory_space<vmem>>, %arg11: memref<32x64xf32, #tpu.memory_space<vmem>>, %arg12: memref<1x64xf32, #tpu.memory_space<vmem>>, %arg13: memref<64x32xf32, #tpu.memory_space<vmem>>, %arg14: memref<1x32xf32, #tpu.memory_space<vmem>>, %arg15: memref<2x32xf32, #tpu.memory_space<vmem>>, %arg16: memref<16x32xf32, #tpu.memory_space<vmem>>, %arg17: memref<1x32xf32, #tpu.memory_space<vmem>>, %arg18: memref<2x32xf32, #tpu.memory_space<vmem>>, %arg19: memref<32x96xf32, #tpu.memory_space<vmem>>, %arg20: memref<1x96xf32, #tpu.memory_space<vmem>>, %arg21: memref<32x32xf32, #tpu.memory_space<vmem>>, %arg22: memref<1x32xf32, #tpu.memory_space<vmem>>, %arg23: memref<2x32xf32, #tpu.memory_space<vmem>>, %arg24: memref<32x96xf32, #tpu.memory_space<vmem>>, %arg25: memref<1x96xf32, #tpu.memory_space<vmem>>, %arg26: memref<32x32xf32, #tpu.memory_space<vmem>>, %arg27: memref<1x32xf32, #tpu.memory_space<vmem>>, %arg28: memref<2x32xf32, #tpu.memory_space<vmem>>, %arg29: memref<32x64xf32, #tpu.memory_space<vmem>>, %arg30: memref<1x64xf32, #tpu.memory_space<vmem>>, %arg31: memref<64x32xf32, #tpu.memory_space<vmem>>, %arg32: memref<1x32xf32, #tpu.memory_space<vmem>>, %arg33: memref<2x32xf32, #tpu.memory_space<vmem>>, %arg34: memref<32x16xf32, #tpu.memory_space<vmem>>, %arg35: memref<1x16xf32, #tpu.memory_space<vmem>>, %arg36: memref<2x8x16xf32, #tpu.memory_space<vmem>>) attributes {dimension_semantics = [], scalar_prefetch = 0 : i64, scratch_operands = 0 : i64, tpu.core_type = #tpu.core_type<tc>} {
    %c0 = arith.constant 0 : index
    %c0_0 = arith.constant 0 : index
    %0 = vector.load %arg3[%c0, %c0_0] : memref<2x8xf32, #tpu.memory_space<vmem>>, vector<2x8xf32>
    %c0_1 = arith.constant 0 : index
    %c0_2 = arith.constant 0 : index
    %1 = vector.load %arg4[%c0_1, %c0_2] : memref<8x8xf32, #tpu.memory_space<vmem>>, vector<8x8xf32>
    %2 = vector.extract_strided_slice %0 {offsets = [0, 0], sizes = [1, 8], strides = [1, 1]} : vector<2x8xf32> to vector<1x8xf32>
    %3 = vector.shape_cast %2 : vector<1x8xf32> to vector<1x8xf32>
    %4 = vector.broadcast %3 : vector<1x8xf32> to vector<8x8xf32>
    %5 = vector.extract_strided_slice %0 {offsets = [1, 0], sizes = [1, 8], strides = [1, 1]} : vector<2x8xf32> to vector<1x8xf32>
    %6 = vector.shape_cast %5 : vector<1x8xf32> to vector<1x8xf32>
    %7 = vector.broadcast %6 : vector<1x8xf32> to vector<8x8xf32>
    %8 = vector.extract_strided_slice %0 {offsets = [0, 0], sizes = [1, 8], strides = [1, 1]} : vector<2x8xf32> to vector<1x8xf32>
    %9 = vector.shape_cast %8 : vector<1x8xf32> to vector<1x8xf32>
    %10 = vector.broadcast %9 : vector<1x8xf32> to vector<8x8xf32>
    %11 = vector.extract_strided_slice %0 {offsets = [1, 0], sizes = [1, 8], strides = [1, 1]} : vector<2x8xf32> to vector<1x8xf32>
    %12 = vector.shape_cast %11 : vector<1x8xf32> to vector<1x8xf32>
    %13 = vector.broadcast %12 : vector<1x8xf32> to vector<8x8xf32>
    %c0_3 = arith.constant 0 : index
    %c0_4 = arith.constant 0 : index
    %14 = vector.load %arg0[%c0_3, %c0_4] : memref<16x32xf32, #tpu.memory_space<vmem>>, vector<16x32xf32>
    %c0_5 = arith.constant 0 : index
    %c0_6 = arith.constant 0 : index
    %15 = vector.load %arg5[%c0_5, %c0_6] : memref<2x32xf32, #tpu.memory_space<vmem>>, vector<2x32xf32>
    %16 = vector.extract_strided_slice %15 {offsets = [0, 0], sizes = [1, 32], strides = [1, 1]} : vector<2x32xf32> to vector<1x32xf32>
    %17 = vector.extract_strided_slice %15 {offsets = [1, 0], sizes = [1, 32], strides = [1, 1]} : vector<2x32xf32> to vector<1x32xf32>
    %cst = arith.constant dense<0.000000e+00> : vector<16xf32>
    %18 = vector.multi_reduction <add>, %14, %cst [1] : vector<16x32xf32> to vector<16xf32>
    %19 = vector.shape_cast %18 : vector<16xf32> to vector<16x1xf32>
    %cst_7 = arith.constant 3.200000e+01 : f32
    %20 = vector.broadcast %cst_7 : f32 to vector<16x1xf32>
    %21 = arith.divf %19, %20 : vector<16x1xf32>
    %22 = vector.broadcast %21 : vector<16x1xf32> to vector<16x32xf32>
    %23 = arith.subf %14, %22 : vector<16x32xf32>
    %24 = arith.mulf %23, %23 : vector<16x32xf32>
    %cst_8 = arith.constant dense<0.000000e+00> : vector<16xf32>
    %25 = vector.multi_reduction <add>, %24, %cst_8 [1] : vector<16x32xf32> to vector<16xf32>
    %26 = vector.shape_cast %25 : vector<16xf32> to vector<16x1xf32>
    %cst_9 = arith.constant 3.200000e+01 : f32
    %27 = vector.broadcast %cst_9 : f32 to vector<16x1xf32>
    %28 = arith.divf %26, %27 : vector<16x1xf32>
    %29 = vector.broadcast %21 : vector<16x1xf32> to vector<16x32xf32>
    %30 = arith.subf %14, %29 : vector<16x32xf32>
    %cst_10 = arith.constant 9.99999997E-7 : f32
    %31 = vector.broadcast %cst_10 : f32 to vector<16x1xf32>
    %32 = arith.addf %28, %31 : vector<16x1xf32>
    %33 = math.rsqrt %32 : vector<16x1xf32>
    %34 = vector.broadcast %33 : vector<16x1xf32> to vector<16x32xf32>
    %35 = arith.mulf %30, %34 : vector<16x32xf32>
    %36 = vector.broadcast %16 : vector<1x32xf32> to vector<16x32xf32>
    %37 = arith.mulf %35, %36 : vector<16x32xf32>
    %38 = vector.broadcast %17 : vector<1x32xf32> to vector<16x32xf32>
    %39 = arith.addf %37, %38 : vector<16x32xf32>
    %c0_11 = arith.constant 0 : index
    %c0_12 = arith.constant 0 : index
    %40 = vector.load %arg6[%c0_11, %c0_12] : memref<32x96xf32, #tpu.memory_space<vmem>>, vector<32x96xf32>
    %c0_13 = arith.constant 0 : index
    %c0_14 = arith.constant 0 : index
    %41 = vector.load %arg7[%c0_13, %c0_14] : memref<1x96xf32, #tpu.memory_space<vmem>>, vector<1x96xf32>
    %cst_15 = arith.constant dense<0.000000e+00> : vector<16x96xf32>
    %42 = tpu.matmul %39, %40, %cst_15 {dimension_numbers = #tpu.dot_dimension_numbers<[1], [0], [0], [1], [0, 0, 1, 1], [], []>} : vector<16x32xf32>, vector<32x96xf32>, vector<16x96xf32> -> vector<16x96xf32>
    %43 = vector.broadcast %41 : vector<1x96xf32> to vector<16x96xf32>
    %44 = arith.addf %42, %43 : vector<16x96xf32>
    %45 = vector.extract_strided_slice %44 {offsets = [0, 0], sizes = [16, 32], strides = [1, 1]} : vector<16x96xf32> to vector<16x32xf32>
    %46 = vector.extract_strided_slice %44 {offsets = [0, 32], sizes = [16, 32], strides = [1, 1]} : vector<16x96xf32> to vector<16x32xf32>
    %47 = vector.extract_strided_slice %44 {offsets = [0, 64], sizes = [16, 32], strides = [1, 1]} : vector<16x96xf32> to vector<16x32xf32>
    %48 = vector.extract_strided_slice %45 {offsets = [0, 0], sizes = [8, 32], strides = [1, 1]} : vector<16x32xf32> to vector<8x32xf32>
    %49 = vector.extract_strided_slice %46 {offsets = [0, 0], sizes = [8, 32], strides = [1, 1]} : vector<16x32xf32> to vector<8x32xf32>
    %50 = vector.extract_strided_slice %47 {offsets = [0, 0], sizes = [8, 32], strides = [1, 1]} : vector<16x32xf32> to vector<8x32xf32>
    %51 = vector.extract_strided_slice %48 {offsets = [0, 0], sizes = [8, 16], strides = [1, 1]} : vector<8x32xf32> to vector<8x16xf32>
    %52 = vector.extract_strided_slice %49 {offsets = [0, 0], sizes = [8, 16], strides = [1, 1]} : vector<8x32xf32> to vector<8x16xf32>
    %53 = vector.extract_strided_slice %50 {offsets = [0, 0], sizes = [8, 16], strides = [1, 1]} : vector<8x32xf32> to vector<8x16xf32>
    %cst_16 = arith.constant dense<0.000000e+00> : vector<8x8xf32>
    %54 = tpu.matmul %51, %52, %cst_16 {dimension_numbers = #tpu.dot_dimension_numbers<[1], [1], [0], [0], [0, 0, 1, 0], [], []>} : vector<8x16xf32>, vector<8x16xf32>, vector<8x8xf32> -> vector<8x8xf32>
    %cst_17 = arith.constant 2.500000e-01 : f32
    %55 = vector.broadcast %cst_17 : f32 to vector<8x8xf32>
    %56 = arith.mulf %54, %55 : vector<8x8xf32>
    %cst_18 = arith.constant 0.000000e+00 : f32
    %57 = vector.broadcast %cst_18 : f32 to vector<8x8xf32>
    %58 = arith.cmpf ogt, %4, %57 : vector<8x8xf32>
    %cst_19 = arith.constant -1.000000e+09 : f32
    %59 = vector.broadcast %cst_19 : f32 to vector<8x8xf32>
    %60 = arith.select %58, %56, %59 : vector<8x8xi1>, vector<8x8xf32>
    %cst_20 = arith.constant dense<0xFF800000> : vector<8xf32>
    %61 = vector.multi_reduction <maximumf>, %60, %cst_20 [1] : vector<8x8xf32> to vector<8xf32>
    %62 = vector.shape_cast %61 : vector<8xf32> to vector<8x1xf32>
    %63 = vector.broadcast %62 : vector<8x1xf32> to vector<8x8xf32>
    %64 = arith.subf %60, %63 : vector<8x8xf32>
    %65 = math.exp %64 : vector<8x8xf32>
    %cst_21 = arith.constant dense<0.000000e+00> : vector<8xf32>
    %66 = vector.multi_reduction <add>, %65, %cst_21 [1] : vector<8x8xf32> to vector<8xf32>
    %67 = vector.shape_cast %66 : vector<8xf32> to vector<8x1xf32>
    %68 = tpu.reciprocal %67 {approx = true} : vector<8x1xf32> -> vector<8x1xf32>
    %69 = vector.broadcast %68 : vector<8x1xf32> to vector<8x8xf32>
    %70 = arith.mulf %65, %69 : vector<8x8xf32>
    %cst_22 = arith.constant dense<0.000000e+00> : vector<8x16xf32>
    %71 = tpu.matmul %70, %53, %cst_22 {dimension_numbers = #tpu.dot_dimension_numbers<[1], [0], [0], [1], [0, 0, 1, 1], [], []>} : vector<8x8xf32>, vector<8x16xf32>, vector<8x16xf32> -> vector<8x16xf32>
    %72 = vector.extract_strided_slice %48 {offsets = [0, 16], sizes = [8, 16], strides = [1, 1]} : vector<8x32xf32> to vector<8x16xf32>
    %73 = vector.extract_strided_slice %49 {offsets = [0, 16], sizes = [8, 16], strides = [1, 1]} : vector<8x32xf32> to vector<8x16xf32>
    %74 = vector.extract_strided_slice %50 {offsets = [0, 16], sizes = [8, 16], strides = [1, 1]} : vector<8x32xf32> to vector<8x16xf32>
    %cst_23 = arith.constant dense<0.000000e+00> : vector<8x8xf32>
    %75 = tpu.matmul %72, %73, %cst_23 {dimension_numbers = #tpu.dot_dimension_numbers<[1], [1], [0], [0], [0, 0, 1, 0], [], []>} : vector<8x16xf32>, vector<8x16xf32>, vector<8x8xf32> -> vector<8x8xf32>
    %cst_24 = arith.constant 2.500000e-01 : f32
    %76 = vector.broadcast %cst_24 : f32 to vector<8x8xf32>
    %77 = arith.mulf %75, %76 : vector<8x8xf32>
    %cst_25 = arith.constant 0.000000e+00 : f32
    %78 = vector.broadcast %cst_25 : f32 to vector<8x8xf32>
    %79 = arith.cmpf ogt, %4, %78 : vector<8x8xf32>
    %cst_26 = arith.constant -1.000000e+09 : f32
    %80 = vector.broadcast %cst_26 : f32 to vector<8x8xf32>
    %81 = arith.select %79, %77, %80 : vector<8x8xi1>, vector<8x8xf32>
    %cst_27 = arith.constant dense<0xFF800000> : vector<8xf32>
    %82 = vector.multi_reduction <maximumf>, %81, %cst_27 [1] : vector<8x8xf32> to vector<8xf32>
    %83 = vector.shape_cast %82 : vector<8xf32> to vector<8x1xf32>
    %84 = vector.broadcast %83 : vector<8x1xf32> to vector<8x8xf32>
    %85 = arith.subf %81, %84 : vector<8x8xf32>
    %86 = math.exp %85 : vector<8x8xf32>
    %cst_28 = arith.constant dense<0.000000e+00> : vector<8xf32>
    %87 = vector.multi_reduction <add>, %86, %cst_28 [1] : vector<8x8xf32> to vector<8xf32>
    %88 = vector.shape_cast %87 : vector<8xf32> to vector<8x1xf32>
    %89 = tpu.reciprocal %88 {approx = true} : vector<8x1xf32> -> vector<8x1xf32>
    %90 = vector.broadcast %89 : vector<8x1xf32> to vector<8x8xf32>
    %91 = arith.mulf %86, %90 : vector<8x8xf32>
    %cst_29 = arith.constant dense<0.000000e+00> : vector<8x16xf32>
    %92 = tpu.matmul %91, %74, %cst_29 {dimension_numbers = #tpu.dot_dimension_numbers<[1], [0], [0], [1], [0, 0, 1, 1], [], []>} : vector<8x8xf32>, vector<8x16xf32>, vector<8x16xf32> -> vector<8x16xf32>
    %93 = tpu.concatenate %71, %92 in 1 : vector<8x16xf32>, vector<8x16xf32> -> vector<8x32xf32>
    %94 = vector.extract_strided_slice %45 {offsets = [8, 0], sizes = [8, 32], strides = [1, 1]} : vector<16x32xf32> to vector<8x32xf32>
    %95 = vector.extract_strided_slice %46 {offsets = [8, 0], sizes = [8, 32], strides = [1, 1]} : vector<16x32xf32> to vector<8x32xf32>
    %96 = vector.extract_strided_slice %47 {offsets = [8, 0], sizes = [8, 32], strides = [1, 1]} : vector<16x32xf32> to vector<8x32xf32>
    %97 = vector.extract_strided_slice %94 {offsets = [0, 0], sizes = [8, 16], strides = [1, 1]} : vector<8x32xf32> to vector<8x16xf32>
    %98 = vector.extract_strided_slice %95 {offsets = [0, 0], sizes = [8, 16], strides = [1, 1]} : vector<8x32xf32> to vector<8x16xf32>
    %99 = vector.extract_strided_slice %96 {offsets = [0, 0], sizes = [8, 16], strides = [1, 1]} : vector<8x32xf32> to vector<8x16xf32>
    %cst_30 = arith.constant dense<0.000000e+00> : vector<8x8xf32>
    %100 = tpu.matmul %97, %98, %cst_30 {dimension_numbers = #tpu.dot_dimension_numbers<[1], [1], [0], [0], [0, 0, 1, 0], [], []>} : vector<8x16xf32>, vector<8x16xf32>, vector<8x8xf32> -> vector<8x8xf32>
    %cst_31 = arith.constant 2.500000e-01 : f32
    %101 = vector.broadcast %cst_31 : f32 to vector<8x8xf32>
    %102 = arith.mulf %100, %101 : vector<8x8xf32>
    %cst_32 = arith.constant 0.000000e+00 : f32
    %103 = vector.broadcast %cst_32 : f32 to vector<8x8xf32>
    %104 = arith.cmpf ogt, %7, %103 : vector<8x8xf32>
    %cst_33 = arith.constant -1.000000e+09 : f32
    %105 = vector.broadcast %cst_33 : f32 to vector<8x8xf32>
    %106 = arith.select %104, %102, %105 : vector<8x8xi1>, vector<8x8xf32>
    %cst_34 = arith.constant dense<0xFF800000> : vector<8xf32>
    %107 = vector.multi_reduction <maximumf>, %106, %cst_34 [1] : vector<8x8xf32> to vector<8xf32>
    %108 = vector.shape_cast %107 : vector<8xf32> to vector<8x1xf32>
    %109 = vector.broadcast %108 : vector<8x1xf32> to vector<8x8xf32>
    %110 = arith.subf %106, %109 : vector<8x8xf32>
    %111 = math.exp %110 : vector<8x8xf32>
    %cst_35 = arith.constant dense<0.000000e+00> : vector<8xf32>
    %112 = vector.multi_reduction <add>, %111, %cst_35 [1] : vector<8x8xf32> to vector<8xf32>
    %113 = vector.shape_cast %112 : vector<8xf32> to vector<8x1xf32>
    %114 = tpu.reciprocal %113 {approx = true} : vector<8x1xf32> -> vector<8x1xf32>
    %115 = vector.broadcast %114 : vector<8x1xf32> to vector<8x8xf32>
    %116 = arith.mulf %111, %115 : vector<8x8xf32>
    %cst_36 = arith.constant dense<0.000000e+00> : vector<8x16xf32>
    %117 = tpu.matmul %116, %99, %cst_36 {dimension_numbers = #tpu.dot_dimension_numbers<[1], [0], [0], [1], [0, 0, 1, 1], [], []>} : vector<8x8xf32>, vector<8x16xf32>, vector<8x16xf32> -> vector<8x16xf32>
    %118 = vector.extract_strided_slice %94 {offsets = [0, 16], sizes = [8, 16], strides = [1, 1]} : vector<8x32xf32> to vector<8x16xf32>
    %119 = vector.extract_strided_slice %95 {offsets = [0, 16], sizes = [8, 16], strides = [1, 1]} : vector<8x32xf32> to vector<8x16xf32>
    %120 = vector.extract_strided_slice %96 {offsets = [0, 16], sizes = [8, 16], strides = [1, 1]} : vector<8x32xf32> to vector<8x16xf32>
    %cst_37 = arith.constant dense<0.000000e+00> : vector<8x8xf32>
    %121 = tpu.matmul %118, %119, %cst_37 {dimension_numbers = #tpu.dot_dimension_numbers<[1], [1], [0], [0], [0, 0, 1, 0], [], []>} : vector<8x16xf32>, vector<8x16xf32>, vector<8x8xf32> -> vector<8x8xf32>
    %cst_38 = arith.constant 2.500000e-01 : f32
    %122 = vector.broadcast %cst_38 : f32 to vector<8x8xf32>
    %123 = arith.mulf %121, %122 : vector<8x8xf32>
    %cst_39 = arith.constant 0.000000e+00 : f32
    %124 = vector.broadcast %cst_39 : f32 to vector<8x8xf32>
    %125 = arith.cmpf ogt, %7, %124 : vector<8x8xf32>
    %cst_40 = arith.constant -1.000000e+09 : f32
    %126 = vector.broadcast %cst_40 : f32 to vector<8x8xf32>
    %127 = arith.select %125, %123, %126 : vector<8x8xi1>, vector<8x8xf32>
    %cst_41 = arith.constant dense<0xFF800000> : vector<8xf32>
    %128 = vector.multi_reduction <maximumf>, %127, %cst_41 [1] : vector<8x8xf32> to vector<8xf32>
    %129 = vector.shape_cast %128 : vector<8xf32> to vector<8x1xf32>
    %130 = vector.broadcast %129 : vector<8x1xf32> to vector<8x8xf32>
    %131 = arith.subf %127, %130 : vector<8x8xf32>
    %132 = math.exp %131 : vector<8x8xf32>
    %cst_42 = arith.constant dense<0.000000e+00> : vector<8xf32>
    %133 = vector.multi_reduction <add>, %132, %cst_42 [1] : vector<8x8xf32> to vector<8xf32>
    %134 = vector.shape_cast %133 : vector<8xf32> to vector<8x1xf32>
    %135 = tpu.reciprocal %134 {approx = true} : vector<8x1xf32> -> vector<8x1xf32>
    %136 = vector.broadcast %135 : vector<8x1xf32> to vector<8x8xf32>
    %137 = arith.mulf %132, %136 : vector<8x8xf32>
    %cst_43 = arith.constant dense<0.000000e+00> : vector<8x16xf32>
    %138 = tpu.matmul %137, %120, %cst_43 {dimension_numbers = #tpu.dot_dimension_numbers<[1], [0], [0], [1], [0, 0, 1, 1], [], []>} : vector<8x8xf32>, vector<8x16xf32>, vector<8x16xf32> -> vector<8x16xf32>
    %139 = tpu.concatenate %117, %138 in 1 : vector<8x16xf32>, vector<8x16xf32> -> vector<8x32xf32>
    %140 = tpu.concatenate %93, %139 in 0 : vector<8x32xf32>, vector<8x32xf32> -> vector<16x32xf32>
    %c0_44 = arith.constant 0 : index
    %c0_45 = arith.constant 0 : index
    %141 = vector.load %arg8[%c0_44, %c0_45] : memref<32x32xf32, #tpu.memory_space<vmem>>, vector<32x32xf32>
    %c0_46 = arith.constant 0 : index
    %c0_47 = arith.constant 0 : index
    %142 = vector.load %arg9[%c0_46, %c0_47] : memref<1x32xf32, #tpu.memory_space<vmem>>, vector<1x32xf32>
    %cst_48 = arith.constant dense<0.000000e+00> : vector<16x32xf32>
    %143 = tpu.matmul %140, %141, %cst_48 {dimension_numbers = #tpu.dot_dimension_numbers<[1], [0], [0], [1], [0, 0, 1, 1], [], []>} : vector<16x32xf32>, vector<32x32xf32>, vector<16x32xf32> -> vector<16x32xf32>
    %144 = vector.broadcast %142 : vector<1x32xf32> to vector<16x32xf32>
    %145 = arith.addf %143, %144 : vector<16x32xf32>
    %146 = arith.addf %14, %145 : vector<16x32xf32>
    %c0_49 = arith.constant 0 : index
    %c0_50 = arith.constant 0 : index
    %147 = vector.load %arg10[%c0_49, %c0_50] : memref<2x32xf32, #tpu.memory_space<vmem>>, vector<2x32xf32>
    %148 = vector.extract_strided_slice %147 {offsets = [0, 0], sizes = [1, 32], strides = [1, 1]} : vector<2x32xf32> to vector<1x32xf32>
    %149 = vector.extract_strided_slice %147 {offsets = [1, 0], sizes = [1, 32], strides = [1, 1]} : vector<2x32xf32> to vector<1x32xf32>
    %cst_51 = arith.constant dense<0.000000e+00> : vector<16xf32>
    %150 = vector.multi_reduction <add>, %146, %cst_51 [1] : vector<16x32xf32> to vector<16xf32>
    %151 = vector.shape_cast %150 : vector<16xf32> to vector<16x1xf32>
    %cst_52 = arith.constant 3.200000e+01 : f32
    %152 = vector.broadcast %cst_52 : f32 to vector<16x1xf32>
    %153 = arith.divf %151, %152 : vector<16x1xf32>
    %154 = vector.broadcast %153 : vector<16x1xf32> to vector<16x32xf32>
    %155 = arith.subf %146, %154 : vector<16x32xf32>
    %156 = arith.mulf %155, %155 : vector<16x32xf32>
    %cst_53 = arith.constant dense<0.000000e+00> : vector<16xf32>
    %157 = vector.multi_reduction <add>, %156, %cst_53 [1] : vector<16x32xf32> to vector<16xf32>
    %158 = vector.shape_cast %157 : vector<16xf32> to vector<16x1xf32>
    %cst_54 = arith.constant 3.200000e+01 : f32
    %159 = vector.broadcast %cst_54 : f32 to vector<16x1xf32>
    %160 = arith.divf %158, %159 : vector<16x1xf32>
    %161 = vector.broadcast %153 : vector<16x1xf32> to vector<16x32xf32>
    %162 = arith.subf %146, %161 : vector<16x32xf32>
    %cst_55 = arith.constant 9.99999997E-7 : f32
    %163 = vector.broadcast %cst_55 : f32 to vector<16x1xf32>
    %164 = arith.addf %160, %163 : vector<16x1xf32>
    %165 = math.rsqrt %164 : vector<16x1xf32>
    %166 = vector.broadcast %165 : vector<16x1xf32> to vector<16x32xf32>
    %167 = arith.mulf %162, %166 : vector<16x32xf32>
    %168 = vector.broadcast %148 : vector<1x32xf32> to vector<16x32xf32>
    %169 = arith.mulf %167, %168 : vector<16x32xf32>
    %170 = vector.broadcast %149 : vector<1x32xf32> to vector<16x32xf32>
    %171 = arith.addf %169, %170 : vector<16x32xf32>
    %c0_56 = arith.constant 0 : index
    %c0_57 = arith.constant 0 : index
    %172 = vector.load %arg11[%c0_56, %c0_57] : memref<32x64xf32, #tpu.memory_space<vmem>>, vector<32x64xf32>
    %c0_58 = arith.constant 0 : index
    %c0_59 = arith.constant 0 : index
    %173 = vector.load %arg12[%c0_58, %c0_59] : memref<1x64xf32, #tpu.memory_space<vmem>>, vector<1x64xf32>
    %cst_60 = arith.constant dense<0.000000e+00> : vector<16x64xf32>
    %174 = tpu.matmul %171, %172, %cst_60 {dimension_numbers = #tpu.dot_dimension_numbers<[1], [0], [0], [1], [0, 0, 1, 1], [], []>} : vector<16x32xf32>, vector<32x64xf32>, vector<16x64xf32> -> vector<16x64xf32>
    %175 = vector.broadcast %173 : vector<1x64xf32> to vector<16x64xf32>
    %176 = arith.addf %174, %175 : vector<16x64xf32>
    %cst_61 = arith.constant 0.000000e+00 : f32
    %177 = vector.broadcast %cst_61 : f32 to vector<16x64xf32>
    %178 = arith.maximumf %176, %177 : vector<16x64xf32>
    %c0_62 = arith.constant 0 : index
    %c0_63 = arith.constant 0 : index
    %179 = vector.load %arg13[%c0_62, %c0_63] : memref<64x32xf32, #tpu.memory_space<vmem>>, vector<64x32xf32>
    %c0_64 = arith.constant 0 : index
    %c0_65 = arith.constant 0 : index
    %180 = vector.load %arg14[%c0_64, %c0_65] : memref<1x32xf32, #tpu.memory_space<vmem>>, vector<1x32xf32>
    %cst_66 = arith.constant dense<0.000000e+00> : vector<16x32xf32>
    %181 = tpu.matmul %178, %179, %cst_66 {dimension_numbers = #tpu.dot_dimension_numbers<[1], [0], [0], [1], [0, 0, 1, 1], [], []>} : vector<16x64xf32>, vector<64x32xf32>, vector<16x32xf32> -> vector<16x32xf32>
    %182 = vector.broadcast %180 : vector<1x32xf32> to vector<16x32xf32>
    %183 = arith.addf %181, %182 : vector<16x32xf32>
    %184 = arith.addf %146, %183 : vector<16x32xf32>
    %c0_67 = arith.constant 0 : index
    %c0_68 = arith.constant 0 : index
    %185 = vector.load %arg15[%c0_67, %c0_68] : memref<2x32xf32, #tpu.memory_space<vmem>>, vector<2x32xf32>
    %186 = vector.extract_strided_slice %185 {offsets = [0, 0], sizes = [1, 32], strides = [1, 1]} : vector<2x32xf32> to vector<1x32xf32>
    %187 = vector.extract_strided_slice %185 {offsets = [1, 0], sizes = [1, 32], strides = [1, 1]} : vector<2x32xf32> to vector<1x32xf32>
    %cst_69 = arith.constant dense<0.000000e+00> : vector<16xf32>
    %188 = vector.multi_reduction <add>, %184, %cst_69 [1] : vector<16x32xf32> to vector<16xf32>
    %189 = vector.shape_cast %188 : vector<16xf32> to vector<16x1xf32>
    %cst_70 = arith.constant 3.200000e+01 : f32
    %190 = vector.broadcast %cst_70 : f32 to vector<16x1xf32>
    %191 = arith.divf %189, %190 : vector<16x1xf32>
    %192 = vector.broadcast %191 : vector<16x1xf32> to vector<16x32xf32>
    %193 = arith.subf %184, %192 : vector<16x32xf32>
    %194 = arith.mulf %193, %193 : vector<16x32xf32>
    %cst_71 = arith.constant dense<0.000000e+00> : vector<16xf32>
    %195 = vector.multi_reduction <add>, %194, %cst_71 [1] : vector<16x32xf32> to vector<16xf32>
    %196 = vector.shape_cast %195 : vector<16xf32> to vector<16x1xf32>
    %cst_72 = arith.constant 3.200000e+01 : f32
    %197 = vector.broadcast %cst_72 : f32 to vector<16x1xf32>
    %198 = arith.divf %196, %197 : vector<16x1xf32>
    %199 = vector.broadcast %191 : vector<16x1xf32> to vector<16x32xf32>
    %200 = arith.subf %184, %199 : vector<16x32xf32>
    %cst_73 = arith.constant 9.99999997E-7 : f32
    %201 = vector.broadcast %cst_73 : f32 to vector<16x1xf32>
    %202 = arith.addf %198, %201 : vector<16x1xf32>
    %203 = math.rsqrt %202 : vector<16x1xf32>
    %204 = vector.broadcast %203 : vector<16x1xf32> to vector<16x32xf32>
    %205 = arith.mulf %200, %204 : vector<16x32xf32>
    %206 = vector.broadcast %186 : vector<1x32xf32> to vector<16x32xf32>
    %207 = arith.mulf %205, %206 : vector<16x32xf32>
    %208 = vector.broadcast %187 : vector<1x32xf32> to vector<16x32xf32>
    %209 = arith.addf %207, %208 : vector<16x32xf32>
    %c0_74 = arith.constant 0 : index
    %c0_75 = arith.constant 0 : index
    %210 = vector.load %arg1[%c0_74, %c0_75] : memref<16x16xf32, #tpu.memory_space<vmem>>, vector<16x16xf32>
    %c0_76 = arith.constant 0 : index
    %c0_77 = arith.constant 0 : index
    %211 = vector.load %arg16[%c0_76, %c0_77] : memref<16x32xf32, #tpu.memory_space<vmem>>, vector<16x32xf32>
    %c0_78 = arith.constant 0 : index
    %c0_79 = arith.constant 0 : index
    %212 = vector.load %arg17[%c0_78, %c0_79] : memref<1x32xf32, #tpu.memory_space<vmem>>, vector<1x32xf32>
    %cst_80 = arith.constant dense<0.000000e+00> : vector<16x32xf32>
    %213 = tpu.matmul %210, %211, %cst_80 {dimension_numbers = #tpu.dot_dimension_numbers<[1], [0], [0], [1], [0, 0, 1, 1], [], []>} : vector<16x16xf32>, vector<16x32xf32>, vector<16x32xf32> -> vector<16x32xf32>
    %214 = vector.broadcast %212 : vector<1x32xf32> to vector<16x32xf32>
    %215 = arith.addf %213, %214 : vector<16x32xf32>
    %cst_81 = arith.constant 5.65685415 : f32
    %216 = vector.broadcast %cst_81 : f32 to vector<16x32xf32>
    %217 = arith.mulf %215, %216 : vector<16x32xf32>
    %c0_82 = arith.constant 0 : index
    %c0_83 = arith.constant 0 : index
    %218 = vector.load %arg2[%c0_82, %c0_83] : memref<16x32xf32, #tpu.memory_space<vmem>>, vector<16x32xf32>
    %219 = arith.addf %217, %218 : vector<16x32xf32>
    %c0_84 = arith.constant 0 : index
    %c0_85 = arith.constant 0 : index
    %220 = vector.load %arg18[%c0_84, %c0_85] : memref<2x32xf32, #tpu.memory_space<vmem>>, vector<2x32xf32>
    %221 = vector.extract_strided_slice %220 {offsets = [0, 0], sizes = [1, 32], strides = [1, 1]} : vector<2x32xf32> to vector<1x32xf32>
    %222 = vector.extract_strided_slice %220 {offsets = [1, 0], sizes = [1, 32], strides = [1, 1]} : vector<2x32xf32> to vector<1x32xf32>
    %cst_86 = arith.constant dense<0.000000e+00> : vector<16xf32>
    %223 = vector.multi_reduction <add>, %219, %cst_86 [1] : vector<16x32xf32> to vector<16xf32>
    %224 = vector.shape_cast %223 : vector<16xf32> to vector<16x1xf32>
    %cst_87 = arith.constant 3.200000e+01 : f32
    %225 = vector.broadcast %cst_87 : f32 to vector<16x1xf32>
    %226 = arith.divf %224, %225 : vector<16x1xf32>
    %227 = vector.broadcast %226 : vector<16x1xf32> to vector<16x32xf32>
    %228 = arith.subf %219, %227 : vector<16x32xf32>
    %229 = arith.mulf %228, %228 : vector<16x32xf32>
    %cst_88 = arith.constant dense<0.000000e+00> : vector<16xf32>
    %230 = vector.multi_reduction <add>, %229, %cst_88 [1] : vector<16x32xf32> to vector<16xf32>
    %231 = vector.shape_cast %230 : vector<16xf32> to vector<16x1xf32>
    %cst_89 = arith.constant 3.200000e+01 : f32
    %232 = vector.broadcast %cst_89 : f32 to vector<16x1xf32>
    %233 = arith.divf %231, %232 : vector<16x1xf32>
    %234 = vector.broadcast %226 : vector<16x1xf32> to vector<16x32xf32>
    %235 = arith.subf %219, %234 : vector<16x32xf32>
    %cst_90 = arith.constant 9.99999997E-7 : f32
    %236 = vector.broadcast %cst_90 : f32 to vector<16x1xf32>
    %237 = arith.addf %233, %236 : vector<16x1xf32>
    %238 = math.rsqrt %237 : vector<16x1xf32>
    %239 = vector.broadcast %238 : vector<16x1xf32> to vector<16x32xf32>
    %240 = arith.mulf %235, %239 : vector<16x32xf32>
    %241 = vector.broadcast %221 : vector<1x32xf32> to vector<16x32xf32>
    %242 = arith.mulf %240, %241 : vector<16x32xf32>
    %243 = vector.broadcast %222 : vector<1x32xf32> to vector<16x32xf32>
    %244 = arith.addf %242, %243 : vector<16x32xf32>
    %c0_91 = arith.constant 0 : index
    %c0_92 = arith.constant 0 : index
    %245 = vector.load %arg19[%c0_91, %c0_92] : memref<32x96xf32, #tpu.memory_space<vmem>>, vector<32x96xf32>
    %c0_93 = arith.constant 0 : index
    %c0_94 = arith.constant 0 : index
    %246 = vector.load %arg20[%c0_93, %c0_94] : memref<1x96xf32, #tpu.memory_space<vmem>>, vector<1x96xf32>
    %cst_95 = arith.constant dense<0.000000e+00> : vector<16x96xf32>
    %247 = tpu.matmul %244, %245, %cst_95 {dimension_numbers = #tpu.dot_dimension_numbers<[1], [0], [0], [1], [0, 0, 1, 1], [], []>} : vector<16x32xf32>, vector<32x96xf32>, vector<16x96xf32> -> vector<16x96xf32>
    %248 = vector.broadcast %246 : vector<1x96xf32> to vector<16x96xf32>
    %249 = arith.addf %247, %248 : vector<16x96xf32>
    %250 = vector.extract_strided_slice %249 {offsets = [0, 0], sizes = [16, 32], strides = [1, 1]} : vector<16x96xf32> to vector<16x32xf32>
    %251 = vector.extract_strided_slice %249 {offsets = [0, 32], sizes = [16, 32], strides = [1, 1]} : vector<16x96xf32> to vector<16x32xf32>
    %252 = vector.extract_strided_slice %249 {offsets = [0, 64], sizes = [16, 32], strides = [1, 1]} : vector<16x96xf32> to vector<16x32xf32>
    %253 = vector.extract_strided_slice %250 {offsets = [0, 0], sizes = [8, 32], strides = [1, 1]} : vector<16x32xf32> to vector<8x32xf32>
    %254 = vector.extract_strided_slice %251 {offsets = [0, 0], sizes = [8, 32], strides = [1, 1]} : vector<16x32xf32> to vector<8x32xf32>
    %255 = vector.extract_strided_slice %252 {offsets = [0, 0], sizes = [8, 32], strides = [1, 1]} : vector<16x32xf32> to vector<8x32xf32>
    %256 = vector.extract_strided_slice %253 {offsets = [0, 0], sizes = [8, 16], strides = [1, 1]} : vector<8x32xf32> to vector<8x16xf32>
    %257 = vector.extract_strided_slice %254 {offsets = [0, 0], sizes = [8, 16], strides = [1, 1]} : vector<8x32xf32> to vector<8x16xf32>
    %258 = vector.extract_strided_slice %255 {offsets = [0, 0], sizes = [8, 16], strides = [1, 1]} : vector<8x32xf32> to vector<8x16xf32>
    %cst_96 = arith.constant dense<0.000000e+00> : vector<8x8xf32>
    %259 = tpu.matmul %256, %257, %cst_96 {dimension_numbers = #tpu.dot_dimension_numbers<[1], [1], [0], [0], [0, 0, 1, 0], [], []>} : vector<8x16xf32>, vector<8x16xf32>, vector<8x8xf32> -> vector<8x8xf32>
    %cst_97 = arith.constant 2.500000e-01 : f32
    %260 = vector.broadcast %cst_97 : f32 to vector<8x8xf32>
    %261 = arith.mulf %259, %260 : vector<8x8xf32>
    %cst_98 = arith.constant 0.000000e+00 : f32
    %262 = vector.broadcast %cst_98 : f32 to vector<8x8xf32>
    %263 = arith.cmpf ogt, %1, %262 : vector<8x8xf32>
    %cst_99 = arith.constant -1.000000e+09 : f32
    %264 = vector.broadcast %cst_99 : f32 to vector<8x8xf32>
    %265 = arith.select %263, %261, %264 : vector<8x8xi1>, vector<8x8xf32>
    %cst_100 = arith.constant dense<0xFF800000> : vector<8xf32>
    %266 = vector.multi_reduction <maximumf>, %265, %cst_100 [1] : vector<8x8xf32> to vector<8xf32>
    %267 = vector.shape_cast %266 : vector<8xf32> to vector<8x1xf32>
    %268 = vector.broadcast %267 : vector<8x1xf32> to vector<8x8xf32>
    %269 = arith.subf %265, %268 : vector<8x8xf32>
    %270 = math.exp %269 : vector<8x8xf32>
    %cst_101 = arith.constant dense<0.000000e+00> : vector<8xf32>
    %271 = vector.multi_reduction <add>, %270, %cst_101 [1] : vector<8x8xf32> to vector<8xf32>
    %272 = vector.shape_cast %271 : vector<8xf32> to vector<8x1xf32>
    %273 = tpu.reciprocal %272 {approx = true} : vector<8x1xf32> -> vector<8x1xf32>
    %274 = vector.broadcast %273 : vector<8x1xf32> to vector<8x8xf32>
    %275 = arith.mulf %270, %274 : vector<8x8xf32>
    %cst_102 = arith.constant dense<0.000000e+00> : vector<8x16xf32>
    %276 = tpu.matmul %275, %258, %cst_102 {dimension_numbers = #tpu.dot_dimension_numbers<[1], [0], [0], [1], [0, 0, 1, 1], [], []>} : vector<8x8xf32>, vector<8x16xf32>, vector<8x16xf32> -> vector<8x16xf32>
    %277 = vector.extract_strided_slice %253 {offsets = [0, 16], sizes = [8, 16], strides = [1, 1]} : vector<8x32xf32> to vector<8x16xf32>
    %278 = vector.extract_strided_slice %254 {offsets = [0, 16], sizes = [8, 16], strides = [1, 1]} : vector<8x32xf32> to vector<8x16xf32>
    %279 = vector.extract_strided_slice %255 {offsets = [0, 16], sizes = [8, 16], strides = [1, 1]} : vector<8x32xf32> to vector<8x16xf32>
    %cst_103 = arith.constant dense<0.000000e+00> : vector<8x8xf32>
    %280 = tpu.matmul %277, %278, %cst_103 {dimension_numbers = #tpu.dot_dimension_numbers<[1], [1], [0], [0], [0, 0, 1, 0], [], []>} : vector<8x16xf32>, vector<8x16xf32>, vector<8x8xf32> -> vector<8x8xf32>
    %cst_104 = arith.constant 2.500000e-01 : f32
    %281 = vector.broadcast %cst_104 : f32 to vector<8x8xf32>
    %282 = arith.mulf %280, %281 : vector<8x8xf32>
    %cst_105 = arith.constant 0.000000e+00 : f32
    %283 = vector.broadcast %cst_105 : f32 to vector<8x8xf32>
    %284 = arith.cmpf ogt, %1, %283 : vector<8x8xf32>
    %cst_106 = arith.constant -1.000000e+09 : f32
    %285 = vector.broadcast %cst_106 : f32 to vector<8x8xf32>
    %286 = arith.select %284, %282, %285 : vector<8x8xi1>, vector<8x8xf32>
    %cst_107 = arith.constant dense<0xFF800000> : vector<8xf32>
    %287 = vector.multi_reduction <maximumf>, %286, %cst_107 [1] : vector<8x8xf32> to vector<8xf32>
    %288 = vector.shape_cast %287 : vector<8xf32> to vector<8x1xf32>
    %289 = vector.broadcast %288 : vector<8x1xf32> to vector<8x8xf32>
    %290 = arith.subf %286, %289 : vector<8x8xf32>
    %291 = math.exp %290 : vector<8x8xf32>
    %cst_108 = arith.constant dense<0.000000e+00> : vector<8xf32>
    %292 = vector.multi_reduction <add>, %291, %cst_108 [1] : vector<8x8xf32> to vector<8xf32>
    %293 = vector.shape_cast %292 : vector<8xf32> to vector<8x1xf32>
    %294 = tpu.reciprocal %293 {approx = true} : vector<8x1xf32> -> vector<8x1xf32>
    %295 = vector.broadcast %294 : vector<8x1xf32> to vector<8x8xf32>
    %296 = arith.mulf %291, %295 : vector<8x8xf32>
    %cst_109 = arith.constant dense<0.000000e+00> : vector<8x16xf32>
    %297 = tpu.matmul %296, %279, %cst_109 {dimension_numbers = #tpu.dot_dimension_numbers<[1], [0], [0], [1], [0, 0, 1, 1], [], []>} : vector<8x8xf32>, vector<8x16xf32>, vector<8x16xf32> -> vector<8x16xf32>
    %298 = tpu.concatenate %276, %297 in 1 : vector<8x16xf32>, vector<8x16xf32> -> vector<8x32xf32>
    %299 = vector.extract_strided_slice %250 {offsets = [8, 0], sizes = [8, 32], strides = [1, 1]} : vector<16x32xf32> to vector<8x32xf32>
    %300 = vector.extract_strided_slice %251 {offsets = [8, 0], sizes = [8, 32], strides = [1, 1]} : vector<16x32xf32> to vector<8x32xf32>
    %301 = vector.extract_strided_slice %252 {offsets = [8, 0], sizes = [8, 32], strides = [1, 1]} : vector<16x32xf32> to vector<8x32xf32>
    %302 = vector.extract_strided_slice %299 {offsets = [0, 0], sizes = [8, 16], strides = [1, 1]} : vector<8x32xf32> to vector<8x16xf32>
    %303 = vector.extract_strided_slice %300 {offsets = [0, 0], sizes = [8, 16], strides = [1, 1]} : vector<8x32xf32> to vector<8x16xf32>
    %304 = vector.extract_strided_slice %301 {offsets = [0, 0], sizes = [8, 16], strides = [1, 1]} : vector<8x32xf32> to vector<8x16xf32>
    %cst_110 = arith.constant dense<0.000000e+00> : vector<8x8xf32>
    %305 = tpu.matmul %302, %303, %cst_110 {dimension_numbers = #tpu.dot_dimension_numbers<[1], [1], [0], [0], [0, 0, 1, 0], [], []>} : vector<8x16xf32>, vector<8x16xf32>, vector<8x8xf32> -> vector<8x8xf32>
    %cst_111 = arith.constant 2.500000e-01 : f32
    %306 = vector.broadcast %cst_111 : f32 to vector<8x8xf32>
    %307 = arith.mulf %305, %306 : vector<8x8xf32>
    %cst_112 = arith.constant 0.000000e+00 : f32
    %308 = vector.broadcast %cst_112 : f32 to vector<8x8xf32>
    %309 = arith.cmpf ogt, %1, %308 : vector<8x8xf32>
    %cst_113 = arith.constant -1.000000e+09 : f32
    %310 = vector.broadcast %cst_113 : f32 to vector<8x8xf32>
    %311 = arith.select %309, %307, %310 : vector<8x8xi1>, vector<8x8xf32>
    %cst_114 = arith.constant dense<0xFF800000> : vector<8xf32>
    %312 = vector.multi_reduction <maximumf>, %311, %cst_114 [1] : vector<8x8xf32> to vector<8xf32>
    %313 = vector.shape_cast %312 : vector<8xf32> to vector<8x1xf32>
    %314 = vector.broadcast %313 : vector<8x1xf32> to vector<8x8xf32>
    %315 = arith.subf %311, %314 : vector<8x8xf32>
    %316 = math.exp %315 : vector<8x8xf32>
    %cst_115 = arith.constant dense<0.000000e+00> : vector<8xf32>
    %317 = vector.multi_reduction <add>, %316, %cst_115 [1] : vector<8x8xf32> to vector<8xf32>
    %318 = vector.shape_cast %317 : vector<8xf32> to vector<8x1xf32>
    %319 = tpu.reciprocal %318 {approx = true} : vector<8x1xf32> -> vector<8x1xf32>
    %320 = vector.broadcast %319 : vector<8x1xf32> to vector<8x8xf32>
    %321 = arith.mulf %316, %320 : vector<8x8xf32>
    %cst_116 = arith.constant dense<0.000000e+00> : vector<8x16xf32>
    %322 = tpu.matmul %321, %304, %cst_116 {dimension_numbers = #tpu.dot_dimension_numbers<[1], [0], [0], [1], [0, 0, 1, 1], [], []>} : vector<8x8xf32>, vector<8x16xf32>, vector<8x16xf32> -> vector<8x16xf32>
    %323 = vector.extract_strided_slice %299 {offsets = [0, 16], sizes = [8, 16], strides = [1, 1]} : vector<8x32xf32> to vector<8x16xf32>
    %324 = vector.extract_strided_slice %300 {offsets = [0, 16], sizes = [8, 16], strides = [1, 1]} : vector<8x32xf32> to vector<8x16xf32>
    %325 = vector.extract_strided_slice %301 {offsets = [0, 16], sizes = [8, 16], strides = [1, 1]} : vector<8x32xf32> to vector<8x16xf32>
    %cst_117 = arith.constant dense<0.000000e+00> : vector<8x8xf32>
    %326 = tpu.matmul %323, %324, %cst_117 {dimension_numbers = #tpu.dot_dimension_numbers<[1], [1], [0], [0], [0, 0, 1, 0], [], []>} : vector<8x16xf32>, vector<8x16xf32>, vector<8x8xf32> -> vector<8x8xf32>
    %cst_118 = arith.constant 2.500000e-01 : f32
    %327 = vector.broadcast %cst_118 : f32 to vector<8x8xf32>
    %328 = arith.mulf %326, %327 : vector<8x8xf32>
    %cst_119 = arith.constant 0.000000e+00 : f32
    %329 = vector.broadcast %cst_119 : f32 to vector<8x8xf32>
    %330 = arith.cmpf ogt, %1, %329 : vector<8x8xf32>
    %cst_120 = arith.constant -1.000000e+09 : f32
    %331 = vector.broadcast %cst_120 : f32 to vector<8x8xf32>
    %332 = arith.select %330, %328, %331 : vector<8x8xi1>, vector<8x8xf32>
    %cst_121 = arith.constant dense<0xFF800000> : vector<8xf32>
    %333 = vector.multi_reduction <maximumf>, %332, %cst_121 [1] : vector<8x8xf32> to vector<8xf32>
    %334 = vector.shape_cast %333 : vector<8xf32> to vector<8x1xf32>
    %335 = vector.broadcast %334 : vector<8x1xf32> to vector<8x8xf32>
    %336 = arith.subf %332, %335 : vector<8x8xf32>
    %337 = math.exp %336 : vector<8x8xf32>
    %cst_122 = arith.constant dense<0.000000e+00> : vector<8xf32>
    %338 = vector.multi_reduction <add>, %337, %cst_122 [1] : vector<8x8xf32> to vector<8xf32>
    %339 = vector.shape_cast %338 : vector<8xf32> to vector<8x1xf32>
    %340 = tpu.reciprocal %339 {approx = true} : vector<8x1xf32> -> vector<8x1xf32>
    %341 = vector.broadcast %340 : vector<8x1xf32> to vector<8x8xf32>
    %342 = arith.mulf %337, %341 : vector<8x8xf32>
    %cst_123 = arith.constant dense<0.000000e+00> : vector<8x16xf32>
    %343 = tpu.matmul %342, %325, %cst_123 {dimension_numbers = #tpu.dot_dimension_numbers<[1], [0], [0], [1], [0, 0, 1, 1], [], []>} : vector<8x8xf32>, vector<8x16xf32>, vector<8x16xf32> -> vector<8x16xf32>
    %344 = tpu.concatenate %322, %343 in 1 : vector<8x16xf32>, vector<8x16xf32> -> vector<8x32xf32>
    %345 = tpu.concatenate %298, %344 in 0 : vector<8x32xf32>, vector<8x32xf32> -> vector<16x32xf32>
    %c0_124 = arith.constant 0 : index
    %c0_125 = arith.constant 0 : index
    %346 = vector.load %arg21[%c0_124, %c0_125] : memref<32x32xf32, #tpu.memory_space<vmem>>, vector<32x32xf32>
    %c0_126 = arith.constant 0 : index
    %c0_127 = arith.constant 0 : index
    %347 = vector.load %arg22[%c0_126, %c0_127] : memref<1x32xf32, #tpu.memory_space<vmem>>, vector<1x32xf32>
    %cst_128 = arith.constant dense<0.000000e+00> : vector<16x32xf32>
    %348 = tpu.matmul %345, %346, %cst_128 {dimension_numbers = #tpu.dot_dimension_numbers<[1], [0], [0], [1], [0, 0, 1, 1], [], []>} : vector<16x32xf32>, vector<32x32xf32>, vector<16x32xf32> -> vector<16x32xf32>
    %349 = vector.broadcast %347 : vector<1x32xf32> to vector<16x32xf32>
    %350 = arith.addf %348, %349 : vector<16x32xf32>
    %351 = arith.addf %219, %350 : vector<16x32xf32>
    %c0_129 = arith.constant 0 : index
    %c0_130 = arith.constant 0 : index
    %352 = vector.load %arg23[%c0_129, %c0_130] : memref<2x32xf32, #tpu.memory_space<vmem>>, vector<2x32xf32>
    %353 = vector.extract_strided_slice %352 {offsets = [0, 0], sizes = [1, 32], strides = [1, 1]} : vector<2x32xf32> to vector<1x32xf32>
    %354 = vector.extract_strided_slice %352 {offsets = [1, 0], sizes = [1, 32], strides = [1, 1]} : vector<2x32xf32> to vector<1x32xf32>
    %cst_131 = arith.constant dense<0.000000e+00> : vector<16xf32>
    %355 = vector.multi_reduction <add>, %351, %cst_131 [1] : vector<16x32xf32> to vector<16xf32>
    %356 = vector.shape_cast %355 : vector<16xf32> to vector<16x1xf32>
    %cst_132 = arith.constant 3.200000e+01 : f32
    %357 = vector.broadcast %cst_132 : f32 to vector<16x1xf32>
    %358 = arith.divf %356, %357 : vector<16x1xf32>
    %359 = vector.broadcast %358 : vector<16x1xf32> to vector<16x32xf32>
    %360 = arith.subf %351, %359 : vector<16x32xf32>
    %361 = arith.mulf %360, %360 : vector<16x32xf32>
    %cst_133 = arith.constant dense<0.000000e+00> : vector<16xf32>
    %362 = vector.multi_reduction <add>, %361, %cst_133 [1] : vector<16x32xf32> to vector<16xf32>
    %363 = vector.shape_cast %362 : vector<16xf32> to vector<16x1xf32>
    %cst_134 = arith.constant 3.200000e+01 : f32
    %364 = vector.broadcast %cst_134 : f32 to vector<16x1xf32>
    %365 = arith.divf %363, %364 : vector<16x1xf32>
    %366 = vector.broadcast %358 : vector<16x1xf32> to vector<16x32xf32>
    %367 = arith.subf %351, %366 : vector<16x32xf32>
    %cst_135 = arith.constant 9.99999997E-7 : f32
    %368 = vector.broadcast %cst_135 : f32 to vector<16x1xf32>
    %369 = arith.addf %365, %368 : vector<16x1xf32>
    %370 = math.rsqrt %369 : vector<16x1xf32>
    %371 = vector.broadcast %370 : vector<16x1xf32> to vector<16x32xf32>
    %372 = arith.mulf %367, %371 : vector<16x32xf32>
    %373 = vector.broadcast %353 : vector<1x32xf32> to vector<16x32xf32>
    %374 = arith.mulf %372, %373 : vector<16x32xf32>
    %375 = vector.broadcast %354 : vector<1x32xf32> to vector<16x32xf32>
    %376 = arith.addf %374, %375 : vector<16x32xf32>
    %c0_136 = arith.constant 0 : index
    %c0_137 = arith.constant 0 : index
    %377 = vector.load %arg24[%c0_136, %c0_137] : memref<32x96xf32, #tpu.memory_space<vmem>>, vector<32x96xf32>
    %c0_138 = arith.constant 0 : index
    %c0_139 = arith.constant 0 : index
    %378 = vector.load %arg25[%c0_138, %c0_139] : memref<1x96xf32, #tpu.memory_space<vmem>>, vector<1x96xf32>
    %cst_140 = arith.constant dense<0.000000e+00> : vector<16x96xf32>
    %379 = tpu.matmul %376, %377, %cst_140 {dimension_numbers = #tpu.dot_dimension_numbers<[1], [0], [0], [1], [0, 0, 1, 1], [], []>} : vector<16x32xf32>, vector<32x96xf32>, vector<16x96xf32> -> vector<16x96xf32>
    %380 = vector.broadcast %378 : vector<1x96xf32> to vector<16x96xf32>
    %381 = arith.addf %379, %380 : vector<16x96xf32>
    %c0_141 = arith.constant 0 : index
    %c0_142 = arith.constant 0 : index
    %382 = vector.load %arg24[%c0_141, %c0_142] : memref<32x96xf32, #tpu.memory_space<vmem>>, vector<32x96xf32>
    %c0_143 = arith.constant 0 : index
    %c0_144 = arith.constant 0 : index
    %383 = vector.load %arg25[%c0_143, %c0_144] : memref<1x96xf32, #tpu.memory_space<vmem>>, vector<1x96xf32>
    %cst_145 = arith.constant dense<0.000000e+00> : vector<16x96xf32>
    %384 = tpu.matmul %209, %382, %cst_145 {dimension_numbers = #tpu.dot_dimension_numbers<[1], [0], [0], [1], [0, 0, 1, 1], [], []>} : vector<16x32xf32>, vector<32x96xf32>, vector<16x96xf32> -> vector<16x96xf32>
    %385 = vector.broadcast %383 : vector<1x96xf32> to vector<16x96xf32>
    %386 = arith.addf %384, %385 : vector<16x96xf32>
    %387 = vector.extract_strided_slice %381 {offsets = [0, 0], sizes = [16, 32], strides = [1, 1]} : vector<16x96xf32> to vector<16x32xf32>
    %388 = vector.extract_strided_slice %386 {offsets = [0, 32], sizes = [16, 32], strides = [1, 1]} : vector<16x96xf32> to vector<16x32xf32>
    %389 = vector.extract_strided_slice %386 {offsets = [0, 64], sizes = [16, 32], strides = [1, 1]} : vector<16x96xf32> to vector<16x32xf32>
    %390 = vector.extract_strided_slice %387 {offsets = [0, 0], sizes = [8, 32], strides = [1, 1]} : vector<16x32xf32> to vector<8x32xf32>
    %391 = vector.extract_strided_slice %388 {offsets = [0, 0], sizes = [8, 32], strides = [1, 1]} : vector<16x32xf32> to vector<8x32xf32>
    %392 = vector.extract_strided_slice %389 {offsets = [0, 0], sizes = [8, 32], strides = [1, 1]} : vector<16x32xf32> to vector<8x32xf32>
    %393 = vector.extract_strided_slice %390 {offsets = [0, 0], sizes = [8, 16], strides = [1, 1]} : vector<8x32xf32> to vector<8x16xf32>
    %394 = vector.extract_strided_slice %391 {offsets = [0, 0], sizes = [8, 16], strides = [1, 1]} : vector<8x32xf32> to vector<8x16xf32>
    %395 = vector.extract_strided_slice %392 {offsets = [0, 0], sizes = [8, 16], strides = [1, 1]} : vector<8x32xf32> to vector<8x16xf32>
    %cst_146 = arith.constant dense<0.000000e+00> : vector<8x8xf32>
    %396 = tpu.matmul %393, %394, %cst_146 {dimension_numbers = #tpu.dot_dimension_numbers<[1], [1], [0], [0], [0, 0, 1, 0], [], []>} : vector<8x16xf32>, vector<8x16xf32>, vector<8x8xf32> -> vector<8x8xf32>
    %cst_147 = arith.constant 2.500000e-01 : f32
    %397 = vector.broadcast %cst_147 : f32 to vector<8x8xf32>
    %398 = arith.mulf %396, %397 : vector<8x8xf32>
    %cst_148 = arith.constant 0.000000e+00 : f32
    %399 = vector.broadcast %cst_148 : f32 to vector<8x8xf32>
    %400 = arith.cmpf ogt, %10, %399 : vector<8x8xf32>
    %cst_149 = arith.constant -1.000000e+09 : f32
    %401 = vector.broadcast %cst_149 : f32 to vector<8x8xf32>
    %402 = arith.select %400, %398, %401 : vector<8x8xi1>, vector<8x8xf32>
    %cst_150 = arith.constant dense<0xFF800000> : vector<8xf32>
    %403 = vector.multi_reduction <maximumf>, %402, %cst_150 [1] : vector<8x8xf32> to vector<8xf32>
    %404 = vector.shape_cast %403 : vector<8xf32> to vector<8x1xf32>
    %405 = vector.broadcast %404 : vector<8x1xf32> to vector<8x8xf32>
    %406 = arith.subf %402, %405 : vector<8x8xf32>
    %407 = math.exp %406 : vector<8x8xf32>
    %cst_151 = arith.constant dense<0.000000e+00> : vector<8xf32>
    %408 = vector.multi_reduction <add>, %407, %cst_151 [1] : vector<8x8xf32> to vector<8xf32>
    %409 = vector.shape_cast %408 : vector<8xf32> to vector<8x1xf32>
    %410 = tpu.reciprocal %409 {approx = true} : vector<8x1xf32> -> vector<8x1xf32>
    %411 = vector.broadcast %410 : vector<8x1xf32> to vector<8x8xf32>
    %412 = arith.mulf %407, %411 : vector<8x8xf32>
    %cst_152 = arith.constant dense<0.000000e+00> : vector<8x16xf32>
    %413 = tpu.matmul %412, %395, %cst_152 {dimension_numbers = #tpu.dot_dimension_numbers<[1], [0], [0], [1], [0, 0, 1, 1], [], []>} : vector<8x8xf32>, vector<8x16xf32>, vector<8x16xf32> -> vector<8x16xf32>
    %414 = vector.extract_strided_slice %390 {offsets = [0, 16], sizes = [8, 16], strides = [1, 1]} : vector<8x32xf32> to vector<8x16xf32>
    %415 = vector.extract_strided_slice %391 {offsets = [0, 16], sizes = [8, 16], strides = [1, 1]} : vector<8x32xf32> to vector<8x16xf32>
    %416 = vector.extract_strided_slice %392 {offsets = [0, 16], sizes = [8, 16], strides = [1, 1]} : vector<8x32xf32> to vector<8x16xf32>
    %cst_153 = arith.constant dense<0.000000e+00> : vector<8x8xf32>
    %417 = tpu.matmul %414, %415, %cst_153 {dimension_numbers = #tpu.dot_dimension_numbers<[1], [1], [0], [0], [0, 0, 1, 0], [], []>} : vector<8x16xf32>, vector<8x16xf32>, vector<8x8xf32> -> vector<8x8xf32>
    %cst_154 = arith.constant 2.500000e-01 : f32
    %418 = vector.broadcast %cst_154 : f32 to vector<8x8xf32>
    %419 = arith.mulf %417, %418 : vector<8x8xf32>
    %cst_155 = arith.constant 0.000000e+00 : f32
    %420 = vector.broadcast %cst_155 : f32 to vector<8x8xf32>
    %421 = arith.cmpf ogt, %10, %420 : vector<8x8xf32>
    %cst_156 = arith.constant -1.000000e+09 : f32
    %422 = vector.broadcast %cst_156 : f32 to vector<8x8xf32>
    %423 = arith.select %421, %419, %422 : vector<8x8xi1>, vector<8x8xf32>
    %cst_157 = arith.constant dense<0xFF800000> : vector<8xf32>
    %424 = vector.multi_reduction <maximumf>, %423, %cst_157 [1] : vector<8x8xf32> to vector<8xf32>
    %425 = vector.shape_cast %424 : vector<8xf32> to vector<8x1xf32>
    %426 = vector.broadcast %425 : vector<8x1xf32> to vector<8x8xf32>
    %427 = arith.subf %423, %426 : vector<8x8xf32>
    %428 = math.exp %427 : vector<8x8xf32>
    %cst_158 = arith.constant dense<0.000000e+00> : vector<8xf32>
    %429 = vector.multi_reduction <add>, %428, %cst_158 [1] : vector<8x8xf32> to vector<8xf32>
    %430 = vector.shape_cast %429 : vector<8xf32> to vector<8x1xf32>
    %431 = tpu.reciprocal %430 {approx = true} : vector<8x1xf32> -> vector<8x1xf32>
    %432 = vector.broadcast %431 : vector<8x1xf32> to vector<8x8xf32>
    %433 = arith.mulf %428, %432 : vector<8x8xf32>
    %cst_159 = arith.constant dense<0.000000e+00> : vector<8x16xf32>
    %434 = tpu.matmul %433, %416, %cst_159 {dimension_numbers = #tpu.dot_dimension_numbers<[1], [0], [0], [1], [0, 0, 1, 1], [], []>} : vector<8x8xf32>, vector<8x16xf32>, vector<8x16xf32> -> vector<8x16xf32>
    %435 = tpu.concatenate %413, %434 in 1 : vector<8x16xf32>, vector<8x16xf32> -> vector<8x32xf32>
    %436 = vector.extract_strided_slice %387 {offsets = [8, 0], sizes = [8, 32], strides = [1, 1]} : vector<16x32xf32> to vector<8x32xf32>
    %437 = vector.extract_strided_slice %388 {offsets = [8, 0], sizes = [8, 32], strides = [1, 1]} : vector<16x32xf32> to vector<8x32xf32>
    %438 = vector.extract_strided_slice %389 {offsets = [8, 0], sizes = [8, 32], strides = [1, 1]} : vector<16x32xf32> to vector<8x32xf32>
    %439 = vector.extract_strided_slice %436 {offsets = [0, 0], sizes = [8, 16], strides = [1, 1]} : vector<8x32xf32> to vector<8x16xf32>
    %440 = vector.extract_strided_slice %437 {offsets = [0, 0], sizes = [8, 16], strides = [1, 1]} : vector<8x32xf32> to vector<8x16xf32>
    %441 = vector.extract_strided_slice %438 {offsets = [0, 0], sizes = [8, 16], strides = [1, 1]} : vector<8x32xf32> to vector<8x16xf32>
    %cst_160 = arith.constant dense<0.000000e+00> : vector<8x8xf32>
    %442 = tpu.matmul %439, %440, %cst_160 {dimension_numbers = #tpu.dot_dimension_numbers<[1], [1], [0], [0], [0, 0, 1, 0], [], []>} : vector<8x16xf32>, vector<8x16xf32>, vector<8x8xf32> -> vector<8x8xf32>
    %cst_161 = arith.constant 2.500000e-01 : f32
    %443 = vector.broadcast %cst_161 : f32 to vector<8x8xf32>
    %444 = arith.mulf %442, %443 : vector<8x8xf32>
    %cst_162 = arith.constant 0.000000e+00 : f32
    %445 = vector.broadcast %cst_162 : f32 to vector<8x8xf32>
    %446 = arith.cmpf ogt, %13, %445 : vector<8x8xf32>
    %cst_163 = arith.constant -1.000000e+09 : f32
    %447 = vector.broadcast %cst_163 : f32 to vector<8x8xf32>
    %448 = arith.select %446, %444, %447 : vector<8x8xi1>, vector<8x8xf32>
    %cst_164 = arith.constant dense<0xFF800000> : vector<8xf32>
    %449 = vector.multi_reduction <maximumf>, %448, %cst_164 [1] : vector<8x8xf32> to vector<8xf32>
    %450 = vector.shape_cast %449 : vector<8xf32> to vector<8x1xf32>
    %451 = vector.broadcast %450 : vector<8x1xf32> to vector<8x8xf32>
    %452 = arith.subf %448, %451 : vector<8x8xf32>
    %453 = math.exp %452 : vector<8x8xf32>
    %cst_165 = arith.constant dense<0.000000e+00> : vector<8xf32>
    %454 = vector.multi_reduction <add>, %453, %cst_165 [1] : vector<8x8xf32> to vector<8xf32>
    %455 = vector.shape_cast %454 : vector<8xf32> to vector<8x1xf32>
    %456 = tpu.reciprocal %455 {approx = true} : vector<8x1xf32> -> vector<8x1xf32>
    %457 = vector.broadcast %456 : vector<8x1xf32> to vector<8x8xf32>
    %458 = arith.mulf %453, %457 : vector<8x8xf32>
    %cst_166 = arith.constant dense<0.000000e+00> : vector<8x16xf32>
    %459 = tpu.matmul %458, %441, %cst_166 {dimension_numbers = #tpu.dot_dimension_numbers<[1], [0], [0], [1], [0, 0, 1, 1], [], []>} : vector<8x8xf32>, vector<8x16xf32>, vector<8x16xf32> -> vector<8x16xf32>
    %460 = vector.extract_strided_slice %436 {offsets = [0, 16], sizes = [8, 16], strides = [1, 1]} : vector<8x32xf32> to vector<8x16xf32>
    %461 = vector.extract_strided_slice %437 {offsets = [0, 16], sizes = [8, 16], strides = [1, 1]} : vector<8x32xf32> to vector<8x16xf32>
    %462 = vector.extract_strided_slice %438 {offsets = [0, 16], sizes = [8, 16], strides = [1, 1]} : vector<8x32xf32> to vector<8x16xf32>
    %cst_167 = arith.constant dense<0.000000e+00> : vector<8x8xf32>
    %463 = tpu.matmul %460, %461, %cst_167 {dimension_numbers = #tpu.dot_dimension_numbers<[1], [1], [0], [0], [0, 0, 1, 0], [], []>} : vector<8x16xf32>, vector<8x16xf32>, vector<8x8xf32> -> vector<8x8xf32>
    %cst_168 = arith.constant 2.500000e-01 : f32
    %464 = vector.broadcast %cst_168 : f32 to vector<8x8xf32>
    %465 = arith.mulf %463, %464 : vector<8x8xf32>
    %cst_169 = arith.constant 0.000000e+00 : f32
    %466 = vector.broadcast %cst_169 : f32 to vector<8x8xf32>
    %467 = arith.cmpf ogt, %13, %466 : vector<8x8xf32>
    %cst_170 = arith.constant -1.000000e+09 : f32
    %468 = vector.broadcast %cst_170 : f32 to vector<8x8xf32>
    %469 = arith.select %467, %465, %468 : vector<8x8xi1>, vector<8x8xf32>
    %cst_171 = arith.constant dense<0xFF800000> : vector<8xf32>
    %470 = vector.multi_reduction <maximumf>, %469, %cst_171 [1] : vector<8x8xf32> to vector<8xf32>
    %471 = vector.shape_cast %470 : vector<8xf32> to vector<8x1xf32>
    %472 = vector.broadcast %471 : vector<8x1xf32> to vector<8x8xf32>
    %473 = arith.subf %469, %472 : vector<8x8xf32>
    %474 = math.exp %473 : vector<8x8xf32>
    %cst_172 = arith.constant dense<0.000000e+00> : vector<8xf32>
    %475 = vector.multi_reduction <add>, %474, %cst_172 [1] : vector<8x8xf32> to vector<8xf32>
    %476 = vector.shape_cast %475 : vector<8xf32> to vector<8x1xf32>
    %477 = tpu.reciprocal %476 {approx = true} : vector<8x1xf32> -> vector<8x1xf32>
    %478 = vector.broadcast %477 : vector<8x1xf32> to vector<8x8xf32>
    %479 = arith.mulf %474, %478 : vector<8x8xf32>
    %cst_173 = arith.constant dense<0.000000e+00> : vector<8x16xf32>
    %480 = tpu.matmul %479, %462, %cst_173 {dimension_numbers = #tpu.dot_dimension_numbers<[1], [0], [0], [1], [0, 0, 1, 1], [], []>} : vector<8x8xf32>, vector<8x16xf32>, vector<8x16xf32> -> vector<8x16xf32>
    %481 = tpu.concatenate %459, %480 in 1 : vector<8x16xf32>, vector<8x16xf32> -> vector<8x32xf32>
    %482 = tpu.concatenate %435, %481 in 0 : vector<8x32xf32>, vector<8x32xf32> -> vector<16x32xf32>
    %c0_174 = arith.constant 0 : index
    %c0_175 = arith.constant 0 : index
    %483 = vector.load %arg26[%c0_174, %c0_175] : memref<32x32xf32, #tpu.memory_space<vmem>>, vector<32x32xf32>
    %c0_176 = arith.constant 0 : index
    %c0_177 = arith.constant 0 : index
    %484 = vector.load %arg27[%c0_176, %c0_177] : memref<1x32xf32, #tpu.memory_space<vmem>>, vector<1x32xf32>
    %cst_178 = arith.constant dense<0.000000e+00> : vector<16x32xf32>
    %485 = tpu.matmul %482, %483, %cst_178 {dimension_numbers = #tpu.dot_dimension_numbers<[1], [0], [0], [1], [0, 0, 1, 1], [], []>} : vector<16x32xf32>, vector<32x32xf32>, vector<16x32xf32> -> vector<16x32xf32>
    %486 = vector.broadcast %484 : vector<1x32xf32> to vector<16x32xf32>
    %487 = arith.addf %485, %486 : vector<16x32xf32>
    %488 = arith.addf %351, %487 : vector<16x32xf32>
    %c0_179 = arith.constant 0 : index
    %c0_180 = arith.constant 0 : index
    %489 = vector.load %arg28[%c0_179, %c0_180] : memref<2x32xf32, #tpu.memory_space<vmem>>, vector<2x32xf32>
    %490 = vector.extract_strided_slice %489 {offsets = [0, 0], sizes = [1, 32], strides = [1, 1]} : vector<2x32xf32> to vector<1x32xf32>
    %491 = vector.extract_strided_slice %489 {offsets = [1, 0], sizes = [1, 32], strides = [1, 1]} : vector<2x32xf32> to vector<1x32xf32>
    %cst_181 = arith.constant dense<0.000000e+00> : vector<16xf32>
    %492 = vector.multi_reduction <add>, %488, %cst_181 [1] : vector<16x32xf32> to vector<16xf32>
    %493 = vector.shape_cast %492 : vector<16xf32> to vector<16x1xf32>
    %cst_182 = arith.constant 3.200000e+01 : f32
    %494 = vector.broadcast %cst_182 : f32 to vector<16x1xf32>
    %495 = arith.divf %493, %494 : vector<16x1xf32>
    %496 = vector.broadcast %495 : vector<16x1xf32> to vector<16x32xf32>
    %497 = arith.subf %488, %496 : vector<16x32xf32>
    %498 = arith.mulf %497, %497 : vector<16x32xf32>
    %cst_183 = arith.constant dense<0.000000e+00> : vector<16xf32>
    %499 = vector.multi_reduction <add>, %498, %cst_183 [1] : vector<16x32xf32> to vector<16xf32>
    %500 = vector.shape_cast %499 : vector<16xf32> to vector<16x1xf32>
    %cst_184 = arith.constant 3.200000e+01 : f32
    %501 = vector.broadcast %cst_184 : f32 to vector<16x1xf32>
    %502 = arith.divf %500, %501 : vector<16x1xf32>
    %503 = vector.broadcast %495 : vector<16x1xf32> to vector<16x32xf32>
    %504 = arith.subf %488, %503 : vector<16x32xf32>
    %cst_185 = arith.constant 9.99999997E-7 : f32
    %505 = vector.broadcast %cst_185 : f32 to vector<16x1xf32>
    %506 = arith.addf %502, %505 : vector<16x1xf32>
    %507 = math.rsqrt %506 : vector<16x1xf32>
    %508 = vector.broadcast %507 : vector<16x1xf32> to vector<16x32xf32>
    %509 = arith.mulf %504, %508 : vector<16x32xf32>
    %510 = vector.broadcast %490 : vector<1x32xf32> to vector<16x32xf32>
    %511 = arith.mulf %509, %510 : vector<16x32xf32>
    %512 = vector.broadcast %491 : vector<1x32xf32> to vector<16x32xf32>
    %513 = arith.addf %511, %512 : vector<16x32xf32>
    %c0_186 = arith.constant 0 : index
    %c0_187 = arith.constant 0 : index
    %514 = vector.load %arg29[%c0_186, %c0_187] : memref<32x64xf32, #tpu.memory_space<vmem>>, vector<32x64xf32>
    %c0_188 = arith.constant 0 : index
    %c0_189 = arith.constant 0 : index
    %515 = vector.load %arg30[%c0_188, %c0_189] : memref<1x64xf32, #tpu.memory_space<vmem>>, vector<1x64xf32>
    %cst_190 = arith.constant dense<0.000000e+00> : vector<16x64xf32>
    %516 = tpu.matmul %513, %514, %cst_190 {dimension_numbers = #tpu.dot_dimension_numbers<[1], [0], [0], [1], [0, 0, 1, 1], [], []>} : vector<16x32xf32>, vector<32x64xf32>, vector<16x64xf32> -> vector<16x64xf32>
    %517 = vector.broadcast %515 : vector<1x64xf32> to vector<16x64xf32>
    %518 = arith.addf %516, %517 : vector<16x64xf32>
    %cst_191 = arith.constant 0.000000e+00 : f32
    %519 = vector.broadcast %cst_191 : f32 to vector<16x64xf32>
    %520 = arith.maximumf %518, %519 : vector<16x64xf32>
    %c0_192 = arith.constant 0 : index
    %c0_193 = arith.constant 0 : index
    %521 = vector.load %arg31[%c0_192, %c0_193] : memref<64x32xf32, #tpu.memory_space<vmem>>, vector<64x32xf32>
    %c0_194 = arith.constant 0 : index
    %c0_195 = arith.constant 0 : index
    %522 = vector.load %arg32[%c0_194, %c0_195] : memref<1x32xf32, #tpu.memory_space<vmem>>, vector<1x32xf32>
    %cst_196 = arith.constant dense<0.000000e+00> : vector<16x32xf32>
    %523 = tpu.matmul %520, %521, %cst_196 {dimension_numbers = #tpu.dot_dimension_numbers<[1], [0], [0], [1], [0, 0, 1, 1], [], []>} : vector<16x64xf32>, vector<64x32xf32>, vector<16x32xf32> -> vector<16x32xf32>
    %524 = vector.broadcast %522 : vector<1x32xf32> to vector<16x32xf32>
    %525 = arith.addf %523, %524 : vector<16x32xf32>
    %526 = arith.addf %488, %525 : vector<16x32xf32>
    %c0_197 = arith.constant 0 : index
    %c0_198 = arith.constant 0 : index
    %527 = vector.load %arg33[%c0_197, %c0_198] : memref<2x32xf32, #tpu.memory_space<vmem>>, vector<2x32xf32>
    %528 = vector.extract_strided_slice %527 {offsets = [0, 0], sizes = [1, 32], strides = [1, 1]} : vector<2x32xf32> to vector<1x32xf32>
    %529 = vector.extract_strided_slice %527 {offsets = [1, 0], sizes = [1, 32], strides = [1, 1]} : vector<2x32xf32> to vector<1x32xf32>
    %cst_199 = arith.constant dense<0.000000e+00> : vector<16xf32>
    %530 = vector.multi_reduction <add>, %526, %cst_199 [1] : vector<16x32xf32> to vector<16xf32>
    %531 = vector.shape_cast %530 : vector<16xf32> to vector<16x1xf32>
    %cst_200 = arith.constant 3.200000e+01 : f32
    %532 = vector.broadcast %cst_200 : f32 to vector<16x1xf32>
    %533 = arith.divf %531, %532 : vector<16x1xf32>
    %534 = vector.broadcast %533 : vector<16x1xf32> to vector<16x32xf32>
    %535 = arith.subf %526, %534 : vector<16x32xf32>
    %536 = arith.mulf %535, %535 : vector<16x32xf32>
    %cst_201 = arith.constant dense<0.000000e+00> : vector<16xf32>
    %537 = vector.multi_reduction <add>, %536, %cst_201 [1] : vector<16x32xf32> to vector<16xf32>
    %538 = vector.shape_cast %537 : vector<16xf32> to vector<16x1xf32>
    %cst_202 = arith.constant 3.200000e+01 : f32
    %539 = vector.broadcast %cst_202 : f32 to vector<16x1xf32>
    %540 = arith.divf %538, %539 : vector<16x1xf32>
    %541 = vector.broadcast %533 : vector<16x1xf32> to vector<16x32xf32>
    %542 = arith.subf %526, %541 : vector<16x32xf32>
    %cst_203 = arith.constant 9.99999997E-7 : f32
    %543 = vector.broadcast %cst_203 : f32 to vector<16x1xf32>
    %544 = arith.addf %540, %543 : vector<16x1xf32>
    %545 = math.rsqrt %544 : vector<16x1xf32>
    %546 = vector.broadcast %545 : vector<16x1xf32> to vector<16x32xf32>
    %547 = arith.mulf %542, %546 : vector<16x32xf32>
    %548 = vector.broadcast %528 : vector<1x32xf32> to vector<16x32xf32>
    %549 = arith.mulf %547, %548 : vector<16x32xf32>
    %550 = vector.broadcast %529 : vector<1x32xf32> to vector<16x32xf32>
    %551 = arith.addf %549, %550 : vector<16x32xf32>
    %c0_204 = arith.constant 0 : index
    %c0_205 = arith.constant 0 : index
    %552 = vector.load %arg34[%c0_204, %c0_205] : memref<32x16xf32, #tpu.memory_space<vmem>>, vector<32x16xf32>
    %c0_206 = arith.constant 0 : index
    %c0_207 = arith.constant 0 : index
    %553 = vector.load %arg35[%c0_206, %c0_207] : memref<1x16xf32, #tpu.memory_space<vmem>>, vector<1x16xf32>
    %cst_208 = arith.constant dense<0.000000e+00> : vector<16x16xf32>
    %554 = tpu.matmul %551, %552, %cst_208 {dimension_numbers = #tpu.dot_dimension_numbers<[1], [0], [0], [1], [0, 0, 1, 1], [], []>} : vector<16x32xf32>, vector<32x16xf32>, vector<16x16xf32> -> vector<16x16xf32>
    %555 = vector.broadcast %553 : vector<1x16xf32> to vector<16x16xf32>
    %556 = arith.addf %554, %555 : vector<16x16xf32>
    %557 = vector.shape_cast %556 : vector<16x16xf32> to vector<2x8x16xf32>
    %c0_209 = arith.constant 0 : index
    %c0_210 = arith.constant 0 : index
    %c0_211 = arith.constant 0 : index
    %558 = vector.load %arg36[%c0_209, %c0_210, %c0_211] : memref<2x8x16xf32, #tpu.memory_space<vmem>>, vector<2x8x16xf32>
    tpu.vector_store %arg36[%c0_209, %c0_210, %c0_211], %557 {strides = array<i32>} : memref<2x8x16xf32, #tpu.memory_space<vmem>>, vector<2x8x16xf32>,
    return
  }
}

</mosaic_0001>

<llo_original>
// kernel: model_forward.1
$region0: #{model_forward.1}
  #allocation0 [shape = 'u32[]', space=smem, size = 0x4, offset = 0x4, fixed_abs, tag = 'smem constant byte address 0x4 - core index']
  #allocation1 [shape = 'u32[72,128]{1,0:T(1,128)}', space=vmem, size = 0x9000, scoped, tag = 'internal scratch']
  %s0 = inlined_call_operand.smem [shape: u32[37], index: -1, kind: input, shape index: {}]
  %s1 = sld [smem:[%s0]]
  %s2 = scalar_lea.smem %s0, 1
  %s3 = sld [smem:[%s2]]
  %s4 = scalar_lea.smem %s0, 2
  %s5 = sld [smem:[%s4]]
  %s6 = scalar_lea.smem %s0, 3
  %s7 = sld [smem:[%s6]]
  %s8 = scalar_lea.smem %s0, 4
  %s9 = sld [smem:[%s8]]
  %s10 = scalar_lea.smem %s0, 5
  %s11 = sld [smem:[%s10]]
  %s12 = scalar_lea.smem %s0, 6
  %s13 = sld [smem:[%s12]]
  %s14 = scalar_lea.smem %s0, 7
  %s15 = sld [smem:[%s14]]
  %s16 = scalar_lea.smem %s0, 8
  %s17 = sld [smem:[%s16]]
  %s18 = scalar_lea.smem %s0, 9
  %s19 = sld [smem:[%s18]]
  %s20 = scalar_lea.smem %s0, 10
  %s21 = sld [smem:[%s20]]
  %s22 = scalar_lea.smem %s0, 11
  %s23 = sld [smem:[%s22]]
  %s24 = scalar_lea.smem %s0, 12
  %s25 = sld [smem:[%s24]]
  %s26 = scalar_lea.smem %s0, 13
  %s27 = sld [smem:[%s26]]
  %s28 = scalar_lea.smem %s0, 14
  %s29 = sld [smem:[%s28]]
  %s30 = scalar_lea.smem %s0, 15
  %s31 = sld [smem:[%s30]]
  %s32 = scalar_lea.smem %s0, 16
  %s33 = sld [smem:[%s32]]
  %s34 = scalar_lea.smem %s0, 17
  %s35 = sld [smem:[%s34]]
  %s36 = scalar_lea.smem %s0, 18
  %s37 = sld [smem:[%s36]]
  %s38 = scalar_lea.smem %s0, 19
  %s39 = sld [smem:[%s38]]
  %s40 = scalar_lea.smem %s0, 20
  %s41 = sld [smem:[%s40]]
  %s42 = scalar_lea.smem %s0, 21
  %s43 = sld [smem:[%s42]]
  %s44 = scalar_lea.smem %s0, 22
  %s45 = sld [smem:[%s44]]
  %s46 = scalar_lea.smem %s0, 23
  %s47 = sld [smem:[%s46]]
  %s48 = scalar_lea.smem %s0, 24
  %s49 = sld [smem:[%s48]]
  %s50 = scalar_lea.smem %s0, 25
  %s51 = sld [smem:[%s50]]
  %s52 = scalar_lea.smem %s0, 26
  %s53 = sld [smem:[%s52]]
  %s54 = scalar_lea.smem %s0, 27
  %s55 = sld [smem:[%s54]]
  %s56 = scalar_lea.smem %s0, 28
  %s57 = sld [smem:[%s56]]
  %s58 = scalar_lea.smem %s0, 29
  %s59 = sld [smem:[%s58]]
  %s60 = scalar_lea.smem %s0, 30
  %s61 = sld [smem:[%s60]]
  %s62 = scalar_lea.smem %s0, 31
  %s63 = sld [smem:[%s62]]
  %s64 = scalar_lea.smem %s0, 32
  %s65 = sld [smem:[%s64]]
  %s66 = scalar_lea.smem %s0, 33
  %s67 = sld [smem:[%s66]]
  %s68 = scalar_lea.smem %s0, 34
  %s69 = sld [smem:[%s68]]
  %s70 = scalar_lea.smem %s0, 35
  %s71 = sld [smem:[%s70]]
  %s72 = scalar_lea.smem %s0, 36
  %s73 = sld [smem:[%s72]]
  %s74 = sld [smem:[#allocation0]]
  $region154: #{model_forward.1} parent=0
    _
  %s76 = ssub.s32 1, %s74
  %s77 = scalar_select 0, %s76, %s74
  $region1: #{model_forward.1} parent=0
    #allocation2 [shape = 'u8[8192]{0}', space=vmem, size = 0x2000, scoped, tag = 'output window, operand 0, single buffered']
    #allocation3 [shape = 's32[1]{0}', space=sflag, size = 0x4, scoped, tag = 'scoped memory for model_forward.1']
    %78 = vsyncpa [#allocation3], 0
    // Predicated region
    $region2: #{model_forward.1} parent=1 // pred_check
      _
    $region3: #{model_forward.1} parent=1 // pred_check_branch
      %80 = sbr.rel (0) target = $region5
    $region4: #{model_forward.1} parent=1 // pred_region
      _
    $region5: #{model_forward.1} parent=1 // pred_fallthru
      _
    // Predicated region
    $region6: #{model_forward.1} parent=1 // pred_check
      _
    $region7: #{model_forward.1} parent=1 // pred_check_branch
      %82 = sbr.rel (0) target = $region9
    $region8: #{model_forward.1} parent=1 // pred_region
      _
    $region9: #{model_forward.1} parent=1 // pred_fallthru
      _
    // Predicated region
    $region10: #{model_forward.1} parent=1 // pred_check
      _
    $region11: #{model_forward.1} parent=1 // pred_check_branch
      %84 = sbr.rel (0) target = $region13
    $region12: #{model_forward.1} parent=1 // pred_region
      _
    $region13: #{model_forward.1} parent=1 // pred_fallthru
      _
    // Predicated region
    $region14: #{model_forward.1} parent=1 // pred_check
      _
    $region15: #{model_forward.1} parent=1 // pred_check_branch
      %86 = sbr.rel (0) target = $region17
    $region16: #{model_forward.1} parent=1 // pred_region
      _
    $region17: #{model_forward.1} parent=1 // pred_fallthru
      _
    // Predicated region
    $region18: #{model_forward.1} parent=1 // pred_check
      _
    $region19: #{model_forward.1} parent=1 // pred_check_branch
      %88 = sbr.rel (0) target = $region21
    $region20: #{model_forward.1} parent=1 // pred_region
      _
    $region21: #{model_forward.1} parent=1 // pred_fallthru
      _
    // Predicated region
    $region22: #{model_forward.1} parent=1 // pred_check
      _
    $region23: #{model_forward.1} parent=1 // pred_check_branch
      %90 = sbr.rel (0) target = $region25
    $region24: #{model_forward.1} parent=1 // pred_region
      _
    $region25: #{model_forward.1} parent=1 // pred_fallthru
      _
    // Predicated region
    $region26: #{model_forward.1} parent=1 // pred_check
      _
    $region27: #{model_forward.1} parent=1 // pred_check_branch
      %92 = sbr.rel (0) target = $region29
    $region28: #{model_forward.1} parent=1 // pred_region
      _
    $region29: #{model_forward.1} parent=1 // pred_fallthru
      _
    // Predicated region
    $region30: #{model_forward.1} parent=1 // pred_check
      _
    $region31: #{model_forward.1} parent=1 // pred_check_branch
      %94 = sbr.rel (0) target = $region33
    $region32: #{model_forward.1} parent=1 // pred_region
      _
    $region33: #{model_forward.1} parent=1 // pred_fallthru
      _
    // Predicated region
    $region34: #{model_forward.1} parent=1 // pred_check
      _
    $region35: #{model_forward.1} parent=1 // pred_check_branch
      %96 = sbr.rel (0) target = $region37
    $region36: #{model_forward.1} parent=1 // pred_region
      _
    $region37: #{model_forward.1} parent=1 // pred_fallthru
      _
    // Predicated region
    $region38: #{model_forward.1} parent=1 // pred_check
      _
    $region39: #{model_forward.1} parent=1 // pred_check_branch
      %98 = sbr.rel (0) target = $region41
    $region40: #{model_forward.1} parent=1 // pred_region
      _
    $region41: #{model_forward.1} parent=1 // pred_fallthru
      _
    // Predicated region
    $region42: #{model_forward.1} parent=1 // pred_check
      _
    $region43: #{model_forward.1} parent=1 // pred_check_branch
      %100 = sbr.rel (0) target = $region45
    $region44: #{model_forward.1} parent=1 // pred_region
      _
    $region45: #{model_forward.1} parent=1 // pred_fallthru
      _
    // Predicated region
    $region46: #{model_forward.1} parent=1 // pred_check
      _
    $region47: #{model_forward.1} parent=1 // pred_check_branch
      %102 = sbr.rel (0) target = $region49
    $region48: #{model_forward.1} parent=1 // pred_region
      _
    $region49: #{model_forward.1} parent=1 // pred_fallthru
      _
    // Predicated region
    $region50: #{model_forward.1} parent=1 // pred_check
      _
    $region51: #{model_forward.1} parent=1 // pred_check_branch
      %104 = sbr.rel (0) target = $region53
    $region52: #{model_forward.1} parent=1 // pred_region
      _
    $region53: #{model_forward.1} parent=1 // pred_fallthru
      _
    // Predicated region
    $region54: #{model_forward.1} parent=1 // pred_check
      _
    $region55: #{model_forward.1} parent=1 // pred_check_branch
      %106 = sbr.rel (0) target = $region57
    $region56: #{model_forward.1} parent=1 // pred_region
      _
    $region57: #{model_forward.1} parent=1 // pred_fallthru
      _
    // Predicated region
    $region58: #{model_forward.1} parent=1 // pred_check
      _
    $region59: #{model_forward.1} parent=1 // pred_check_branch
      %108 = sbr.rel (0) target = $region61
    $region60: #{model_forward.1} parent=1 // pred_region
      _
    $region61: #{model_forward.1} parent=1 // pred_fallthru
      _
    // Predicated region
    $region62: #{model_forward.1} parent=1 // pred_check
      _
    $region63: #{model_forward.1} parent=1 // pred_check_branch
      %110 = sbr.rel (0) target = $region65
    $region64: #{model_forward.1} parent=1 // pred_region
      _
    $region65: #{model_forward.1} parent=1 // pred_fallthru
      _
    // Predicated region
    $region66: #{model_forward.1} parent=1 // pred_check
      _
    $region67: #{model_forward.1} parent=1 // pred_check_branch
      %112 = sbr.rel (0) target = $region69
    $region68: #{model_forward.1} parent=1 // pred_region
      _
    $region69: #{model_forward.1} parent=1 // pred_fallthru
      _
    // Predicated region
    $region70: #{model_forward.1} parent=1 // pred_check
      _
    $region71: #{model_forward.1} parent=1 // pred_check_branch
      %114 = sbr.rel (0) target = $region73
    $region72: #{model_forward.1} parent=1 // pred_region
      _
    $region73: #{model_forward.1} parent=1 // pred_fallthru
      _
    // Predicated region
    $region74: #{model_forward.1} parent=1 // pred_check
      _
    $region75: #{model_forward.1} parent=1 // pred_check_branch
      %116 = sbr.rel (0) target = $region77
    $region76: #{model_forward.1} parent=1 // pred_region
      _
    $region77: #{model_forward.1} parent=1 // pred_fallthru
      _
    // Predicated region
    $region78: #{model_forward.1} parent=1 // pred_check
      _
    $region79: #{model_forward.1} parent=1 // pred_check_branch
      %118 = sbr.rel (0) target = $region81
    $region80: #{model_forward.1} parent=1 // pred_region
      _
    $region81: #{model_forward.1} parent=1 // pred_fallthru
      _
    // Predicated region
    $region82: #{model_forward.1} parent=1 // pred_check
      _
    $region83: #{model_forward.1} parent=1 // pred_check_branch
      %120 = sbr.rel (0) target = $region85
    $region84: #{model_forward.1} parent=1 // pred_region
      _
    $region85: #{model_forward.1} parent=1 // pred_fallthru
      _
    // Predicated region
    $region86: #{model_forward.1} parent=1 // pred_check
      _
    $region87: #{model_forward.1} parent=1 // pred_check_branch
      %122 = sbr.rel (0) target = $region89
    $region88: #{model_forward.1} parent=1 // pred_region
      _
    $region89: #{model_forward.1} parent=1 // pred_fallthru
      _
    // Predicated region
    $region90: #{model_forward.1} parent=1 // pred_check
      _
    $region91: #{model_forward.1} parent=1 // pred_check_branch
      %124 = sbr.rel (0) target = $region93
    $region92: #{model_forward.1} parent=1 // pred_region
      _
    $region93: #{model_forward.1} parent=1 // pred_fallthru
      _
    // Predicated region
    $region94: #{model_forward.1} parent=1 // pred_check
      _
    $region95: #{model_forward.1} parent=1 // pred_check_branch
      %126 = sbr.rel (0) target = $region97
    $region96: #{model_forward.1} parent=1 // pred_region
      _
    $region97: #{model_forward.1} parent=1 // pred_fallthru
      _
    // Predicated region
    $region98: #{model_forward.1} parent=1 // pred_check
      _
    $region99: #{model_forward.1} parent=1 // pred_check_branch
      %128 = sbr.rel (0) target = $region101
    $region100: #{model_forward.1} parent=1 // pred_region
      _
    $region101: #{model_forward.1} parent=1 // pred_fallthru
      _
    // Predicated region
    $region102: #{model_forward.1} parent=1 // pred_check
      _
    $region103: #{model_forward.1} parent=1 // pred_check_branch
      %130 = sbr.rel (0) target = $region105
    $region104: #{model_forward.1} parent=1 // pred_region
      _
    $region105: #{model_forward.1} parent=1 // pred_fallthru
      _
    // Predicated region
    $region106: #{model_forward.1} parent=1 // pred_check
      _
    $region107: #{model_forward.1} parent=1 // pred_check_branch
      %132 = sbr.rel (0) target = $region109
    $region108: #{model_forward.1} parent=1 // pred_region
      _
    $region109: #{model_forward.1} parent=1 // pred_fallthru
      _
    // Predicated region
    $region110: #{model_forward.1} parent=1 // pred_check
      _
    $region111: #{model_forward.1} parent=1 // pred_check_branch
      %134 = sbr.rel (0) target = $region113
    $region112: #{model_forward.1} parent=1 // pred_region
      _
    $region113: #{model_forward.1} parent=1 // pred_fallthru
      _
    // Predicated region
    $region114: #{model_forward.1} parent=1 // pred_check
      _
    $region115: #{model_forward.1} parent=1 // pred_check_branch
      %136 = sbr.rel (0) target = $region117
    $region116: #{model_forward.1} parent=1 // pred_region
      _
    $region117: #{model_forward.1} parent=1 // pred_fallthru
      _
    // Predicated region
    $region118: #{model_forward.1} parent=1 // pred_check
      _
    $region119: #{model_forward.1} parent=1 // pred_check_branch
      %138 = sbr.rel (0) target = $region121
    $region120: #{model_forward.1} parent=1 // pred_region
      _
    $region121: #{model_forward.1} parent=1 // pred_fallthru
      _
    // Predicated region
    $region122: #{model_forward.1} parent=1 // pred_check
      _
    $region123: #{model_forward.1} parent=1 // pred_check_branch
      %140 = sbr.rel (0) target = $region125
    $region124: #{model_forward.1} parent=1 // pred_region
      _
    $region125: #{model_forward.1} parent=1 // pred_fallthru
      _
    // Predicated region
    $region126: #{model_forward.1} parent=1 // pred_check
      _
    $region127: #{model_forward.1} parent=1 // pred_check_branch
      %142 = sbr.rel (0) target = $region129
    $region128: #{model_forward.1} parent=1 // pred_region
      _
    $region129: #{model_forward.1} parent=1 // pred_fallthru
      _
    // Predicated region
    $region130: #{model_forward.1} parent=1 // pred_check
      _
    $region131: #{model_forward.1} parent=1 // pred_check_branch
      %144 = sbr.rel (0) target = $region133
    $region132: #{model_forward.1} parent=1 // pred_region
      _
    $region133: #{model_forward.1} parent=1 // pred_fallthru
      _
    // Predicated region
    $region134: #{model_forward.1} parent=1 // pred_check
      _
    $region135: #{model_forward.1} parent=1 // pred_check_branch
      %146 = sbr.rel (0) target = $region137
    $region136: #{model_forward.1} parent=1 // pred_region
      _
    $region137: #{model_forward.1} parent=1 // pred_fallthru
      _
    // Predicated region
    $region138: #{model_forward.1} parent=1 // pred_check
      _
    $region139: #{model_forward.1} parent=1 // pred_check_branch
      %148 = sbr.rel (0) target = $region141
    $region140: #{model_forward.1} parent=1 // pred_region
      _
    $region141: #{model_forward.1} parent=1 // pred_fallthru
      _
    // Predicated region
    $region142: #{model_forward.1} parent=1 // pred_check
      _
    $region143: #{model_forward.1} parent=1 // pred_check_branch
      %150 = sbr.rel (0) target = $region145
    $region144: #{model_forward.1} parent=1 // pred_region
      _
    $region145: #{model_forward.1} parent=1 // pred_fallthru
      _
    %v151 = vld [vmem:[%s7] sm:$0x3]
    %v152 = vld [vmem:[%s9] sm:$0xff]
    %v153 = vperm.slane %v151, 0
    %v154 = vperm.slane %v151, 1
    %v155 = vld [vmem:[%s1] sm:$0xff]
    %v156 = vld [vmem:[%s1 + $0x8] sm:$0xff]
    %v157 = vld [vmem:[%s11] sm:$0x3]
    %vm158 = vcmask 261120
    %v159 = vsel %vm158, %v155, 0.0
    %160 = vadd.xlane.f32.xlu0 %v159
    %v161 = vpop.xlane.xlu0 %160
    %v162 = vsel %vm158, %v156, 0.0
    %163 = vadd.xlane.f32.xlu0 %v162
    %v164 = vpop.xlane.xlu0 %163
    %v165 = vrcp.pop 32.0
    %v166 = vmul.f32 32.0, %v165
    %v167 = vsub.f32 1.0, %v166
    %v168 = vmul.f32 %v165, %v167
    %v169 = vadd.f32 %v165, %v168
    %vm170 = vweird.f32 %v165
    %v171 = vsel %vm170, %v165, %v169
    %v172 = vmul.f32 %v161, %v171
    %v173 = vmul.f32 %v164, %v171
    %v174 = vsub.f32 %v155, %v172
    %v175 = vsub.f32 %v156, %v173
    %v176 = vmul.f32 %v174, %v174
    %v177 = vmul.f32 %v175, %v175
    %v178 = vsel %vm158, %v176, 0.0
    %179 = vadd.xlane.f32.xlu0 %v178
    %v180 = vpop.xlane.xlu0 %179
    %v181 = vsel %vm158, %v177, 0.0
    %182 = vadd.xlane.f32.xlu0 %v181
    %v183 = vpop.xlane.xlu0 %182
    %v184 = vmul.f32 %v180, %v171
    %v185 = vmul.f32 %v183, %v171
    %v186 = vadd.f32 %v184, 1e-06
    %v187 = vadd.f32 %v185, 1e-06
    %v188 = vrsqrt.pop %v186
    %v189 = vmul.f32 %v188, %v186
    %v190 = vmul.f32 %v189, %v188
    %v191 = vmul.f32 0.5, %v190
    %v192 = vsub.f32 1.5, %v191
    %v193 = vmul.f32 %v188, %v192
    %vm194 = vweird.f32 %v186
    %vm195 = vweird.f32 %v188
    %vm196 = vmor %vm194, %vm195
    %v197 = vsel %vm196, %v188, %v193
    %v198 = vrsqrt.pop %v187
    %v199 = vmul.f32 %v198, %v187
    %v200 = vmul.f32 %v199, %v198
    %v201 = vmul.f32 0.5, %v200
    %v202 = vsub.f32 1.5, %v201
    %v203 = vmul.f32 %v198, %v202
    %vm204 = vweird.f32 %v187
    %vm205 = vweird.f32 %v198
    %vm206 = vmor %vm204, %vm205
    %v207 = vsel %vm206, %v198, %v203
    %v208 = vmul.f32 %v174, %v197
    %v209 = vmul.f32 %v175, %v207
    %v210 = vperm.slane %v157, 0
    %v211 = vmul.f32 %v208, %v210
    %v212 = vmul.f32 %v209, %v210
    %v213 = vperm.slane %v157, 1
    %v214 = vadd.f32 %v211, %v213
    %v215 = vadd.f32 %v212, %v213
    %v216 = vld [vmem:[%s13] sm:$0xff]
    %v217 = vld [vmem:[%s13 + $0x8] sm:$0xff]
    %v218 = vld [vmem:[%s13 + $0x10] sm:$0xff]
    %v219 = vld [vmem:[%s13 + $0x18] sm:$0xff]
    %v220 = vld [vmem:[%s15] sm:$0x1]
    %v222 = vperm.slane %v220, 0
    %v225 = vsel %vm158, %v214, 0
    %v228 = vsel %vm158, %v215, 0
    %230 = vmatpush.msra.mxu0 0.0
    %231 = vmatpush.msra.mxu0 0.0
    %232 = vmatpush.msra.mxu0 0.0
    %233 = vmatpush.msra.mxu0 0.0
    %234 = vmatpush.msra.mxu0 0.0
    %235 = vmatpush.msra.mxu0 0.0
    %236 = vmatpush.msra.mxu0 0.0
    %237 = vmatpush.msra.mxu0 0.0
    %238 = vmatpush.msra.mxu0 0.0
    %239 = vmatpush.msra.mxu0 0.0
    %240 = vmatpush.msra.mxu0 0.0
    %241 = vmatpush.msra.mxu0 0.0
    %242 = vmatpush.msra.mxu0 %v219
    %243 = vmatpush.msra.mxu0 %v218
    %244 = vmatpush.msra.mxu0 %v217
    %245 = vmatpush.msra.mxu0 %v216
    %246 = vmatmul.f32.gmra.mxu0 %v225
    %v247 = vpop.f32.mrf.mxu0
    %v248 = vadd.f32 %v222, %v247
    %249 = vmatmul.f32.gmra.mxu0 %v228
    %v250 = vpop.f32.mrf.mxu0
    %v251 = vadd.f32 %v222, %v250
    %252 = vdwg.mxu0
    %254 = vrot.lane.b32.xlu0 %v248, 96
    %v255 = vpop.permute.xlu0 %254
    %vm256 = vcmask 130048
    %v257 = vsel %vm256, %v248, 0
    %v259 = vsel %vm256, %v255, 0
    %261 = vmatpush.xpose.msra.mxu0 0.0
    %262 = vmatpush.xpose.msra.mxu0 0.0
    %263 = vmatpush.xpose.msra.mxu0 0.0
    %264 = vmatpush.xpose.msra.mxu0 0.0
    %265 = vmatpush.xpose.msra.mxu0 0.0
    %266 = vmatpush.xpose.msra.mxu0 0.0
    %267 = vmatpush.xpose.msra.mxu0 0.0
    %268 = vmatpush.xpose.msra.mxu0 0.0
    %269 = vmatpush.xpose.msra.mxu0 0.0
    %270 = vmatpush.xpose.msra.mxu0 0.0
    %271 = vmatpush.xpose.msra.mxu0 0.0
    %272 = vmatpush.xpose.msra.mxu0 0.0
    %273 = vmatpush.xpose.msra.mxu0 0.0
    %274 = vmatpush.xpose.msra.mxu0 0.0
    %275 = vmatpush.xpose.msra.mxu0 0.0
    %276 = vmatpush.xpose.msra.mxu0 %v259
    %277 = vmatmul.f32.gmra.mxu0 %v257
    %v278 = vpop.f32.mrf.mxu0
    %v279 = vadd.f32 0.0, %v278
    %280 = vdwg.mxu0
    %v281 = vmul.f32 %v279, 0.25
    %vm282 = vcmp.gt.f32.partialorder %v153, 0.0
    %v283 = vsel %vm282, %v281, -1e+09
    %vm284 = vcmask 64512
    %v285 = vsel %vm284, %v283, -inf
    %286 = vmax.xlane.f32.xlu0 %v285
    %v287 = vpop.xlane.xlu0 %286
    %v288 = vsub.f32 %v283, %v287
    %v289 = vmul.f32 %v288, 1.442695
    %v290 = vpow.pop %v289
    %v291 = vsel %vm284, %v290, 0.0
    %292 = vadd.xlane.f32.xlu0 %v291
    %v293 = vpop.xlane.xlu0 %292
    %v294 = vrcp.pop %v293
    %v295 = vmul.f32 %v290, %v294
    %296 = vrot.lane.b32.xlu0 %v248, 64
    %v297 = vpop.permute.xlu0 %296
    %v300 = vsel %vm284, %v295, 0
    %302 = vmatpush.msra.mxu0 0.0
    %303 = vmatpush.msra.mxu0 0.0
    %304 = vmatpush.msra.mxu0 0.0
    %305 = vmatpush.msra.mxu0 0.0
    %306 = vmatpush.msra.mxu0 0.0
    %307 = vmatpush.msra.mxu0 0.0
    %308 = vmatpush.msra.mxu0 0.0
    %309 = vmatpush.msra.mxu0 0.0
    %310 = vmatpush.msra.mxu0 0.0
    %311 = vmatpush.msra.mxu0 0.0
    %312 = vmatpush.msra.mxu0 0.0
    %313 = vmatpush.msra.mxu0 0.0
    %314 = vmatpush.msra.mxu0 0.0
    %315 = vmatpush.msra.mxu0 0.0
    %316 = vmatpush.msra.mxu0 0.0
    %317 = vmatpush.msra.mxu0 %v297
    %318 = vmatmul.f32.gmra.mxu0 %v300
    %v319 = vpop.f32.mrf.mxu0
    %v320 = vadd.f32 0.0, %v319
    %321 = vdwg.mxu0
    %322 = vrot.lane.b32.xlu0 %v248, 112
    %v323 = vpop.permute.xlu0 %322
    %324 = vrot.lane.b32.xlu0 %v248, 80
    %v325 = vpop.permute.xlu0 %324
    %v326 = vsel %vm256, %v323, 0
    %v328 = vsel %vm256, %v325, 0
    %330 = vmatpush.xpose.msra.mxu0 0.0
    %331 = vmatpush.xpose.msra.mxu0 0.0
    %332 = vmatpush.xpose.msra.mxu0 0.0
    %333 = vmatpush.xpose.msra.mxu0 0.0
    %334 = vmatpush.xpose.msra.mxu0 0.0
    %335 = vmatpush.xpose.msra.mxu0 0.0
    %336 = vmatpush.xpose.msra.mxu0 0.0
    %337 = vmatpush.xpose.msra.mxu0 0.0
    %338 = vmatpush.xpose.msra.mxu0 0.0
    %339 = vmatpush.xpose.msra.mxu0 0.0
    %340 = vmatpush.xpose.msra.mxu0 0.0
    %341 = vmatpush.xpose.msra.mxu0 0.0
    %342 = vmatpush.xpose.msra.mxu0 0.0
    %343 = vmatpush.xpose.msra.mxu0 0.0
    %344 = vmatpush.xpose.msra.mxu0 0.0
    %345 = vmatpush.xpose.msra.mxu0 %v328
    %346 = vmatmul.f32.gmra.mxu0 %v326
    %v347 = vpop.f32.mrf.mxu0
    %v348 = vadd.f32 0.0, %v347
    %349 = vdwg.mxu0
    %v350 = vmul.f32 %v348, 0.25
    %v351 = vsel %vm282, %v350, -1e+09
    %v352 = vsel %vm284, %v351, -inf
    %353 = vmax.xlane.f32.xlu0 %v352
    %v354 = vpop.xlane.xlu0 %353
    %v355 = vsub.f32 %v351, %v354
    %v356 = vmul.f32 %v355, 1.442695
    %v357 = vpow.pop %v356
    %v358 = vsel %vm284, %v357, 0.0
    %359 = vadd.xlane.f32.xlu0 %v358
    %v360 = vpop.xlane.xlu0 %359
    %v361 = vrcp.pop %v360
    %v362 = vmul.f32 %v357, %v361
    %363 = vrot.lane.b32.xlu0 %v248, 48
    %v364 = vpop.permute.xlu0 %363
    %v367 = vsel %vm284, %v362, 0
    %369 = vmatpush.msra.mxu0 0.0
    %370 = vmatpush.msra.mxu0 0.0
    %371 = vmatpush.msra.mxu0 0.0
    %372 = vmatpush.msra.mxu0 0.0
    %373 = vmatpush.msra.mxu0 0.0
    %374 = vmatpush.msra.mxu0 0.0
    %375 = vmatpush.msra.mxu0 0.0
    %376 = vmatpush.msra.mxu0 0.0
    %377 = vmatpush.msra.mxu0 0.0
    %378 = vmatpush.msra.mxu0 0.0
    %379 = vmatpush.msra.mxu0 0.0
    %380 = vmatpush.msra.mxu0 0.0
    %381 = vmatpush.msra.mxu0 0.0
    %382 = vmatpush.msra.mxu0 0.0
    %383 = vmatpush.msra.mxu0 0.0
    %384 = vmatpush.msra.mxu0 %v364
    %385 = vmatmul.f32.gmra.mxu0 %v367
    %v386 = vpop.f32.mrf.mxu0
    %v387 = vadd.f32 0.0, %v386
    %388 = vdwg.mxu0
    %390 = vrot.lane.b32.xlu0 %v387, 16
    %v391 = vpop.permute.xlu0 %390
    %v393 = vsel %vm256, %v320, %v391
    %395 = vrot.lane.b32.xlu0 %v251, 96
    %v396 = vpop.permute.xlu0 %395
    %v397 = vsel %vm256, %v251, 0
    %v399 = vsel %vm256, %v396, 0
    %401 = vmatpush.xpose.msra.mxu0 0.0
    %402 = vmatpush.xpose.msra.mxu0 0.0
    %403 = vmatpush.xpose.msra.mxu0 0.0
    %404 = vmatpush.xpose.msra.mxu0 0.0
    %405 = vmatpush.xpose.msra.mxu0 0.0
    %406 = vmatpush.xpose.msra.mxu0 0.0
    %407 = vmatpush.xpose.msra.mxu0 0.0
    %408 = vmatpush.xpose.msra.mxu0 0.0
    %409 = vmatpush.xpose.msra.mxu0 0.0
    %410 = vmatpush.xpose.msra.mxu0 0.0
    %411 = vmatpush.xpose.msra.mxu0 0.0
    %412 = vmatpush.xpose.msra.mxu0 0.0
    %413 = vmatpush.xpose.msra.mxu0 0.0
    %414 = vmatpush.xpose.msra.mxu0 0.0
    %415 = vmatpush.xpose.msra.mxu0 0.0
    %416 = vmatpush.xpose.msra.mxu0 %v399
    %417 = vmatmul.f32.gmra.mxu0 %v397
    %v418 = vpop.f32.mrf.mxu0
    %v419 = vadd.f32 0.0, %v418
    %420 = vdwg.mxu0
    %v421 = vmul.f32 %v419, 0.25
    %vm422 = vcmp.gt.f32.partialorder %v154, 0.0
    %v423 = vsel %vm422, %v421, -1e+09
    %v424 = vsel %vm284, %v423, -inf
    %425 = vmax.xlane.f32.xlu0 %v424
    %v426 = vpop.xlane.xlu0 %425
    %v427 = vsub.f32 %v423, %v426
    %v428 = vmul.f32 %v427, 1.442695
    %v429 = vpow.pop %v428
    %v430 = vsel %vm284, %v429, 0.0
    %431 = vadd.xlane.f32.xlu0 %v430
    %v432 = vpop.xlane.xlu0 %431
    %v433 = vrcp.pop %v432
    %v434 = vmul.f32 %v429, %v433
    %435 = vrot.lane.b32.xlu0 %v251, 64
    %v436 = vpop.permute.xlu0 %435
    %v439 = vsel %vm284, %v434, 0
    %441 = vmatpush.msra.mxu0 0.0
    %442 = vmatpush.msra.mxu0 0.0
    %443 = vmatpush.msra.mxu0 0.0
    %444 = vmatpush.msra.mxu0 0.0
    %445 = vmatpush.msra.mxu0 0.0
    %446 = vmatpush.msra.mxu0 0.0
    %447 = vmatpush.msra.mxu0 0.0
    %448 = vmatpush.msra.mxu0 0.0
    %449 = vmatpush.msra.mxu0 0.0
    %450 = vmatpush.msra.mxu0 0.0
    %451 = vmatpush.msra.mxu0 0.0
    %452 = vmatpush.msra.mxu0 0.0
    %453 = vmatpush.msra.mxu0 0.0
    %454 = vmatpush.msra.mxu0 0.0
    %455 = vmatpush.msra.mxu0 0.0
    %456 = vmatpush.msra.mxu0 %v436
    %457 = vmatmul.f32.gmra.mxu0 %v439
    %v458 = vpop.f32.mrf.mxu0
    %v459 = vadd.f32 0.0, %v458
    %460 = vdwg.mxu0
    %461 = vrot.lane.b32.xlu0 %v251, 112
    %v462 = vpop.permute.xlu0 %461
    %463 = vrot.lane.b32.xlu0 %v251, 80
    %v464 = vpop.permute.xlu0 %463
    %v465 = vsel %vm256, %v462, 0
    %v467 = vsel %vm256, %v464, 0
    %469 = vmatpush.xpose.msra.mxu0 0.0
    %470 = vmatpush.xpose.msra.mxu0 0.0
    %471 = vmatpush.xpose.msra.mxu0 0.0
    %472 = vmatpush.xpose.msra.mxu0 0.0
    %473 = vmatpush.xpose.msra.mxu0 0.0
    %474 = vmatpush.xpose.msra.mxu0 0.0
    %475 = vmatpush.xpose.msra.mxu0 0.0
    %476 = vmatpush.xpose.msra.mxu0 0.0
    %477 = vmatpush.xpose.msra.mxu0 0.0
    %478 = vmatpush.xpose.msra.mxu0 0.0
    %479 = vmatpush.xpose.msra.mxu0 0.0
    %480 = vmatpush.xpose.msra.mxu0 0.0
    %481 = vmatpush.xpose.msra.mxu0 0.0
    %482 = vmatpush.xpose.msra.mxu0 0.0
    %483 = vmatpush.xpose.msra.mxu0 0.0
    %484 = vmatpush.xpose.msra.mxu0 %v467
    %485 = vmatmul.f32.gmra.mxu0 %v465
    %v486 = vpop.f32.mrf.mxu0
    %v487 = vadd.f32 0.0, %v486
    %488 = vdwg.mxu0
    %v489 = vmul.f32 %v487, 0.25
    %v490 = vsel %vm422, %v489, -1e+09
    %v491 = vsel %vm284, %v490, -inf
    %492 = vmax.xlane.f32.xlu0 %v491
    %v493 = vpop.xlane.xlu0 %492
    %v494 = vsub.f32 %v490, %v493
    %v495 = vmul.f32 %v494, 1.442695
    %v496 = vpow.pop %v495
    %v497 = vsel %vm284, %v496, 0.0
    %498 = vadd.xlane.f32.xlu0 %v497
    %v499 = vpop.xlane.xlu0 %498
    %v500 = vrcp.pop %v499
    %v501 = vmul.f32 %v496, %v500
    %502 = vrot.lane.b32.xlu0 %v251, 48
    %v503 = vpop.permute.xlu0 %502
    %v506 = vsel %vm284, %v501, 0
    %508 = vmatpush.msra.mxu0 0.0
    %509 = vmatpush.msra.mxu0 0.0
    %510 = vmatpush.msra.mxu0 0.0
    %511 = vmatpush.msra.mxu0 0.0
    %512 = vmatpush.msra.mxu0 0.0
    %513 = vmatpush.msra.mxu0 0.0
    %514 = vmatpush.msra.mxu0 0.0
    %515 = vmatpush.msra.mxu0 0.0
    %516 = vmatpush.msra.mxu0 0.0
    %517 = vmatpush.msra.mxu0 0.0
    %518 = vmatpush.msra.mxu0 0.0
    %519 = vmatpush.msra.mxu0 0.0
    %520 = vmatpush.msra.mxu0 0.0
    %521 = vmatpush.msra.mxu0 0.0
    %522 = vmatpush.msra.mxu0 0.0
    %523 = vmatpush.msra.mxu0 %v503
    %524 = vmatmul.f32.gmra.mxu0 %v506
    %v525 = vpop.f32.mrf.mxu0
    %v526 = vadd.f32 0.0, %v525
    %527 = vdwg.mxu0
    %529 = vrot.lane.b32.xlu0 %v526, 16
    %v530 = vpop.permute.xlu0 %529
    %v532 = vsel %vm256, %v459, %v530
    %v533 = vld [vmem:[%s17] sm:$0xff]
    %v534 = vld [vmem:[%s17 + $0x8] sm:$0xff]
    %v535 = vld [vmem:[%s17 + $0x10] sm:$0xff]
    %v536 = vld [vmem:[%s17 + $0x18] sm:$0xff]
    %v537 = vld [vmem:[%s19] sm:$0x1]
    %v539 = vperm.slane %v537, 0
    %v542 = vsel %vm158, %v393, 0
    %v545 = vsel %vm158, %v532, 0
    %547 = vmatpush.msra.mxu0 0.0
    %548 = vmatpush.msra.mxu0 0.0
    %549 = vmatpush.msra.mxu0 0.0
    %550 = vmatpush.msra.mxu0 0.0
    %551 = vmatpush.msra.mxu0 0.0
    %552 = vmatpush.msra.mxu0 0.0
    %553 = vmatpush.msra.mxu0 0.0
    %554 = vmatpush.msra.mxu0 0.0
    %555 = vmatpush.msra.mxu0 0.0
    %556 = vmatpush.msra.mxu0 0.0
    %557 = vmatpush.msra.mxu0 0.0
    %558 = vmatpush.msra.mxu0 0.0
    %559 = vmatpush.msra.mxu0 %v536
    %560 = vmatpush.msra.mxu0 %v535
    %561 = vmatpush.msra.mxu0 %v534
    %562 = vmatpush.msra.mxu0 %v533
    %563 = vmatmul.f32.gmra.mxu0 %v542
    %v564 = vpop.f32.mrf.mxu0
    %v565 = vadd.f32 %v539, %v564
    %566 = vmatmul.f32.gmra.mxu0 %v545
    %v567 = vpop.f32.mrf.mxu0
    %v568 = vadd.f32 %v539, %v567
    %569 = vdwg.mxu0
    %v570 = vadd.f32 %v155, %v565
    %v571 = vadd.f32 %v156, %v568
    %v572 = vld [vmem:[%s21] sm:$0x3]
    %v573 = vsel %vm158, %v570, 0.0
    %574 = vadd.xlane.f32.xlu0 %v573
    %v575 = vpop.xlane.xlu0 %574
    %v576 = vsel %vm158, %v571, 0.0
    %577 = vadd.xlane.f32.xlu0 %v576
    %v578 = vpop.xlane.xlu0 %577
    %v579 = vmul.f32 %v575, %v171
    %v580 = vmul.f32 %v578, %v171
    %v581 = vsub.f32 %v570, %v579
    %v582 = vsub.f32 %v571, %v580
    %v583 = vmul.f32 %v581, %v581
    %v584 = vmul.f32 %v582, %v582
    %v585 = vsel %vm158, %v583, 0.0
    %586 = vadd.xlane.f32.xlu0 %v585
    %v587 = vpop.xlane.xlu0 %586
    %v588 = vsel %vm158, %v584, 0.0
    %589 = vadd.xlane.f32.xlu0 %v588
    %v590 = vpop.xlane.xlu0 %589
    %v591 = vmul.f32 %v587, %v171
    %v592 = vmul.f32 %v590, %v171
    %v593 = vadd.f32 %v591, 1e-06
    %v594 = vadd.f32 %v592, 1e-06
    %v595 = vrsqrt.pop %v593
    %v596 = vmul.f32 %v595, %v593
    %v597 = vmul.f32 %v596, %v595
    %v598 = vmul.f32 0.5, %v597
    %v599 = vsub.f32 1.5, %v598
    %v600 = vmul.f32 %v595, %v599
    %vm601 = vweird.f32 %v593
    %vm602 = vweird.f32 %v595
    %vm603 = vmor %vm601, %vm602
    %v604 = vsel %vm603, %v595, %v600
    %v605 = vrsqrt.pop %v594
    %v606 = vmul.f32 %v605, %v594
    %v607 = vmul.f32 %v606, %v605
    %v608 = vmul.f32 0.5, %v607
    %v609 = vsub.f32 1.5, %v608
    %v610 = vmul.f32 %v605, %v609
    %vm611 = vweird.f32 %v594
    %vm612 = vweird.f32 %v605
    %vm613 = vmor %vm611, %vm612
    %v614 = vsel %vm613, %v605, %v610
    %v615 = vmul.f32 %v581, %v604
    %v616 = vmul.f32 %v582, %v614
    %v617 = vperm.slane %v572, 0
    %v618 = vmul.f32 %v615, %v617
    %v619 = vmul.f32 %v616, %v617
    %v620 = vperm.slane %v572, 1
    %v621 = vadd.f32 %v618, %v620
    %v622 = vadd.f32 %v619, %v620
    %v623 = vld [vmem:[%s23] sm:$0xff]
    %v624 = vld [vmem:[%s23 + $0x8] sm:$0xff]
    %v625 = vld [vmem:[%s23 + $0x10] sm:$0xff]
    %v626 = vld [vmem:[%s23 + $0x18] sm:$0xff]
    %v627 = vld [vmem:[%s25] sm:$0x1]
    %v629 = vperm.slane %v627, 0
    %v632 = vsel %vm158, %v621, 0
    %v635 = vsel %vm158, %v622, 0
    %637 = vmatpush.msra.mxu0 0.0
    %638 = vmatpush.msra.mxu0 0.0
    %639 = vmatpush.msra.mxu0 0.0
    %640 = vmatpush.msra.mxu0 0.0
    %641 = vmatpush.msra.mxu0 0.0
    %642 = vmatpush.msra.mxu0 0.0
    %643 = vmatpush.msra.mxu0 0.0
    %644 = vmatpush.msra.mxu0 0.0
    %645 = vmatpush.msra.mxu0 0.0
    %646 = vmatpush.msra.mxu0 0.0
    %647 = vmatpush.msra.mxu0 0.0
    %648 = vmatpush.msra.mxu0 0.0
    %649 = vmatpush.msra.mxu0 %v626
    %650 = vmatpush.msra.mxu0 %v625
    %651 = vmatpush.msra.mxu0 %v624
    %652 = vmatpush.msra.mxu0 %v623
    %653 = vmatmul.f32.gmra.mxu0 %v632
    %v654 = vpop.f32.mrf.mxu0
    %v655 = vadd.f32 %v629, %v654
    %656 = vmatmul.f32.gmra.mxu0 %v635
    %v657 = vpop.f32.mrf.mxu0
    %v658 = vadd.f32 %v629, %v657
    %659 = vdwg.mxu0
    %v660 = vmax.f32 %v655, 0.0
    %v661 = vmax.f32 %v658, 0.0
    %v662 = vld [vmem:[%s27] sm:$0xff]
    %v663 = vld [vmem:[%s27 + $0x8] sm:$0xff]
    %v664 = vld [vmem:[%s27 + $0x10] sm:$0xff]
    %v665 = vld [vmem:[%s27 + $0x18] sm:$0xff]
    %v666 = vld [vmem:[%s27 + $0x20] sm:$0xff]
    %v667 = vld [vmem:[%s27 + $0x28] sm:$0xff]
    %v668 = vld [vmem:[%s27 + $0x30] sm:$0xff]
    %v669 = vld [vmem:[%s27 + $0x38] sm:$0xff]
    %v670 = vld [vmem:[%s29] sm:$0x1]
    %v672 = vperm.slane %v670, 0
    %vm674 = vcmask 523264
    %v676 = vsel %vm674, %v660, 0
    %v679 = vsel %vm674, %v661, 0
    %681 = vmatpush.msra.mxu0 0.0
    %682 = vmatpush.msra.mxu0 0.0
    %683 = vmatpush.msra.mxu0 0.0
    %684 = vmatpush.msra.mxu0 0.0
    %685 = vmatpush.msra.mxu0 0.0
    %686 = vmatpush.msra.mxu0 0.0
    %687 = vmatpush.msra.mxu0 0.0
    %688 = vmatpush.msra.mxu0 0.0
    %689 = vmatpush.msra.mxu0 %v669
    %690 = vmatpush.msra.mxu0 %v668
    %691 = vmatpush.msra.mxu0 %v667
    %692 = vmatpush.msra.mxu0 %v666
    %693 = vmatpush.msra.mxu0 %v665
    %694 = vmatpush.msra.mxu0 %v664
    %695 = vmatpush.msra.mxu0 %v663
    %696 = vmatpush.msra.mxu0 %v662
    %697 = vmatmul.f32.gmra.mxu0 %v676
    %v698 = vpop.f32.mrf.mxu0
    %v699 = vadd.f32 %v672, %v698
    %700 = vmatmul.f32.gmra.mxu0 %v679
    %v701 = vpop.f32.mrf.mxu0
    %v702 = vadd.f32 %v672, %v701
    %703 = vdwg.mxu0
    %v704 = vadd.f32 %v570, %v699
    %v705 = vadd.f32 %v571, %v702
    %v706 = vld [vmem:[%s31] sm:$0x3]
    %v707 = vsel %vm158, %v704, 0.0
    %708 = vadd.xlane.f32.xlu0 %v707
    %v709 = vpop.xlane.xlu0 %708
    %v710 = vsel %vm158, %v705, 0.0
    %711 = vadd.xlane.f32.xlu0 %v710
    %v712 = vpop.xlane.xlu0 %711
    %v713 = vmul.f32 %v709, %v171
    %v714 = vmul.f32 %v712, %v171
    %v715 = vsub.f32 %v704, %v713
    %v716 = vsub.f32 %v705, %v714
    %v717 = vmul.f32 %v715, %v715
    %v718 = vmul.f32 %v716, %v716
    %v719 = vsel %vm158, %v717, 0.0
    %720 = vadd.xlane.f32.xlu0 %v719
    %v721 = vpop.xlane.xlu0 %720
    %v722 = vsel %vm158, %v718, 0.0
    %723 = vadd.xlane.f32.xlu0 %v722
    %v724 = vpop.xlane.xlu0 %723
    %v725 = vmul.f32 %v721, %v171
    %v726 = vmul.f32 %v724, %v171
    %v727 = vadd.f32 %v725, 1e-06
    %v728 = vadd.f32 %v726, 1e-06
    %v729 = vrsqrt.pop %v727
    %v730 = vmul.f32 %v729, %v727
    %v731 = vmul.f32 %v730, %v729
    %v732 = vmul.f32 0.5, %v731
    %v733 = vsub.f32 1.5, %v732
    %v734 = vmul.f32 %v729, %v733
    %vm735 = vweird.f32 %v727
    %vm736 = vweird.f32 %v729
    %vm737 = vmor %vm735, %vm736
    %v738 = vsel %vm737, %v729, %v734
    %v739 = vrsqrt.pop %v728
    %v740 = vmul.f32 %v739, %v728
    %v741 = vmul.f32 %v740, %v739
    %v742 = vmul.f32 0.5, %v741
    %v743 = vsub.f32 1.5, %v742
    %v744 = vmul.f32 %v739, %v743
    %vm745 = vweird.f32 %v728
    %vm746 = vweird.f32 %v739
    %vm747 = vmor %vm745, %vm746
    %v748 = vsel %vm747, %v739, %v744
    %v749 = vmul.f32 %v715, %v738
    %v750 = vmul.f32 %v716, %v748
    %v751 = vperm.slane %v706, 0
    %v752 = vmul.f32 %v749, %v751
    %v753 = vmul.f32 %v750, %v751
    %v754 = vperm.slane %v706, 1
    %v755 = vadd.f32 %v752, %v754
    %v756 = vadd.f32 %v753, %v754
    %v757 = vld [vmem:[%s3] sm:$0xff]
    %v758 = vld [vmem:[%s3 + $0x8] sm:$0xff]
    %v759 = vld [vmem:[%s33] sm:$0xff]
    %v760 = vld [vmem:[%s33 + $0x8] sm:$0xff]
    %v761 = vld [vmem:[%s35] sm:$0x1]
    %v763 = vperm.slane %v761, 0
    %v766 = vsel %vm256, %v757, 0
    %v769 = vsel %vm256, %v758, 0
    %771 = vmatpush.msra.mxu0 0.0
    %772 = vmatpush.msra.mxu0 0.0
    %773 = vmatpush.msra.mxu0 0.0
    %774 = vmatpush.msra.mxu0 0.0
    %775 = vmatpush.msra.mxu0 0.0
    %776 = vmatpush.msra.mxu0 0.0
    %777 = vmatpush.msra.mxu0 0.0
    %778 = vmatpush.msra.mxu0 0.0
    %779 = vmatpush.msra.mxu0 0.0
    %780 = vmatpush.msra.mxu0 0.0
    %781 = vmatpush.msra.mxu0 0.0
    %782 = vmatpush.msra.mxu0 0.0
    %783 = vmatpush.msra.mxu0 0.0
    %784 = vmatpush.msra.mxu0 0.0
    %785 = vmatpush.msra.mxu0 %v760
    %786 = vmatpush.msra.mxu0 %v759
    %787 = vmatmul.f32.gmra.mxu0 %v766
    %v788 = vpop.f32.mrf.mxu0
    %v789 = vadd.f32 %v763, %v788
    %790 = vmatmul.f32.gmra.mxu0 %v769
    %v791 = vpop.f32.mrf.mxu0
    %v792 = vadd.f32 %v763, %v791
    %793 = vdwg.mxu0
    %v794 = vmul.f32 %v789, 5.656854
    %v795 = vmul.f32 %v792, 5.656854
    %v796 = vld [vmem:[%s5] sm:$0xff]
    %v797 = vld [vmem:[%s5 + $0x8] sm:$0xff]
    %v798 = vadd.f32 %v794, %v796
    %v799 = vadd.f32 %v795, %v797
    %v800 = vld [vmem:[%s37] sm:$0x3]
    %v801 = vsel %vm158, %v798, 0.0
    %802 = vadd.xlane.f32.xlu0 %v801
    %v803 = vpop.xlane.xlu0 %802
    %v804 = vsel %vm158, %v799, 0.0
    %805 = vadd.xlane.f32.xlu0 %v804
    %v806 = vpop.xlane.xlu0 %805
    %v807 = vmul.f32 %v803, %v171
    %v808 = vmul.f32 %v806, %v171
    %v809 = vsub.f32 %v798, %v807
    %v810 = vsub.f32 %v799, %v808
    %v811 = vmul.f32 %v809, %v809
    %v812 = vmul.f32 %v810, %v810
    %v813 = vsel %vm158, %v811, 0.0
    %814 = vadd.xlane.f32.xlu0 %v813
    %v815 = vpop.xlane.xlu0 %814
    %v816 = vsel %vm158, %v812, 0.0
    %817 = vadd.xlane.f32.xlu0 %v816
    %v818 = vpop.xlane.xlu0 %817
    %v819 = vmul.f32 %v815, %v171
    %v820 = vmul.f32 %v818, %v171
    %v821 = vadd.f32 %v819, 1e-06
    %v822 = vadd.f32 %v820, 1e-06
    %v823 = vrsqrt.pop %v821
    %v824 = vmul.f32 %v823, %v821
    %v825 = vmul.f32 %v824, %v823
    %v826 = vmul.f32 0.5, %v825
    %v827 = vsub.f32 1.5, %v826
    %v828 = vmul.f32 %v823, %v827
    %vm829 = vweird.f32 %v821
    %vm830 = vweird.f32 %v823
    %vm831 = vmor %vm829, %vm830
    %v832 = vsel %vm831, %v823, %v828
    %v833 = vrsqrt.pop %v822
    %v834 = vmul.f32 %v833, %v822
    %v835 = vmul.f32 %v834, %v833
    %v836 = vmul.f32 0.5, %v835
    %v837 = vsub.f32 1.5, %v836
    %v838 = vmul.f32 %v833, %v837
    %vm839 = vweird.f32 %v822
    %vm840 = vweird.f32 %v833
    %vm841 = vmor %vm839, %vm840
    %v842 = vsel %vm841, %v833, %v838
    %v843 = vmul.f32 %v809, %v832
    %v844 = vmul.f32 %v810, %v842
    %v845 = vperm.slane %v800, 0
    %v846 = vmul.f32 %v843, %v845
    %v847 = vmul.f32 %v844, %v845
    %v848 = vperm.slane %v800, 1
    %v849 = vadd.f32 %v846, %v848
    %v850 = vadd.f32 %v847, %v848
    %v851 = vld [vmem:[%s39] sm:$0xff]
    %v852 = vld [vmem:[%s39 + $0x8] sm:$0xff]
    %v853 = vld [vmem:[%s39 + $0x10] sm:$0xff]
    %v854 = vld [vmem:[%s39 + $0x18] sm:$0xff]
    %v855 = vld [vmem:[%s41] sm:$0x1]
    %v857 = vperm.slane %v855, 0
    %v860 = vsel %vm158, %v849, 0
    %v863 = vsel %vm158, %v850, 0
    %865 = vmatpush.msra.mxu0 0.0
    %866 = vmatpush.msra.mxu0 0.0
    %867 = vmatpush.msra.mxu0 0.0
    %868 = vmatpush.msra.mxu0 0.0
    %869 = vmatpush.msra.mxu0 0.0
    %870 = vmatpush.msra.mxu0 0.0
    %871 = vmatpush.msra.mxu0 0.0
    %872 = vmatpush.msra.mxu0 0.0
    %873 = vmatpush.msra.mxu0 0.0
    %874 = vmatpush.msra.mxu0 0.0
    %875 = vmatpush.msra.mxu0 0.0
    %876 = vmatpush.msra.mxu0 0.0
    %877 = vmatpush.msra.mxu0 %v854
    %878 = vmatpush.msra.mxu0 %v853
    %879 = vmatpush.msra.mxu0 %v852
    %880 = vmatpush.msra.mxu0 %v851
    %881 = vmatmul.f32.gmra.mxu0 %v860
    %v882 = vpop.f32.mrf.mxu0
    %v883 = vadd.f32 %v857, %v882
    %884 = vmatmul.f32.gmra.mxu0 %v863
    %v885 = vpop.f32.mrf.mxu0
    %v886 = vadd.f32 %v857, %v885
    %887 = vdwg.mxu0
    %889 = vrot.lane.b32.xlu0 %v883, 96
    %v890 = vpop.permute.xlu0 %889
    %v891 = vsel %vm256, %v883, 0
    %v893 = vsel %vm256, %v890, 0
    %895 = vmatpush.xpose.msra.mxu0 0.0
    %896 = vmatpush.xpose.msra.mxu0 0.0
    %897 = vmatpush.xpose.msra.mxu0 0.0
    %898 = vmatpush.xpose.msra.mxu0 0.0
    %899 = vmatpush.xpose.msra.mxu0 0.0
    %900 = vmatpush.xpose.msra.mxu0 0.0
    %901 = vmatpush.xpose.msra.mxu0 0.0
    %902 = vmatpush.xpose.msra.mxu0 0.0
    %903 = vmatpush.xpose.msra.mxu0 0.0
    %904 = vmatpush.xpose.msra.mxu0 0.0
    %905 = vmatpush.xpose.msra.mxu0 0.0
    %906 = vmatpush.xpose.msra.mxu0 0.0
    %907 = vmatpush.xpose.msra.mxu0 0.0
    %908 = vmatpush.xpose.msra.mxu0 0.0
    %909 = vmatpush.xpose.msra.mxu0 0.0
    %910 = vmatpush.xpose.msra.mxu0 %v893
    %911 = vmatmul.f32.gmra.mxu0 %v891
    %v912 = vpop.f32.mrf.mxu0
    %v913 = vadd.f32 0.0, %v912
    %914 = vdwg.mxu0
    %v915 = vmul.f32 %v913, 0.25
    %vm916 = vcmp.gt.f32.partialorder %v152, 0.0
    %v917 = vsel %vm916, %v915, -1e+09
    %v918 = vsel %vm284, %v917, -inf
    %919 = vmax.xlane.f32.xlu0 %v918
    %v920 = vpop.xlane.xlu0 %919
    %v921 = vsub.f32 %v917, %v920
    %v922 = vmul.f32 %v921, 1.442695
    %v923 = vpow.pop %v922
    %v924 = vsel %vm284, %v923, 0.0
    %925 = vadd.xlane.f32.xlu0 %v924
    %v926 = vpop.xlane.xlu0 %925
    %v927 = vrcp.pop %v926
    %v928 = vmul.f32 %v923, %v927
    %929 = vrot.lane.b32.xlu0 %v883, 64
    %v930 = vpop.permute.xlu0 %929
    %v933 = vsel %vm284, %v928, 0
    %935 = vmatpush.msra.mxu0 0.0
    %936 = vmatpush.msra.mxu0 0.0
    %937 = vmatpush.msra.mxu0 0.0
    %938 = vmatpush.msra.mxu0 0.0
    %939 = vmatpush.msra.mxu0 0.0
    %940 = vmatpush.msra.mxu0 0.0
    %941 = vmatpush.msra.mxu0 0.0
    %942 = vmatpush.msra.mxu0 0.0
    %943 = vmatpush.msra.mxu0 0.0
    %944 = vmatpush.msra.mxu0 0.0
    %945 = vmatpush.msra.mxu0 0.0
    %946 = vmatpush.msra.mxu0 0.0
    %947 = vmatpush.msra.mxu0 0.0
    %948 = vmatpush.msra.mxu0 0.0
    %949 = vmatpush.msra.mxu0 0.0
    %950 = vmatpush.msra.mxu0 %v930
    %951 = vmatmul.f32.gmra.mxu0 %v933
    %v952 = vpop.f32.mrf.mxu0
    %v953 = vadd.f32 0.0, %v952
    %954 = vdwg.mxu0
    %955 = vrot.lane.b32.xlu0 %v883, 112
    %v956 = vpop.permute.xlu0 %955
    %957 = vrot.lane.b32.xlu0 %v883, 80
    %v958 = vpop.permute.xlu0 %957
    %v959 = vsel %vm256, %v956, 0
    %v961 = vsel %vm256, %v958, 0
    %963 = vmatpush.xpose.msra.mxu0 0.0
    %964 = vmatpush.xpose.msra.mxu0 0.0
    %965 = vmatpush.xpose.msra.mxu0 0.0
    %966 = vmatpush.xpose.msra.mxu0 0.0
    %967 = vmatpush.xpose.msra.mxu0 0.0
    %968 = vmatpush.xpose.msra.mxu0 0.0
    %969 = vmatpush.xpose.msra.mxu0 0.0
    %970 = vmatpush.xpose.msra.mxu0 0.0
    %971 = vmatpush.xpose.msra.mxu0 0.0
    %972 = vmatpush.xpose.msra.mxu0 0.0
    %973 = vmatpush.xpose.msra.mxu0 0.0
    %974 = vmatpush.xpose.msra.mxu0 0.0
    %975 = vmatpush.xpose.msra.mxu0 0.0
    %976 = vmatpush.xpose.msra.mxu0 0.0
    %977 = vmatpush.xpose.msra.mxu0 0.0
    %978 = vmatpush.xpose.msra.mxu0 %v961
    %979 = vmatmul.f32.gmra.mxu0 %v959
    %v980 = vpop.f32.mrf.mxu0
    %v981 = vadd.f32 0.0, %v980
    %982 = vdwg.mxu0
    %v983 = vmul.f32 %v981, 0.25
    %v984 = vsel %vm916, %v983, -1e+09
    %v985 = vsel %vm284, %v984, -inf
    %986 = vmax.xlane.f32.xlu0 %v985
    %v987 = vpop.xlane.xlu0 %986
    %v988 = vsub.f32 %v984, %v987
    %v989 = vmul.f32 %v988, 1.442695
    %v990 = vpow.pop %v989
    %v991 = vsel %vm284, %v990, 0.0
    %992 = vadd.xlane.f32.xlu0 %v991
    %v993 = vpop.xlane.xlu0 %992
    %v994 = vrcp.pop %v993
    %v995 = vmul.f32 %v990, %v994
    %996 = vrot.lane.b32.xlu0 %v883, 48
    %v997 = vpop.permute.xlu0 %996
    %v1000 = vsel %vm284, %v995, 0
    %1002 = vmatpush.msra.mxu0 0.0
    %1003 = vmatpush.msra.mxu0 0.0
    %1004 = vmatpush.msra.mxu0 0.0
    %1005 = vmatpush.msra.mxu0 0.0
    %1006 = vmatpush.msra.mxu0 0.0
    %1007 = vmatpush.msra.mxu0 0.0
    %1008 = vmatpush.msra.mxu0 0.0
    %1009 = vmatpush.msra.mxu0 0.0
    %1010 = vmatpush.msra.mxu0 0.0
    %1011 = vmatpush.msra.mxu0 0.0
    %1012 = vmatpush.msra.mxu0 0.0
    %1013 = vmatpush.msra.mxu0 0.0
    %1014 = vmatpush.msra.mxu0 0.0
    %1015 = vmatpush.msra.mxu0 0.0
    %1016 = vmatpush.msra.mxu0 0.0
    %1017 = vmatpush.msra.mxu0 %v997
    %1018 = vmatmul.f32.gmra.mxu0 %v1000
    %v1019 = vpop.f32.mrf.mxu0
    %v1020 = vadd.f32 0.0, %v1019
    %1021 = vdwg.mxu0
    %1023 = vrot.lane.b32.xlu0 %v1020, 16
    %v1024 = vpop.permute.xlu0 %1023
    %v1026 = vsel %vm256, %v953, %v1024
    %1028 = vrot.lane.b32.xlu0 %v886, 96
    %v1029 = vpop.permute.xlu0 %1028
    %v1030 = vsel %vm256, %v886, 0
    %v1032 = vsel %vm256, %v1029, 0
    %1034 = vmatpush.xpose.msra.mxu0 0.0
    %1035 = vmatpush.xpose.msra.mxu0 0.0
    %1036 = vmatpush.xpose.msra.mxu0 0.0
    %1037 = vmatpush.xpose.msra.mxu0 0.0
    %1038 = vmatpush.xpose.msra.mxu0 0.0
    %1039 = vmatpush.xpose.msra.mxu0 0.0
    %1040 = vmatpush.xpose.msra.mxu0 0.0
    %1041 = vmatpush.xpose.msra.mxu0 0.0
    %1042 = vmatpush.xpose.msra.mxu0 0.0
    %1043 = vmatpush.xpose.msra.mxu0 0.0
    %1044 = vmatpush.xpose.msra.mxu0 0.0
    %1045 = vmatpush.xpose.msra.mxu0 0.0
    %1046 = vmatpush.xpose.msra.mxu0 0.0
    %1047 = vmatpush.xpose.msra.mxu0 0.0
    %1048 = vmatpush.xpose.msra.mxu0 0.0
    %1049 = vmatpush.xpose.msra.mxu0 %v1032
    %1050 = vmatmul.f32.gmra.mxu0 %v1030
    %v1051 = vpop.f32.mrf.mxu0
    %v1052 = vadd.f32 0.0, %v1051
    %1053 = vdwg.mxu0
    %v1054 = vmul.f32 %v1052, 0.25
    %v1055 = vsel %vm916, %v1054, -1e+09
    %v1056 = vsel %vm284, %v1055, -inf
    %1057 = vmax.xlane.f32.xlu0 %v1056
    %v1058 = vpop.xlane.xlu0 %1057
    %v1059 = vsub.f32 %v1055, %v1058
    %v1060 = vmul.f32 %v1059, 1.442695
    %v1061 = vpow.pop %v1060
    %v1062 = vsel %vm284, %v1061, 0.0
    %1063 = vadd.xlane.f32.xlu0 %v1062
    %v1064 = vpop.xlane.xlu0 %1063
    %v1065 = vrcp.pop %v1064
    %v1066 = vmul.f32 %v1061, %v1065
    %1067 = vrot.lane.b32.xlu0 %v886, 64
    %v1068 = vpop.permute.xlu0 %1067
    %v1071 = vsel %vm284, %v1066, 0
    %1073 = vmatpush.msra.mxu0 0.0
    %1074 = vmatpush.msra.mxu0 0.0
    %1075 = vmatpush.msra.mxu0 0.0
    %1076 = vmatpush.msra.mxu0 0.0
    %1077 = vmatpush.msra.mxu0 0.0
    %1078 = vmatpush.msra.mxu0 0.0
    %1079 = vmatpush.msra.mxu0 0.0
    %1080 = vmatpush.msra.mxu0 0.0
    %1081 = vmatpush.msra.mxu0 0.0
    %1082 = vmatpush.msra.mxu0 0.0
    %1083 = vmatpush.msra.mxu0 0.0
    %1084 = vmatpush.msra.mxu0 0.0
    %1085 = vmatpush.msra.mxu0 0.0
    %1086 = vmatpush.msra.mxu0 0.0
    %1087 = vmatpush.msra.mxu0 0.0
    %1088 = vmatpush.msra.mxu0 %v1068
    %1089 = vmatmul.f32.gmra.mxu0 %v1071
    %v1090 = vpop.f32.mrf.mxu0
    %v1091 = vadd.f32 0.0, %v1090
    %1092 = vdwg.mxu0
    %1093 = vrot.lane.b32.xlu0 %v886, 112
    %v1094 = vpop.permute.xlu0 %1093
    %1095 = vrot.lane.b32.xlu0 %v886, 80
    %v1096 = vpop.permute.xlu0 %1095
    %v1097 = vsel %vm256, %v1094, 0
    %v1099 = vsel %vm256, %v1096, 0
    %1101 = vmatpush.xpose.msra.mxu0 0.0
    %1102 = vmatpush.xpose.msra.mxu0 0.0
    %1103 = vmatpush.xpose.msra.mxu0 0.0
    %1104 = vmatpush.xpose.msra.mxu0 0.0
    %1105 = vmatpush.xpose.msra.mxu0 0.0
    %1106 = vmatpush.xpose.msra.mxu0 0.0
    %1107 = vmatpush.xpose.msra.mxu0 0.0
    %1108 = vmatpush.xpose.msra.mxu0 0.0
    %1109 = vmatpush.xpose.msra.mxu0 0.0
    %1110 = vmatpush.xpose.msra.mxu0 0.0
    %1111 = vmatpush.xpose.msra.mxu0 0.0
    %1112 = vmatpush.xpose.msra.mxu0 0.0
    %1113 = vmatpush.xpose.msra.mxu0 0.0
    %1114 = vmatpush.xpose.msra.mxu0 0.0
    %1115 = vmatpush.xpose.msra.mxu0 0.0
    %1116 = vmatpush.xpose.msra.mxu0 %v1099
    %1117 = vmatmul.f32.gmra.mxu0 %v1097
    %v1118 = vpop.f32.mrf.mxu0
    %v1119 = vadd.f32 0.0, %v1118
    %1120 = vdwg.mxu0
    %v1121 = vmul.f32 %v1119, 0.25
    %v1122 = vsel %vm916, %v1121, -1e+09
    %v1123 = vsel %vm284, %v1122, -inf
    %1124 = vmax.xlane.f32.xlu0 %v1123
    %v1125 = vpop.xlane.xlu0 %1124
    %v1126 = vsub.f32 %v1122, %v1125
    %v1127 = vmul.f32 %v1126, 1.442695
    %v1128 = vpow.pop %v1127
    %v1129 = vsel %vm284, %v1128, 0.0
    %1130 = vadd.xlane.f32.xlu0 %v1129
    %v1131 = vpop.xlane.xlu0 %1130
    %v1132 = vrcp.pop %v1131
    %v1133 = vmul.f32 %v1128, %v1132
    %1134 = vrot.lane.b32.xlu0 %v886, 48
    %v1135 = vpop.permute.xlu0 %1134
    %v1138 = vsel %vm284, %v1133, 0
    %1140 = vmatpush.msra.mxu0 0.0
    %1141 = vmatpush.msra.mxu0 0.0
    %1142 = vmatpush.msra.mxu0 0.0
    %1143 = vmatpush.msra.mxu0 0.0
    %1144 = vmatpush.msra.mxu0 0.0
    %1145 = vmatpush.msra.mxu0 0.0
    %1146 = vmatpush.msra.mxu0 0.0
    %1147 = vmatpush.msra.mxu0 0.0
    %1148 = vmatpush.msra.mxu0 0.0
    %1149 = vmatpush.msra.mxu0 0.0
    %1150 = vmatpush.msra.mxu0 0.0
    %1151 = vmatpush.msra.mxu0 0.0
    %1152 = vmatpush.msra.mxu0 0.0
    %1153 = vmatpush.msra.mxu0 0.0
    %1154 = vmatpush.msra.mxu0 0.0
    %1155 = vmatpush.msra.mxu0 %v1135
    %1156 = vmatmul.f32.gmra.mxu0 %v1138
    %v1157 = vpop.f32.mrf.mxu0
    %v1158 = vadd.f32 0.0, %v1157
    %1159 = vdwg.mxu0
    %1161 = vrot.lane.b32.xlu0 %v1158, 16
    %v1162 = vpop.permute.xlu0 %1161
    %v1164 = vsel %vm256, %v1091, %v1162
    %v1165 = vld [vmem:[%s43] sm:$0xff]
    %v1166 = vld [vmem:[%s43 + $0x8] sm:$0xff]
    %v1167 = vld [vmem:[%s43 + $0x10] sm:$0xff]
    %v1168 = vld [vmem:[%s43 + $0x18] sm:$0xff]
    %v1169 = vld [vmem:[%s45] sm:$0x1]
    %v1171 = vperm.slane %v1169, 0
    %v1174 = vsel %vm158, %v1026, 0
    %v1177 = vsel %vm158, %v1164, 0
    %1179 = vmatpush.msra.mxu0 0.0
    %1180 = vmatpush.msra.mxu0 0.0
    %1181 = vmatpush.msra.mxu0 0.0
    %1182 = vmatpush.msra.mxu0 0.0
    %1183 = vmatpush.msra.mxu0 0.0
    %1184 = vmatpush.msra.mxu0 0.0
    %1185 = vmatpush.msra.mxu0 0.0
    %1186 = vmatpush.msra.mxu0 0.0
    %1187 = vmatpush.msra.mxu0 0.0
    %1188 = vmatpush.msra.mxu0 0.0
    %1189 = vmatpush.msra.mxu0 0.0
    %1190 = vmatpush.msra.mxu0 0.0
    %1191 = vmatpush.msra.mxu0 %v1168
    %1192 = vmatpush.msra.mxu0 %v1167
    %1193 = vmatpush.msra.mxu0 %v1166
    %1194 = vmatpush.msra.mxu0 %v1165
    %1195 = vmatmul.f32.gmra.mxu0 %v1174
    %v1196 = vpop.f32.mrf.mxu0
    %v1197 = vadd.f32 %v1171, %v1196
    %1198 = vmatmul.f32.gmra.mxu0 %v1177
    %v1199 = vpop.f32.mrf.mxu0
    %v1200 = vadd.f32 %v1171, %v1199
    %1201 = vdwg.mxu0
    %v1202 = vadd.f32 %v798, %v1197
    %v1203 = vadd.f32 %v799, %v1200
    %v1204 = vld [vmem:[%s47] sm:$0x3]
    %v1205 = vsel %vm158, %v1202, 0.0
    %1206 = vadd.xlane.f32.xlu0 %v1205
    %v1207 = vpop.xlane.xlu0 %1206
    %v1208 = vsel %vm158, %v1203, 0.0
    %1209 = vadd.xlane.f32.xlu0 %v1208
    %v1210 = vpop.xlane.xlu0 %1209
    %v1211 = vmul.f32 %v1207, %v171
    %v1212 = vmul.f32 %v1210, %v171
    %v1213 = vsub.f32 %v1202, %v1211
    %v1214 = vsub.f32 %v1203, %v1212
    %v1215 = vmul.f32 %v1213, %v1213
    %v1216 = vmul.f32 %v1214, %v1214
    %v1217 = vsel %vm158, %v1215, 0.0
    %1218 = vadd.xlane.f32.xlu0 %v1217
    %v1219 = vpop.xlane.xlu0 %1218
    %v1220 = vsel %vm158, %v1216, 0.0
    %1221 = vadd.xlane.f32.xlu0 %v1220
    %v1222 = vpop.xlane.xlu0 %1221
    %v1223 = vmul.f32 %v1219, %v171
    %v1224 = vmul.f32 %v1222, %v171
    %v1225 = vadd.f32 %v1223, 1e-06
    %v1226 = vadd.f32 %v1224, 1e-06
    %v1227 = vrsqrt.pop %v1225
    %v1228 = vmul.f32 %v1227, %v1225
    %v1229 = vmul.f32 %v1228, %v1227
    %v1230 = vmul.f32 0.5, %v1229
    %v1231 = vsub.f32 1.5, %v1230
    %v1232 = vmul.f32 %v1227, %v1231
    %vm1233 = vweird.f32 %v1225
    %vm1234 = vweird.f32 %v1227
    %vm1235 = vmor %vm1233, %vm1234
    %v1236 = vsel %vm1235, %v1227, %v1232
    %v1237 = vrsqrt.pop %v1226
    %v1238 = vmul.f32 %v1237, %v1226
    %v1239 = vmul.f32 %v1238, %v1237
    %v1240 = vmul.f32 0.5, %v1239
    %v1241 = vsub.f32 1.5, %v1240
    %v1242 = vmul.f32 %v1237, %v1241
    %vm1243 = vweird.f32 %v1226
    %vm1244 = vweird.f32 %v1237
    %vm1245 = vmor %vm1243, %vm1244
    %v1246 = vsel %vm1245, %v1237, %v1242
    %v1247 = vmul.f32 %v1213, %v1236
    %v1248 = vmul.f32 %v1214, %v1246
    %v1249 = vperm.slane %v1204, 0
    %v1250 = vmul.f32 %v1247, %v1249
    %v1251 = vmul.f32 %v1248, %v1249
    %v1252 = vperm.slane %v1204, 1
    %v1253 = vadd.f32 %v1250, %v1252
    %v1254 = vadd.f32 %v1251, %v1252
    %v1255 = vld [vmem:[%s49] sm:$0xff]
    %v1256 = vld [vmem:[%s49 + $0x8] sm:$0xff]
    %v1257 = vld [vmem:[%s49 + $0x10] sm:$0xff]
    %v1258 = vld [vmem:[%s49 + $0x18] sm:$0xff]
    %v1259 = vld [vmem:[%s51] sm:$0x1]
    %v1261 = vperm.slane %v1259, 0
    %v1264 = vsel %vm158, %v1253, 0
    %v1267 = vsel %vm158, %v1254, 0
    %1269 = vmatpush.msra.mxu0 0.0
    %1270 = vmatpush.msra.mxu0 0.0
    %1271 = vmatpush.msra.mxu0 0.0
    %1272 = vmatpush.msra.mxu0 0.0
    %1273 = vmatpush.msra.mxu0 0.0
    %1274 = vmatpush.msra.mxu0 0.0
    %1275 = vmatpush.msra.mxu0 0.0
    %1276 = vmatpush.msra.mxu0 0.0
    %1277 = vmatpush.msra.mxu0 0.0
    %1278 = vmatpush.msra.mxu0 0.0
    %1279 = vmatpush.msra.mxu0 0.0
    %1280 = vmatpush.msra.mxu0 0.0
    %1281 = vmatpush.msra.mxu0 %v1258
    %1282 = vmatpush.msra.mxu0 %v1257
    %1283 = vmatpush.msra.mxu0 %v1256
    %1284 = vmatpush.msra.mxu0 %v1255
    %1285 = vmatmul.f32.gmra.mxu0 %v1264
    %v1286 = vpop.f32.mrf.mxu0
    %v1287 = vadd.f32 %v1261, %v1286
    %1288 = vmatmul.f32.gmra.mxu0 %v1267
    %v1289 = vpop.f32.mrf.mxu0
    %v1290 = vadd.f32 %v1261, %v1289
    %1291 = vdwg.mxu0
    %v1293 = vsel %vm158, %v755, 0
    %v1296 = vsel %vm158, %v756, 0
    %1298 = vmatpush.msra.mxu0 0.0
    %1299 = vmatpush.msra.mxu0 0.0
    %1300 = vmatpush.msra.mxu0 0.0
    %1301 = vmatpush.msra.mxu0 0.0
    %1302 = vmatpush.msra.mxu0 0.0
    %1303 = vmatpush.msra.mxu0 0.0
    %1304 = vmatpush.msra.mxu0 0.0
    %1305 = vmatpush.msra.mxu0 0.0
    %1306 = vmatpush.msra.mxu0 0.0
    %1307 = vmatpush.msra.mxu0 0.0
    %1308 = vmatpush.msra.mxu0 0.0
    %1309 = vmatpush.msra.mxu0 0.0
    %1310 = vmatpush.msra.mxu0 %v1258
    %1311 = vmatpush.msra.mxu0 %v1257
    %1312 = vmatpush.msra.mxu0 %v1256
    %1313 = vmatpush.msra.mxu0 %v1255
    %1314 = vmatmul.f32.gmra.mxu0 %v1293
    %v1315 = vpop.f32.mrf.mxu0
    %v1316 = vadd.f32 %v1261, %v1315
    %1317 = vmatmul.f32.gmra.mxu0 %v1296
    %v1318 = vpop.f32.mrf.mxu0
    %v1319 = vadd.f32 %v1261, %v1318
    %1320 = vdwg.mxu0
    %1322 = vrot.lane.b32.xlu0 %v1316, 96
    %v1323 = vpop.permute.xlu0 %1322
    %v1325 = vsel %vm256, %v1287, 0
    %v1327 = vsel %vm256, %v1323, 0
    %1329 = vmatpush.xpose.msra.mxu0 0.0
    %1330 = vmatpush.xpose.msra.mxu0 0.0
    %1331 = vmatpush.xpose.msra.mxu0 0.0
    %1332 = vmatpush.xpose.msra.mxu0 0.0
    %1333 = vmatpush.xpose.msra.mxu0 0.0
    %1334 = vmatpush.xpose.msra.mxu0 0.0
    %1335 = vmatpush.xpose.msra.mxu0 0.0
    %1336 = vmatpush.xpose.msra.mxu0 0.0
    %1337 = vmatpush.xpose.msra.mxu0 0.0
    %1338 = vmatpush.xpose.msra.mxu0 0.0
    %1339 = vmatpush.xpose.msra.mxu0 0.0
    %1340 = vmatpush.xpose.msra.mxu0 0.0
    %1341 = vmatpush.xpose.msra.mxu0 0.0
    %1342 = vmatpush.xpose.msra.mxu0 0.0
    %1343 = vmatpush.xpose.msra.mxu0 0.0
    %1344 = vmatpush.xpose.msra.mxu0 %v1327
    %1345 = vmatmul.f32.gmra.mxu0 %v1325
    %v1346 = vpop.f32.mrf.mxu0
    %v1347 = vadd.f32 0.0, %v1346
    %1348 = vdwg.mxu0
    %v1349 = vmul.f32 %v1347, 0.25
    %v1350 = vsel %vm282, %v1349, -1e+09
    %v1351 = vsel %vm284, %v1350, -inf
    %1352 = vmax.xlane.f32.xlu0 %v1351
    %v1353 = vpop.xlane.xlu0 %1352
    %v1354 = vsub.f32 %v1350, %v1353
    %v1355 = vmul.f32 %v1354, 1.442695
    %v1356 = vpow.pop %v1355
    %v1357 = vsel %vm284, %v1356, 0.0
    %1358 = vadd.xlane.f32.xlu0 %v1357
    %v1359 = vpop.xlane.xlu0 %1358
    %v1360 = vrcp.pop %v1359
    %v1361 = vmul.f32 %v1356, %v1360
    %1362 = vrot.lane.b32.xlu0 %v1316, 64
    %v1363 = vpop.permute.xlu0 %1362
    %v1366 = vsel %vm284, %v1361, 0
    %1368 = vmatpush.msra.mxu0 0.0
    %1369 = vmatpush.msra.mxu0 0.0
    %1370 = vmatpush.msra.mxu0 0.0
    %1371 = vmatpush.msra.mxu0 0.0
    %1372 = vmatpush.msra.mxu0 0.0
    %1373 = vmatpush.msra.mxu0 0.0
    %1374 = vmatpush.msra.mxu0 0.0
    %1375 = vmatpush.msra.mxu0 0.0
    %1376 = vmatpush.msra.mxu0 0.0
    %1377 = vmatpush.msra.mxu0 0.0
    %1378 = vmatpush.msra.mxu0 0.0
    %1379 = vmatpush.msra.mxu0 0.0
    %1380 = vmatpush.msra.mxu0 0.0
    %1381 = vmatpush.msra.mxu0 0.0
    %1382 = vmatpush.msra.mxu0 0.0
    %1383 = vmatpush.msra.mxu0 %v1363
    %1384 = vmatmul.f32.gmra.mxu0 %v1366
    %v1385 = vpop.f32.mrf.mxu0
    %v1386 = vadd.f32 0.0, %v1385
    %1387 = vdwg.mxu0
    %1388 = vrot.lane.b32.xlu0 %v1287, 112
    %v1389 = vpop.permute.xlu0 %1388
    %1390 = vrot.lane.b32.xlu0 %v1316, 80
    %v1391 = vpop.permute.xlu0 %1390
    %v1392 = vsel %vm256, %v1389, 0
    %v1394 = vsel %vm256, %v1391, 0
    %1396 = vmatpush.xpose.msra.mxu0 0.0
    %1397 = vmatpush.xpose.msra.mxu0 0.0
    %1398 = vmatpush.xpose.msra.mxu0 0.0
    %1399 = vmatpush.xpose.msra.mxu0 0.0
    %1400 = vmatpush.xpose.msra.mxu0 0.0
    %1401 = vmatpush.xpose.msra.mxu0 0.0
    %1402 = vmatpush.xpose.msra.mxu0 0.0
    %1403 = vmatpush.xpose.msra.mxu0 0.0
    %1404 = vmatpush.xpose.msra.mxu0 0.0
    %1405 = vmatpush.xpose.msra.mxu0 0.0
    %1406 = vmatpush.xpose.msra.mxu0 0.0
    %1407 = vmatpush.xpose.msra.mxu0 0.0
    %1408 = vmatpush.xpose.msra.mxu0 0.0
    %1409 = vmatpush.xpose.msra.mxu0 0.0
    %1410 = vmatpush.xpose.msra.mxu0 0.0
    %1411 = vmatpush.xpose.msra.mxu0 %v1394
    %1412 = vmatmul.f32.gmra.mxu0 %v1392
    %v1413 = vpop.f32.mrf.mxu0
    %v1414 = vadd.f32 0.0, %v1413
    %1415 = vdwg.mxu0
    %v1416 = vmul.f32 %v1414, 0.25
    %v1417 = vsel %vm282, %v1416, -1e+09
    %v1418 = vsel %vm284, %v1417, -inf
    %1419 = vmax.xlane.f32.xlu0 %v1418
    %v1420 = vpop.xlane.xlu0 %1419
    %v1421 = vsub.f32 %v1417, %v1420
    %v1422 = vmul.f32 %v1421, 1.442695
    %v1423 = vpow.pop %v1422
    %v1424 = vsel %vm284, %v1423, 0.0
    %1425 = vadd.xlane.f32.xlu0 %v1424
    %v1426 = vpop.xlane.xlu0 %1425
    %v1427 = vrcp.pop %v1426
    %v1428 = vmul.f32 %v1423, %v1427
    %1429 = vrot.lane.b32.xlu0 %v1316, 48
    %v1430 = vpop.permute.xlu0 %1429
    %v1433 = vsel %vm284, %v1428, 0
    %1435 = vmatpush.msra.mxu0 0.0
    %1436 = vmatpush.msra.mxu0 0.0
    %1437 = vmatpush.msra.mxu0 0.0
    %1438 = vmatpush.msra.mxu0 0.0
    %1439 = vmatpush.msra.mxu0 0.0
    %1440 = vmatpush.msra.mxu0 0.0
    %1441 = vmatpush.msra.mxu0 0.0
    %1442 = vmatpush.msra.mxu0 0.0
    %1443 = vmatpush.msra.mxu0 0.0
    %1444 = vmatpush.msra.mxu0 0.0
    %1445 = vmatpush.msra.mxu0 0.0
    %1446 = vmatpush.msra.mxu0 0.0
    %1447 = vmatpush.msra.mxu0 0.0
    %1448 = vmatpush.msra.mxu0 0.0
    %1449 = vmatpush.msra.mxu0 0.0
    %1450 = vmatpush.msra.mxu0 %v1430
    %1451 = vmatmul.f32.gmra.mxu0 %v1433
    %v1452 = vpop.f32.mrf.mxu0
    %v1453 = vadd.f32 0.0, %v1452
    %1454 = vdwg.mxu0
    %1456 = vrot.lane.b32.xlu0 %v1453, 16
    %v1457 = vpop.permute.xlu0 %1456
    %v1459 = vsel %vm256, %v1386, %v1457
    %1461 = vrot.lane.b32.xlu0 %v1319, 96
    %v1462 = vpop.permute.xlu0 %1461
    %v1464 = vsel %vm256, %v1290, 0
    %v1466 = vsel %vm256, %v1462, 0
    %1468 = vmatpush.xpose.msra.mxu0 0.0
    %1469 = vmatpush.xpose.msra.mxu0 0.0
    %1470 = vmatpush.xpose.msra.mxu0 0.0
    %1471 = vmatpush.xpose.msra.mxu0 0.0
    %1472 = vmatpush.xpose.msra.mxu0 0.0
    %1473 = vmatpush.xpose.msra.mxu0 0.0
    %1474 = vmatpush.xpose.msra.mxu0 0.0
    %1475 = vmatpush.xpose.msra.mxu0 0.0
    %1476 = vmatpush.xpose.msra.mxu0 0.0
    %1477 = vmatpush.xpose.msra.mxu0 0.0
    %1478 = vmatpush.xpose.msra.mxu0 0.0
    %1479 = vmatpush.xpose.msra.mxu0 0.0
    %1480 = vmatpush.xpose.msra.mxu0 0.0
    %1481 = vmatpush.xpose.msra.mxu0 0.0
    %1482 = vmatpush.xpose.msra.mxu0 0.0
    %1483 = vmatpush.xpose.msra.mxu0 %v1466
    %1484 = vmatmul.f32.gmra.mxu0 %v1464
    %v1485 = vpop.f32.mrf.mxu0
    %v1486 = vadd.f32 0.0, %v1485
    %1487 = vdwg.mxu0
    %v1488 = vmul.f32 %v1486, 0.25
    %v1489 = vsel %vm422, %v1488, -1e+09
    %v1490 = vsel %vm284, %v1489, -inf
    %1491 = vmax.xlane.f32.xlu0 %v1490
    %v1492 = vpop.xlane.xlu0 %1491
    %v1493 = vsub.f32 %v1489, %v1492
    %v1494 = vmul.f32 %v1493, 1.442695
    %v1495 = vpow.pop %v1494
    %v1496 = vsel %vm284, %v1495, 0.0
    %1497 = vadd.xlane.f32.xlu0 %v1496
    %v1498 = vpop.xlane.xlu0 %1497
    %v1499 = vrcp.pop %v1498
    %v1500 = vmul.f32 %v1495, %v1499
    %1501 = vrot.lane.b32.xlu0 %v1319, 64
    %v1502 = vpop.permute.xlu0 %1501
    %v1505 = vsel %vm284, %v1500, 0
    %1507 = vmatpush.msra.mxu0 0.0
    %1508 = vmatpush.msra.mxu0 0.0
    %1509 = vmatpush.msra.mxu0 0.0
    %1510 = vmatpush.msra.mxu0 0.0
    %1511 = vmatpush.msra.mxu0 0.0
    %1512 = vmatpush.msra.mxu0 0.0
    %1513 = vmatpush.msra.mxu0 0.0
    %1514 = vmatpush.msra.mxu0 0.0
    %1515 = vmatpush.msra.mxu0 0.0
    %1516 = vmatpush.msra.mxu0 0.0
    %1517 = vmatpush.msra.mxu0 0.0
    %1518 = vmatpush.msra.mxu0 0.0
    %1519 = vmatpush.msra.mxu0 0.0
    %1520 = vmatpush.msra.mxu0 0.0
    %1521 = vmatpush.msra.mxu0 0.0
    %1522 = vmatpush.msra.mxu0 %v1502
    %1523 = vmatmul.f32.gmra.mxu0 %v1505
    %v1524 = vpop.f32.mrf.mxu0
    %v1525 = vadd.f32 0.0, %v1524
    %1526 = vdwg.mxu0
    %1527 = vrot.lane.b32.xlu0 %v1290, 112
    %v1528 = vpop.permute.xlu0 %1527
    %1529 = vrot.lane.b32.xlu0 %v1319, 80
    %v1530 = vpop.permute.xlu0 %1529
    %v1531 = vsel %vm256, %v1528, 0
    %v1533 = vsel %vm256, %v1530, 0
    %1535 = vmatpush.xpose.msra.mxu0 0.0
    %1536 = vmatpush.xpose.msra.mxu0 0.0
    %1537 = vmatpush.xpose.msra.mxu0 0.0
    %1538 = vmatpush.xpose.msra.mxu0 0.0
    %1539 = vmatpush.xpose.msra.mxu0 0.0
    %1540 = vmatpush.xpose.msra.mxu0 0.0
    %1541 = vmatpush.xpose.msra.mxu0 0.0
    %1542 = vmatpush.xpose.msra.mxu0 0.0
    %1543 = vmatpush.xpose.msra.mxu0 0.0
    %1544 = vmatpush.xpose.msra.mxu0 0.0
    %1545 = vmatpush.xpose.msra.mxu0 0.0
    %1546 = vmatpush.xpose.msra.mxu0 0.0
    %1547 = vmatpush.xpose.msra.mxu0 0.0
    %1548 = vmatpush.xpose.msra.mxu0 0.0
    %1549 = vmatpush.xpose.msra.mxu0 0.0
    %1550 = vmatpush.xpose.msra.mxu0 %v1533
    %1551 = vmatmul.f32.gmra.mxu0 %v1531
    %v1552 = vpop.f32.mrf.mxu0
    %v1553 = vadd.f32 0.0, %v1552
    %1554 = vdwg.mxu0
    %v1555 = vmul.f32 %v1553, 0.25
    %v1556 = vsel %vm422, %v1555, -1e+09
    %v1557 = vsel %vm284, %v1556, -inf
    %1558 = vmax.xlane.f32.xlu0 %v1557
    %v1559 = vpop.xlane.xlu0 %1558
    %v1560 = vsub.f32 %v1556, %v1559
    %v1561 = vmul.f32 %v1560, 1.442695
    %v1562 = vpow.pop %v1561
    %v1563 = vsel %vm284, %v1562, 0.0
    %1564 = vadd.xlane.f32.xlu0 %v1563
    %v1565 = vpop.xlane.xlu0 %1564
    %v1566 = vrcp.pop %v1565
    %v1567 = vmul.f32 %v1562, %v1566
    %1568 = vrot.lane.b32.xlu0 %v1319, 48
    %v1569 = vpop.permute.xlu0 %1568
    %v1572 = vsel %vm284, %v1567, 0
    %1574 = vmatpush.msra.mxu0 0.0
    %1575 = vmatpush.msra.mxu0 0.0
    %1576 = vmatpush.msra.mxu0 0.0
    %1577 = vmatpush.msra.mxu0 0.0
    %1578 = vmatpush.msra.mxu0 0.0
    %1579 = vmatpush.msra.mxu0 0.0
    %1580 = vmatpush.msra.mxu0 0.0
    %1581 = vmatpush.msra.mxu0 0.0
    %1582 = vmatpush.msra.mxu0 0.0
    %1583 = vmatpush.msra.mxu0 0.0
    %1584 = vmatpush.msra.mxu0 0.0
    %1585 = vmatpush.msra.mxu0 0.0
    %1586 = vmatpush.msra.mxu0 0.0
    %1587 = vmatpush.msra.mxu0 0.0
    %1588 = vmatpush.msra.mxu0 0.0
    %1589 = vmatpush.msra.mxu0 %v1569
    %1590 = vmatmul.f32.gmra.mxu0 %v1572
    %v1591 = vpop.f32.mrf.mxu0
    %v1592 = vadd.f32 0.0, %v1591
    %1593 = vdwg.mxu0
    %1595 = vrot.lane.b32.xlu0 %v1592, 16
    %v1596 = vpop.permute.xlu0 %1595
    %v1598 = vsel %vm256, %v1525, %v1596
    %v1599 = vld [vmem:[%s53] sm:$0xff]
    %v1600 = vld [vmem:[%s53 + $0x8] sm:$0xff]
    %v1601 = vld [vmem:[%s53 + $0x10] sm:$0xff]
    %v1602 = vld [vmem:[%s53 + $0x18] sm:$0xff]
    %v1603 = vld [vmem:[%s55] sm:$0x1]
    %v1605 = vperm.slane %v1603, 0
    %v1608 = vsel %vm158, %v1459, 0
    %v1611 = vsel %vm158, %v1598, 0
    %1613 = vmatpush.msra.mxu0 0.0
    %1614 = vmatpush.msra.mxu0 0.0
    %1615 = vmatpush.msra.mxu0 0.0
    %1616 = vmatpush.msra.mxu0 0.0
    %1617 = vmatpush.msra.mxu0 0.0
    %1618 = vmatpush.msra.mxu0 0.0
    %1619 = vmatpush.msra.mxu0 0.0
    %1620 = vmatpush.msra.mxu0 0.0
    %1621 = vmatpush.msra.mxu0 0.0
    %1622 = vmatpush.msra.mxu0 0.0
    %1623 = vmatpush.msra.mxu0 0.0
    %1624 = vmatpush.msra.mxu0 0.0
    %1625 = vmatpush.msra.mxu0 %v1602
    %1626 = vmatpush.msra.mxu0 %v1601
    %1627 = vmatpush.msra.mxu0 %v1600
    %1628 = vmatpush.msra.mxu0 %v1599
    %1629 = vmatmul.f32.gmra.mxu0 %v1608
    %v1630 = vpop.f32.mrf.mxu0
    %v1631 = vadd.f32 %v1605, %v1630
    %1632 = vmatmul.f32.gmra.mxu0 %v1611
    %v1633 = vpop.f32.mrf.mxu0
    %v1634 = vadd.f32 %v1605, %v1633
    %1635 = vdwg.mxu0
    %v1636 = vadd.f32 %v1202, %v1631
    %v1637 = vadd.f32 %v1203, %v1634
    %v1638 = vld [vmem:[%s57] sm:$0x3]
    %v1639 = vsel %vm158, %v1636, 0.0
    %1640 = vadd.xlane.f32.xlu0 %v1639
    %v1641 = vpop.xlane.xlu0 %1640
    %v1642 = vsel %vm158, %v1637, 0.0
    %1643 = vadd.xlane.f32.xlu0 %v1642
    %v1644 = vpop.xlane.xlu0 %1643
    %v1645 = vmul.f32 %v1641, %v171
    %v1646 = vmul.f32 %v1644, %v171
    %v1647 = vsub.f32 %v1636, %v1645
    %v1648 = vsub.f32 %v1637, %v1646
    %v1649 = vmul.f32 %v1647, %v1647
    %v1650 = vmul.f32 %v1648, %v1648
    %v1651 = vsel %vm158, %v1649, 0.0
    %1652 = vadd.xlane.f32.xlu0 %v1651
    %v1653 = vpop.xlane.xlu0 %1652
    %v1654 = vsel %vm158, %v1650, 0.0
    %1655 = vadd.xlane.f32.xlu0 %v1654
    %v1656 = vpop.xlane.xlu0 %1655
    %v1657 = vmul.f32 %v1653, %v171
    %v1658 = vmul.f32 %v1656, %v171
    %v1659 = vadd.f32 %v1657, 1e-06
    %v1660 = vadd.f32 %v1658, 1e-06
    %v1661 = vrsqrt.pop %v1659
    %v1662 = vmul.f32 %v1661, %v1659
    %v1663 = vmul.f32 %v1662, %v1661
    %v1664 = vmul.f32 0.5, %v1663
    %v1665 = vsub.f32 1.5, %v1664
    %v1666 = vmul.f32 %v1661, %v1665
    %vm1667 = vweird.f32 %v1659
    %vm1668 = vweird.f32 %v1661
    %vm1669 = vmor %vm1667, %vm1668
    %v1670 = vsel %vm1669, %v1661, %v1666
    %v1671 = vrsqrt.pop %v1660
    %v1672 = vmul.f32 %v1671, %v1660
    %v1673 = vmul.f32 %v1672, %v1671
    %v1674 = vmul.f32 0.5, %v1673
    %v1675 = vsub.f32 1.5, %v1674
    %v1676 = vmul.f32 %v1671, %v1675
    %vm1677 = vweird.f32 %v1660
    %vm1678 = vweird.f32 %v1671
    %vm1679 = vmor %vm1677, %vm1678
    %v1680 = vsel %vm1679, %v1671, %v1676
    %v1681 = vmul.f32 %v1647, %v1670
    %v1682 = vmul.f32 %v1648, %v1680
    %v1683 = vperm.slane %v1638, 0
    %v1684 = vmul.f32 %v1681, %v1683
    %v1685 = vmul.f32 %v1682, %v1683
    %v1686 = vperm.slane %v1638, 1
    %v1687 = vadd.f32 %v1684, %v1686
    %v1688 = vadd.f32 %v1685, %v1686
    %v1689 = vld [vmem:[%s59] sm:$0xff]
    %v1690 = vld [vmem:[%s59 + $0x8] sm:$0xff]
    %v1691 = vld [vmem:[%s59 + $0x10] sm:$0xff]
    %v1692 = vld [vmem:[%s59 + $0x18] sm:$0xff]
    %v1693 = vld [vmem:[%s61] sm:$0x1]
    %v1695 = vperm.slane %v1693, 0
    %v1698 = vsel %vm158, %v1687, 0
    %v1701 = vsel %vm158, %v1688, 0
    %1703 = vmatpush.msra.mxu0 0.0
    %1704 = vmatpush.msra.mxu0 0.0
    %1705 = vmatpush.msra.mxu0 0.0
    %1706 = vmatpush.msra.mxu0 0.0
    %1707 = vmatpush.msra.mxu0 0.0
    %1708 = vmatpush.msra.mxu0 0.0
    %1709 = vmatpush.msra.mxu0 0.0
    %1710 = vmatpush.msra.mxu0 0.0
    %1711 = vmatpush.msra.mxu0 0.0
    %1712 = vmatpush.msra.mxu0 0.0
    %1713 = vmatpush.msra.mxu0 0.0
    %1714 = vmatpush.msra.mxu0 0.0
    %1715 = vmatpush.msra.mxu0 %v1692
    %1716 = vmatpush.msra.mxu0 %v1691
    %1717 = vmatpush.msra.mxu0 %v1690
    %1718 = vmatpush.msra.mxu0 %v1689
    %1719 = vmatmul.f32.gmra.mxu0 %v1698
    %v1720 = vpop.f32.mrf.mxu0
    %v1721 = vadd.f32 %v1695, %v1720
    %1722 = vmatmul.f32.gmra.mxu0 %v1701
    %v1723 = vpop.f32.mrf.mxu0
    %v1724 = vadd.f32 %v1695, %v1723
    %1725 = vdwg.mxu0
    %v1726 = vmax.f32 %v1721, 0.0
    %v1727 = vmax.f32 %v1724, 0.0
    %v1728 = vld [vmem:[%s63] sm:$0xff]
    %v1729 = vld [vmem:[%s63 + $0x8] sm:$0xff]
    %v1730 = vld [vmem:[%s63 + $0x10] sm:$0xff]
    %v1731 = vld [vmem:[%s63 + $0x18] sm:$0xff]
    %v1732 = vld [vmem:[%s63 + $0x20] sm:$0xff]
    %v1733 = vld [vmem:[%s63 + $0x28] sm:$0xff]
    %v1734 = vld [vmem:[%s63 + $0x30] sm:$0xff]
    %v1735 = vld [vmem:[%s63 + $0x38] sm:$0xff]
    %v1736 = vld [vmem:[%s65] sm:$0x1]
    %v1738 = vperm.slane %v1736, 0
    %v1741 = vsel %vm674, %v1726, 0
    %v1744 = vsel %vm674, %v1727, 0
    %1746 = vmatpush.msra.mxu0 0.0
    %1747 = vmatpush.msra.mxu0 0.0
    %1748 = vmatpush.msra.mxu0 0.0
    %1749 = vmatpush.msra.mxu0 0.0
    %1750 = vmatpush.msra.mxu0 0.0
    %1751 = vmatpush.msra.mxu0 0.0
    %1752 = vmatpush.msra.mxu0 0.0
    %1753 = vmatpush.msra.mxu0 0.0
    %1754 = vmatpush.msra.mxu0 %v1735
    %1755 = vmatpush.msra.mxu0 %v1734
    %1756 = vmatpush.msra.mxu0 %v1733
    %1757 = vmatpush.msra.mxu0 %v1732
    %1758 = vmatpush.msra.mxu0 %v1731
    %1759 = vmatpush.msra.mxu0 %v1730
    %1760 = vmatpush.msra.mxu0 %v1729
    %1761 = vmatpush.msra.mxu0 %v1728
    %1762 = vmatmul.f32.gmra.mxu0 %v1741
    %v1763 = vpop.f32.mrf.mxu0
    %v1764 = vadd.f32 %v1738, %v1763
    %1765 = vmatmul.f32.gmra.mxu0 %v1744
    %v1766 = vpop.f32.mrf.mxu0
    %v1767 = vadd.f32 %v1738, %v1766
    %1768 = vdwg.mxu0
    %v1769 = vadd.f32 %v1636, %v1764
    %v1770 = vadd.f32 %v1637, %v1767
    %v1771 = vld [vmem:[%s67] sm:$0x3]
    %v1772 = vsel %vm158, %v1769, 0.0
    %1773 = vadd.xlane.f32.xlu0 %v1772
    %v1774 = vpop.xlane.xlu0 %1773
    %v1775 = vsel %vm158, %v1770, 0.0
    %1776 = vadd.xlane.f32.xlu0 %v1775
    %v1777 = vpop.xlane.xlu0 %1776
    %v1778 = vmul.f32 %v1774, %v171
    %v1779 = vmul.f32 %v1777, %v171
    %v1780 = vsub.f32 %v1769, %v1778
    %v1781 = vsub.f32 %v1770, %v1779
    %v1782 = vmul.f32 %v1780, %v1780
    %v1783 = vmul.f32 %v1781, %v1781
    %v1784 = vsel %vm158, %v1782, 0.0
    %1785 = vadd.xlane.f32.xlu0 %v1784
    %v1786 = vpop.xlane.xlu0 %1785
    %v1787 = vsel %vm158, %v1783, 0.0
    %1788 = vadd.xlane.f32.xlu0 %v1787
    %v1789 = vpop.xlane.xlu0 %1788
    %v1790 = vmul.f32 %v1786, %v171
    %v1791 = vmul.f32 %v1789, %v171
    %v1792 = vadd.f32 %v1790, 1e-06
    %v1793 = vadd.f32 %v1791, 1e-06
    %v1794 = vrsqrt.pop %v1792
    %v1795 = vmul.f32 %v1794, %v1792
    %v1796 = vmul.f32 %v1795, %v1794
    %v1797 = vmul.f32 0.5, %v1796
    %v1798 = vsub.f32 1.5, %v1797
    %v1799 = vmul.f32 %v1794, %v1798
    %vm1800 = vweird.f32 %v1792
    %vm1801 = vweird.f32 %v1794
    %vm1802 = vmor %vm1800, %vm1801
    %v1803 = vsel %vm1802, %v1794, %v1799
    %v1804 = vrsqrt.pop %v1793
    %v1805 = vmul.f32 %v1804, %v1793
    %v1806 = vmul.f32 %v1805, %v1804
    %v1807 = vmul.f32 0.5, %v1806
    %v1808 = vsub.f32 1.5, %v1807
    %v1809 = vmul.f32 %v1804, %v1808
    %vm1810 = vweird.f32 %v1793
    %vm1811 = vweird.f32 %v1804
    %vm1812 = vmor %vm1810, %vm1811
    %v1813 = vsel %vm1812, %v1804, %v1809
    %v1814 = vmul.f32 %v1780, %v1803
    %v1815 = vmul.f32 %v1781, %v1813
    %v1816 = vperm.slane %v1771, 0
    %v1817 = vmul.f32 %v1814, %v1816
    %v1818 = vmul.f32 %v1815, %v1816
    %v1819 = vperm.slane %v1771, 1
    %v1820 = vadd.f32 %v1817, %v1819
    %v1821 = vadd.f32 %v1818, %v1819
    %v1822 = vld [vmem:[%s69] sm:$0xff]
    %v1823 = vld [vmem:[%s69 + $0x8] sm:$0xff]
    %v1824 = vld [vmem:[%s69 + $0x10] sm:$0xff]
    %v1825 = vld [vmem:[%s69 + $0x18] sm:$0xff]
    %v1826 = vld [vmem:[%s71] sm:$0x1]
    %v1828 = vperm.slane %v1826, 0
    %v1831 = vsel %vm158, %v1820, 0
    %v1834 = vsel %vm158, %v1821, 0
    %1836 = vmatpush.msra.mxu0 0.0
    %1837 = vmatpush.msra.mxu0 0.0
    %1838 = vmatpush.msra.mxu0 0.0
    %1839 = vmatpush.msra.mxu0 0.0
    %1840 = vmatpush.msra.mxu0 0.0
    %1841 = vmatpush.msra.mxu0 0.0
    %1842 = vmatpush.msra.mxu0 0.0
    %1843 = vmatpush.msra.mxu0 0.0
    %1844 = vmatpush.msra.mxu0 0.0
    %1845 = vmatpush.msra.mxu0 0.0
    %1846 = vmatpush.msra.mxu0 0.0
    %1847 = vmatpush.msra.mxu0 0.0
    %1848 = vmatpush.msra.mxu0 %v1825
    %1849 = vmatpush.msra.mxu0 %v1824
    %1850 = vmatpush.msra.mxu0 %v1823
    %1851 = vmatpush.msra.mxu0 %v1822
    %1852 = vmatmul.f32.gmra.mxu0 %v1831
    %v1853 = vpop.f32.mrf.mxu0
    %v1854 = vadd.f32 %v1828, %v1853
    %1855 = vmatmul.f32.gmra.mxu0 %v1834
    %v1856 = vpop.f32.mrf.mxu0
    %v1857 = vadd.f32 %v1828, %v1856
    %1858 = vdwg.mxu0
    %1859 = vst.msk [vmem:[#allocation2] sm:$0xff] %vm256, %v1854
    %1860 = vst.msk [vmem:[#allocation2 + $0x8] sm:$0xff] %vm256, %v1857
    // Predicated region
    $region146: #{model_forward.1} parent=1 // pred_check
      _
    $region147: #{model_forward.1} parent=1 // pred_check_branch
      %1862 = sbr.rel (0) target = $region149
    $region148: #{model_forward.1} parent=1 // pred_region
      %1864 = vsyncadd [#allocation3], 0
      %s1865 = sshll.u32 [#allocation2], 4
      %s1866 = int_to_ptr.vmem [resolvable:$true] %s1865
      %s1867 = sshll.u32 %s73, 4
      %s1868 = int_to_ptr.hbm [resolvable:$true] %s1867
      %1873 = dma.vmem_to_hbm [thread:$0]  %s1866, 256, %s1868, [#allocation3], 128, 128, 8
    $region149: #{model_forward.1} parent=1 // pred_fallthru
      _
    // Predicated region
    $region150: #{model_forward.1} parent=1 // pred_check
      _
    $region151: #{model_forward.1} parent=1 // pred_check_branch
      %1875 = sbr.rel (0) target = $region153
    $region152: #{model_forward.1} parent=1 // pred_region
      %1877 = dma.done [#allocation3], 256
    $region153: #{model_forward.1} parent=1 // pred_fallthru
      _
    %1878 = vsyncpa [#allocation3], 1

</llo_original>
